<compile_context>
chip_gen: v7x
topology: tpu7x:2x2x1
jax: 0.10.0
libtpu: 0.0.40
codegen_flags: <defaults>
</compile_context>

<pallas_src>
import math
import functools

import jax
import jax.numpy as jnp
from jax.experimental import pallas as pl
from jax.experimental.pallas import tpu as pltpu


_VMEM_LIMIT = 48 * 1024 * 1024   # fits v7x 64 MiB/TC with headroom; fine on v5e/v6e
_SEQ_TILE = 256                  # activation row tile
_KV_TILE = 512                   # attention KV tile
_MM_N_TILE = 512                 # matmul output-column tile
_MM_K_TILE = 512                 # matmul contraction tile (FFN down)


def _tile(dim, target):
    """Use `target` when it evenly divides `dim`, else fall back to the full dim."""
    if dim <= target or dim % target != 0:
        return dim
    return target


# ----------------------------- in-kernel helpers ----------------------------

def _layer_norm(z, w, b, eps):
    mu = jnp.mean(z, axis=-1, keepdims=True)
    var = jnp.mean(jnp.square(z - mu), axis=-1, keepdims=True)
    return (z - mu) * jax.lax.rsqrt(var + eps) * w + b


def _erf(x):
    # Abramowitz & Stegun 7.1.26 (max abs err ~1.5e-7 ~= f32 eps), built from
    # exp/mul/add/where only so it lowers deterministically on every TPU backend
    # (matches torch's exact erf-based F.gelu to float32 precision).
    p = 0.3275911
    a1, a2, a3, a4, a5 = (0.254829592, -0.284496736, 1.421413741,
                          -1.453152027, 1.061405429)
    ax = jnp.abs(x)
    t = 1.0 / (1.0 + p * ax)
    poly = ((((a5 * t + a4) * t + a3) * t + a2) * t + a1) * t
    y = 1.0 - poly * jnp.exp(-ax * ax)
    return jnp.where(x >= 0, y, -y)


def _gelu_exact(z):
    return 0.5 * z * (1.0 + _erf(z * (1.0 / math.sqrt(2.0))))


# --------------------------------- kernels ----------------------------------

def _rope_kernel(lane_aligned, x_ref, cos_ref, sin_ref, o_ref):
    # out = x * [cos, cos] + rotate_half(x) * [sin, -sin]  (single lane-dense store)
    x = x_ref[0]                                          # (tS, D) f32
    d = x.shape[-1]
    if lane_aligned:                                      # static: D % 256 == 0
        x_rot = pltpu.roll(x, d // 2, 1)                  # XLU rotate-half (free slot)
    else:
        half = d // 2
        x_rot = jnp.concatenate([x[:, half:], x[:, :half]], axis=-1)
    o_ref[0] = x * cos_ref[...] + x_rot * sin_ref[...]


def _ln_qkv_kernel(eps, x_ref, lnw_ref, lnb_ref, w_ref, b_ref, o_ref, h_sc):
    # grid = (B, S-tiles, 3H); the last axis streams one (D, hd) weight block.
    @pl.when(pl.program_id(2) == 0)
    def _():                                              # LayerNorm once per (b, i)
        h_sc[...] = _layer_norm(x_ref[0], lnw_ref[...], lnb_ref[...],
                                eps).astype(h_sc.dtype)
    acc = jnp.dot(h_sc[...], w_ref[0], preferred_element_type=jnp.float32)
    o_ref[0, 0] = (acc + b_ref[0]).astype(o_ref.dtype)


def _flash_attn_kernel(q_ref, k_ref, v_ref, o_ref, m_sc, l_sc, acc_sc):
    j = pl.program_id(3)                                  # KV-tile (reduction) axis

    @pl.when(j == 0)
    def _():
        m_sc[...] = jnp.full(m_sc.shape, -jnp.inf, m_sc.dtype)
        l_sc[...] = jnp.zeros(l_sc.shape, l_sc.dtype)
        acc_sc[...] = jnp.zeros(acc_sc.shape, acc_sc.dtype)

    q = q_ref[0, 0]                                       # (tQ, hd); 1/sqrt(hd) folded in
    k = k_ref[0, 0]                                       # (tK, hd)
    v = v_ref[0, 0]
    s = jax.lax.dot_general(q, k, (((1,), (1,)), ((), ())),
                            preferred_element_type=jnp.float32)      # (tQ, tK) f32
    m_prev = m_sc[...]
    m_new = jnp.maximum(m_prev, jnp.max(s, axis=-1, keepdims=True))
    alpha = jnp.exp(m_prev - m_new)
    p = jnp.exp(s - m_new)
    l_sc[...] = alpha * l_sc[...] + jnp.sum(p, axis=-1, keepdims=True)
    acc_sc[...] = alpha * acc_sc[...] + jnp.dot(
        p.astype(v.dtype), v, preferred_element_type=jnp.float32)
    m_sc[...] = m_new

    @pl.when(j == pl.num_programs(3) - 1)
    def _():
        o_ref[0, 0] = (acc_sc[...] *
                       pl.reciprocal(l_sc[...], approx=True)).astype(o_ref.dtype)


def _outproj_residual_kernel(ctx_ref, w_ref, b_ref, x_ref, o_ref, acc_sc):
    h = pl.program_id(3)                                  # head axis == contraction

    @pl.when(h == 0)
    def _():
        acc_sc[...] = jnp.zeros(acc_sc.shape, acc_sc.dtype)

    acc_sc[...] += jnp.dot(ctx_ref[0, 0], w_ref[0],
                           preferred_element_type=jnp.float32)

    @pl.when(h == pl.num_programs(3) - 1)
    def _():
        o_ref[0] = (x_ref[0] + acc_sc[...] + b_ref[...]).astype(o_ref.dtype)


def _ln_ffn_up_kernel(eps, x_ref, lnw_ref, lnb_ref, w_ref, b_ref, o_ref, h_sc):
    @pl.when(pl.program_id(2) == 0)
    def _():
        h_sc[...] = _layer_norm(x_ref[0], lnw_ref[...], lnb_ref[...],
                                eps).astype(h_sc.dtype)
    z = jnp.dot(h_sc[...], w_ref[...],
                preferred_element_type=jnp.float32) + b_ref[...]
    o_ref[0] = _gelu_exact(z).astype(o_ref.dtype)


def _ffn_down_residual_kernel(u_ref, w_ref, b_ref, x_ref, o_ref, acc_sc):
    k = pl.program_id(3)                                  # FFN-dim contraction axis

    @pl.when(k == 0)
    def _():
        acc_sc[...] = jnp.zeros(acc_sc.shape, acc_sc.dtype)

    acc_sc[...] += jnp.dot(u_ref[0], w_ref[...],
                           preferred_element_type=jnp.float32)

    @pl.when(k == pl.num_programs(3) - 1)
    def _():
        o_ref[0] = (x_ref[0] + acc_sc[...] + b_ref[...]).astype(o_ref.dtype)


def _final_norm_kernel(eps, x_ref, w_ref, b_ref, o_ref):
    o_ref[0] = _layer_norm(x_ref[0], w_ref[...], b_ref[...], eps).astype(o_ref.dtype)


# ------------------------------ call wrappers --------------------------------

def _cp(semantics):
    return pltpu.CompilerParams(dimension_semantics=semantics,
                                vmem_limit_bytes=_VMEM_LIMIT)


def apply_rope(x, cos_full, sin_full):
    B, S, D = x.shape
    tS = _tile(S, _SEQ_TILE)
    kernel = functools.partial(_rope_kernel, D % 256 == 0)
    return pl.pallas_call(
        kernel,
        out_shape=jax.ShapeDtypeStruct((B, S, D), x.dtype),
        grid=(B, S // tS),
        in_specs=[pl.BlockSpec((1, tS, D), lambda b, i: (b, i, 0)),
                  pl.BlockSpec((tS, D), lambda b, i: (i, 0)),
                  pl.BlockSpec((tS, D), lambda b, i: (i, 0))],
        out_specs=pl.BlockSpec((1, tS, D), lambda b, i: (b, i, 0)),
        compiler_params=_cp(("parallel", "parallel")),
    )(x, cos_full, sin_full)


def ln_qkv_proj(x, lnw, lnb, wqkv_h, bqkv_h, eps):
    B, S, D = x.shape
    G, _, hd = wqkv_h.shape                               # G = 3 * n_heads
    tS = _tile(S, _SEQ_TILE)
    kernel = functools.partial(_ln_qkv_kernel, eps)
    return pl.pallas_call(
        kernel,
        out_shape=jax.ShapeDtypeStruct((G, B, S, hd), wqkv_h.dtype),
        grid=(B, S // tS, G),
        in_specs=[pl.BlockSpec((1, tS, D), lambda b, i, n: (b, i, 0)),
                  pl.BlockSpec((1, D), lambda b, i, n: (0, 0)),
                  pl.BlockSpec((1, D), lambda b, i, n: (0, 0)),
                  pl.BlockSpec((1, D, hd), lambda b, i, n: (n, 0, 0)),
                  pl.BlockSpec((1, 1, hd), lambda b, i, n: (n, 0, 0))],
        out_specs=pl.BlockSpec((1, 1, tS, hd), lambda b, i, n: (n, b, i, 0)),
        scratch_shapes=[pltpu.VMEM((tS, D), wqkv_h.dtype)],
        compiler_params=_cp(("parallel", "parallel", "arbitrary")),
    )(x, lnw, lnb, wqkv_h, bqkv_h)


def flash_attention(qkv, n_heads):
    G, B, S, hd = qkv.shape
    H = n_heads
    tQ = _tile(S, _SEQ_TILE)
    tK = _tile(S, _KV_TILE)
    return pl.pallas_call(
        _flash_attn_kernel,
        out_shape=jax.ShapeDtypeStruct((H, B, S, hd), qkv.dtype),
        grid=(B, H, S // tQ, S // tK),
        in_specs=[
            pl.BlockSpec((1, 1, tQ, hd), lambda b, h, i, j: (h, b, i, 0)),
            pl.BlockSpec((1, 1, tK, hd), lambda b, h, i, j: (H + h, b, j, 0)),
            pl.BlockSpec((1, 1, tK, hd), lambda b, h, i, j: (2 * H + h, b, j, 0)),
        ],
        out_specs=pl.BlockSpec((1, 1, tQ, hd), lambda b, h, i, j: (h, b, i, 0)),
        scratch_shapes=[pltpu.VMEM((tQ, 1), jnp.float32),
                        pltpu.VMEM((tQ, 1), jnp.float32),
                        pltpu.VMEM((tQ, hd), jnp.float32)],
        compiler_params=_cp(("parallel", "parallel", "parallel", "arbitrary")),
    )(qkv, qkv, qkv)


def attn_out_proj_residual(ctx, wo_h, bo, x):
    H, B, S, hd = ctx.shape
    D = x.shape[-1]
    tS = _tile(S, _SEQ_TILE)
    tN = _tile(D, _MM_N_TILE)
    return pl.pallas_call(
        _outproj_residual_kernel,
        out_shape=jax.ShapeDtypeStruct((B, S, D), x.dtype),
        grid=(B, S // tS, D // tN, H),
        in_specs=[pl.BlockSpec((1, 1, tS, hd), lambda b, i, n, h: (h, b, i, 0)),
                  pl.BlockSpec((1, hd, tN), lambda b, i, n, h: (h, 0, n)),
                  pl.BlockSpec((1, tN), lambda b, i, n, h: (0, n)),
                  pl.BlockSpec((1, tS, tN), lambda b, i, n, h: (b, i, n))],
        out_specs=pl.BlockSpec((1, tS, tN), lambda b, i, n, h: (b, i, n)),
        scratch_shapes=[pltpu.VMEM((tS, tN), jnp.float32)],
        compiler_params=_cp(("parallel", "parallel", "parallel", "arbitrary")),
    )(ctx, wo_h, bo, x)


def ln_ffn_up_gelu(x, lnw, lnb, w1, b1, eps):
    B, S, D = x.shape
    F = w1.shape[-1]
    tS = _tile(S, _SEQ_TILE)
    tF = _tile(F, _MM_N_TILE)
    kernel = functools.partial(_ln_ffn_up_kernel, eps)
    return pl.pallas_call(
        kernel,
        out_shape=jax.ShapeDtypeStruct((B, S, F), w1.dtype),
        grid=(B, S // tS, F // tF),
        in_specs=[pl.BlockSpec((1, tS, D), lambda b, i, n: (b, i, 0)),
                  pl.BlockSpec((1, D), lambda b, i, n: (0, 0)),
                  pl.BlockSpec((1, D), lambda b, i, n: (0, 0)),
                  pl.BlockSpec((D, tF), lambda b, i, n: (0, n)),
                  pl.BlockSpec((1, tF), lambda b, i, n: (0, n))],
        out_specs=pl.BlockSpec((1, tS, tF), lambda b, i, n: (b, i, n)),
        scratch_shapes=[pltpu.VMEM((tS, D), w1.dtype)],
        compiler_params=_cp(("parallel", "parallel", "arbitrary")),
    )(x, lnw, lnb, w1, b1)


def ffn_down_residual(u, w2, b2, x):
    B, S, F = u.shape
    D = x.shape[-1]
    tS = _tile(S, _SEQ_TILE)
    tN = _tile(D, _MM_N_TILE)
    tK = _tile(F, _MM_K_TILE)
    return pl.pallas_call(
        _ffn_down_residual_kernel,
        out_shape=jax.ShapeDtypeStruct((B, S, D), x.dtype),
        grid=(B, S // tS, D // tN, F // tK),
        in_specs=[pl.BlockSpec((1, tS, tK), lambda b, i, n, k: (b, i, k)),
                  pl.BlockSpec((tK, tN), lambda b, i, n, k: (k, n)),
                  pl.BlockSpec((1, tN), lambda b, i, n, k: (0, n)),
                  pl.BlockSpec((1, tS, tN), lambda b, i, n, k: (b, i, n))],
        out_specs=pl.BlockSpec((1, tS, tN), lambda b, i, n, k: (b, i, n)),
        scratch_shapes=[pltpu.VMEM((tS, tN), jnp.float32)],
        compiler_params=_cp(("parallel", "parallel", "parallel", "arbitrary")),
    )(u, w2, b2, x)


def final_layer_norm(x, w, b, eps):
    B, S, D = x.shape
    tS = _tile(S, _SEQ_TILE)
    kernel = functools.partial(_final_norm_kernel, eps)
    return pl.pallas_call(
        kernel,
        out_shape=jax.ShapeDtypeStruct((B, S, D), x.dtype),
        grid=(B, S // tS),
        in_specs=[pl.BlockSpec((1, tS, D), lambda b, i: (b, i, 0)),
                  pl.BlockSpec((1, D), lambda b, i: (0, 0)),
                  pl.BlockSpec((1, D), lambda b, i: (0, 0))],
        out_specs=pl.BlockSpec((1, tS, D), lambda b, i: (b, i, 0)),
        compiler_params=_cp(("parallel", "parallel")),
    )(x, w, b)


# --------------------------- parameter preparation ---------------------------

def _rope_tables(S, D, theta, use_scaled):
    half = D // 2
    freqs = theta ** (-jnp.arange(half, dtype=jnp.float32) / half)
    t = jnp.arange(S, dtype=jnp.float32)
    ang = t[:, None] * freqs
    sin, cos = jnp.sin(ang), jnp.cos(ang)
    if use_scaled:
        scale = math.sqrt(half)
        sin, cos = sin * scale, cos * scale
    # full-width tables for the rotate-half formulation
    cos_full = jnp.concatenate([cos, cos], axis=-1)        # (S, D)
    sin_full = jnp.concatenate([sin, -sin], axis=-1)       # (S, D)
    return cos_full, sin_full


def prepare_params(params, config, compute_dtype):
    """Pack torch-layout weights into kernel layouts: fused per-head QKV weights
    (3H, D, hd) in bf16 with 1/sqrt(hd) folded into q, per-head out-proj (H, hd, D),
    FFN weights cast to bf16; all biases / norm params stay f32."""
    D = config["dim"]
    H = config["n_heads"]
    hd = D // H
    inv_sqrt_hd = 1.0 / math.sqrt(hd)

    def per_head_cols(w):                                  # (D, D)(in,out) -> (H, D, hd)
        return jnp.transpose(w.reshape(D, H, hd), (1, 0, 2))

    layers = []
    for lp in params["layers"]:
        wqkv = jnp.concatenate(
            [per_head_cols(lp["wq"]) * inv_sqrt_hd,
             per_head_cols(lp["wk"]),
             per_head_cols(lp["wv"])], axis=0).astype(compute_dtype)   # (3H, D, hd)
        bqkv = jnp.concatenate(
            [lp["bq"].reshape(H, 1, hd) * inv_sqrt_hd,
             lp["bk"].reshape(H, 1, hd),
             lp["bv"].reshape(H, 1, hd)], axis=0)                       # (3H, 1, hd) f32
        layers.append(dict(
            ln1_w=lp["ln1_w"], ln1_b=lp["ln1_b"],
            wqkv=wqkv, bqkv=bqkv,
            wo=lp["wo"].reshape(H, hd, D).astype(compute_dtype), bo=lp["bo"],
            ln2_w=lp["ln2_w"], ln2_b=lp["ln2_b"],
            w1=lp["w1"].astype(compute_dtype), b1=lp["b1"],
            w2=lp["w2"].astype(compute_dtype), b2=lp["b2"]))
    return dict(layers=layers, norm_w=params["norm_w"], norm_b=params["norm_b"])


# ------------------------------ model forward --------------------------------

def llama_forward(input_ids, params, config, compute_dtype=jnp.bfloat16):
    B, S = input_ids.shape
    D = config["dim"]
    H = config["n_heads"]
    eps = config["norm_eps"]

    kp = prepare_params(params, config, compute_dtype)

    # glue: token embedding gather (data-dependent gather; no clean BlockSpec form)
    x = jnp.take(params["embedding"], input_ids, axis=0)               # (B, S, D) f32

    cos_full, sin_full = _rope_tables(S, D, config["rope_theta"],
                                      config["use_scaled_rope"])
    x = apply_rope(x, cos_full, sin_full)

    # TODO(synk): cross-layer weight prefetch (cross-call DMA futures, P10) not
    # implemented; each layer is a chain of tiled, double-buffered pallas_calls.
    for lp in kp["layers"]:
        qkv = ln_qkv_proj(x, lp["ln1_w"], lp["ln1_b"], lp["wqkv"], lp["bqkv"], eps)
        ctx = flash_attention(qkv, H)
        x = attn_out_proj_residual(ctx, lp["wo"], lp["bo"], x)
        u = ln_ffn_up_gelu(x, lp["ln2_w"], lp["ln2_b"], lp["w1"], lp["b1"], eps)
        x = ffn_down_residual(u, lp["w2"], lp["b2"], x)

    # TODO(synk): final LayerNorm could be fused into the last ffn_down epilogue when
    # its N-tile spans the full hidden dim; kept separate for generality.
    return final_layer_norm(x, kp["norm_w"], kp["norm_b"], eps)


# ----------------------------- deterministic init ----------------------------

def init_params(key, config):
    D = config["dim"]
    F = int(D * config["ffn_dim_multiplier"])
    V = config["vocab_size"]

    def linear(k, din, dout, scale=0.05):
        kw, kb = jax.random.split(k)
        return (jax.random.normal(kw, (din, dout), jnp.float32) * scale,
                jax.random.normal(kb, (1, dout), jnp.float32) * scale)

    keys = jax.random.split(key, config["n_layers"] + 1)
    params = {
        "embedding": jax.random.normal(keys[0], (V, D), jnp.float32) * 0.05,
        "norm_w": jnp.ones((1, D), jnp.float32),
        "norm_b": jnp.zeros((1, D), jnp.float32),
        "layers": [],
    }
    for li in range(config["n_layers"]):
        ks = jax.random.split(keys[li + 1], 6)
        wq, bq = linear(ks[0], D, D)
        wk, bk = linear(ks[1], D, D)
        wv, bv = linear(ks[2], D, D)
        wo, bo = linear(ks[3], D, D)
        w1, b1 = linear(ks[4], D, F)
        w2, b2 = linear(ks[5], F, D)
        params["layers"].append(dict(
            ln1_w=jnp.ones((1, D), jnp.float32),
            ln1_b=jnp.zeros((1, D), jnp.float32),
            wq=wq, bq=bq, wk=wk, bk=bk, wv=wv, bv=bv, wo=wo, bo=bo,
            ln2_w=jnp.ones((1, D), jnp.float32),
            ln2_b=jnp.zeros((1, D), jnp.float32),
            w1=w1, b1=b1, w2=w2, b2=b2))
    return params


if __name__ == "__main__":
    config = dict(vocab_size=64, dim=32, ffn_dim_multiplier=2.0, n_heads=4,
                  n_kv_heads=4, n_layers=2, norm_eps=1e-5, rope_theta=10000.0,
                  use_scaled_rope=True)
    key = jax.random.PRNGKey(0)
    k_ids, k_params = jax.random.split(key)
    input_ids = jax.random.randint(k_ids, (2, 8), 0, config["vocab_size"])
    params = init_params(k_params, config)

    fwd = jax.jit(functools.partial(llama_forward, config=config))
    out = jax.block_until_ready(fwd(input_ids, params))

    assert out.shape == (2, 8, config["dim"]) and out.dtype == jnp.float32
    print("KERNEL_OK")
</pallas_src>

<mosaic_0001>
module attributes {stable_mosaic.version = 11 : i64} {
  func.func @_rope_kernel(%arg0: i32, %arg1: i32, %arg2: memref<1x8x32xf32, #tpu.memory_space<vmem>>, %arg3: memref<8x32xf32, #tpu.memory_space<vmem>>, %arg4: memref<8x32xf32, #tpu.memory_space<vmem>>, %arg5: memref<1x8x32xf32, #tpu.memory_space<vmem>>) attributes {dimension_semantics = [#tpu.dimension_semantics<parallel>, #tpu.dimension_semantics<parallel>], iteration_bounds = array<i64: 2, 1>, scalar_prefetch = 0 : i64, scratch_operands = 0 : i64, tpu.core_type = #tpu.core_type<tc>, window_params = [{transform_indices = @transform_0, window_bounds = array<i64: 1, 8, 32>}, {transform_indices = @transform_1, window_bounds = array<i64: 8, 32>}, {transform_indices = @transform_2, window_bounds = array<i64: 8, 32>}, {transform_indices = @transform_3, window_bounds = array<i64: 1, 8, 32>}]} {
    %c0 = arith.constant 0 : index
    %c0_0 = arith.constant 0 : index
    %c0_1 = arith.constant 0 : index
    %0 = vector.load %arg2[%c0, %c0_0, %c0_1] : memref<1x8x32xf32, #tpu.memory_space<vmem>>, vector<1x8x32xf32>
    %1 = vector.shape_cast %0 : vector<1x8x32xf32> to vector<8x32xf32>
    %2 = vector.extract_strided_slice %1 {offsets = [0, 16], sizes = [8, 16], strides = [1, 1]} : vector<8x32xf32> to vector<8x16xf32>
    %3 = vector.extract_strided_slice %1 {offsets = [0, 0], sizes = [8, 16], strides = [1, 1]} : vector<8x32xf32> to vector<8x16xf32>
    %4 = tpu.concatenate %2, %3 in 1 : vector<8x16xf32>, vector<8x16xf32> -> vector<8x32xf32>
    %c0_2 = arith.constant 0 : index
    %c0_3 = arith.constant 0 : index
    %5 = vector.load %arg3[%c0_2, %c0_3] : memref<8x32xf32, #tpu.memory_space<vmem>>, vector<8x32xf32>
    %6 = arith.mulf %1, %5 : vector<8x32xf32>
    %c0_4 = arith.constant 0 : index
    %c0_5 = arith.constant 0 : index
    %7 = vector.load %arg4[%c0_4, %c0_5] : memref<8x32xf32, #tpu.memory_space<vmem>>, vector<8x32xf32>
    %8 = arith.mulf %4, %7 : vector<8x32xf32>
    %9 = arith.addf %6, %8 : vector<8x32xf32>
    %c0_6 = arith.constant 0 : index
    %c0_7 = arith.constant 0 : index
    %c0_8 = arith.constant 0 : index
    %10 = vector.load %arg5[%c0_6, %c0_7, %c0_8] : memref<1x8x32xf32, #tpu.memory_space<vmem>>, vector<1x8x32xf32>
    %11 = vector.shape_cast %10 : vector<1x8x32xf32> to vector<8x32xf32>
    %12 = vector.shape_cast %9 : vector<8x32xf32> to vector<1x8x32xf32>
    tpu.vector_store %arg5[%c0_6, %c0_7, %c0_8], %12 {strides = array<i32>} : memref<1x8x32xf32, #tpu.memory_space<vmem>>, vector<1x8x32xf32>,
    return
  }
  func.func @transform_0(%arg0: i32, %arg1: i32) -> (i32, i32, i32) {
    %c0_i32 = arith.constant 0 : i32
    %c0_i32_0 = arith.constant 0 : i32
    return %arg0, %arg1, %c0_i32 : i32, i32, i32
  }
  func.func @transform_1(%arg0: i32, %arg1: i32) -> (i32, i32) {
    %c0_i32 = arith.constant 0 : i32
    %c0_i32_0 = arith.constant 0 : i32
    return %arg1, %c0_i32 : i32, i32
  }
  func.func @transform_2(%arg0: i32, %arg1: i32) -> (i32, i32) {
    %c0_i32 = arith.constant 0 : i32
    %c0_i32_0 = arith.constant 0 : i32
    return %arg1, %c0_i32 : i32, i32
  }
  func.func @transform_3(%arg0: i32, %arg1: i32) -> (i32, i32, i32) {
    %c0_i32 = arith.constant 0 : i32
    %c0_i32_0 = arith.constant 0 : i32
    return %arg0, %arg1, %c0_i32 : i32, i32, i32
  }
}

module attributes {stable_mosaic.version = 11 : i64} {
  func.func @_ln_qkv_kernel(%arg0: i32, %arg1: i32, %arg2: i32, %arg3: memref<1x8x32xf32, #tpu.memory_space<vmem>>, %arg4: memref<1x32xf32, #tpu.memory_space<vmem>>, %arg5: memref<1x32xf32, #tpu.memory_space<vmem>>, %arg6: memref<1x32x8xbf16, #tpu.memory_space<vmem>>, %arg7: memref<1x1x8xf32, #tpu.memory_space<vmem>>, %arg8: memref<1x1x8x8xbf16, #tpu.memory_space<vmem>>, %arg9: memref<8x32xbf16, #tpu.memory_space<vmem>>) attributes {dimension_semantics = [#tpu.dimension_semantics<parallel>, #tpu.dimension_semantics<parallel>, #tpu.dimension_semantics<arbitrary>], iteration_bounds = array<i64: 2, 1, 12>, scalar_prefetch = 0 : i64, scratch_operands = 1 : i64, tpu.core_type = #tpu.core_type<tc>, window_params = [{transform_indices = @transform_0, window_bounds = array<i64: 1, 8, 32>}, {pipeline_mode = #tpu.pipeline_mode<synchronous>, transform_indices = @transform_1, window_bounds = array<i64: 1, 32>}, {pipeline_mode = #tpu.pipeline_mode<synchronous>, transform_indices = @transform_2, window_bounds = array<i64: 1, 32>}, {transform_indices = @transform_3, window_bounds = array<i64: 1, 32, 8>}, {transform_indices = @transform_4, window_bounds = array<i64: 1, 1, 8>}, {transform_indices = @transform_5, window_bounds = array<i64: 1, 1, 8, 8>}]} {
    %c0_i32 = arith.constant 0 : i32
    %0 = arith.cmpi eq, %arg2, %c0_i32 : i32
    %1 = arith.extui %0 : i1 to i32
    %c0_i32_0 = arith.constant 0 : i32
    %2 = arith.cmpi ne, %1, %c0_i32_0 : i32
    scf.if %2 {
      %c0_12 = arith.constant 0 : index
      %c0_13 = arith.constant 0 : index
      %c0_14 = arith.constant 0 : index
      %15 = vector.load %arg3[%c0_12, %c0_13, %c0_14] : memref<1x8x32xf32, #tpu.memory_space<vmem>>, vector<1x8x32xf32>
      %16 = vector.shape_cast %15 : vector<1x8x32xf32> to vector<8x32xf32>
      %c0_15 = arith.constant 0 : index
      %c0_16 = arith.constant 0 : index
      %17 = vector.load %arg4[%c0_15, %c0_16] : memref<1x32xf32, #tpu.memory_space<vmem>>, vector<1x32xf32>
      %c0_17 = arith.constant 0 : index
      %c0_18 = arith.constant 0 : index
      %18 = vector.load %arg5[%c0_17, %c0_18] : memref<1x32xf32, #tpu.memory_space<vmem>>, vector<1x32xf32>
      %cst_19 = arith.constant dense<0.000000e+00> : vector<8xf32>
      %19 = vector.multi_reduction <add>, %16, %cst_19 [1] : vector<8x32xf32> to vector<8xf32>
      %20 = vector.shape_cast %19 : vector<8xf32> to vector<8x1xf32>
      %cst_20 = arith.constant 3.200000e+01 : f32
      %21 = vector.broadcast %cst_20 : f32 to vector<8x1xf32>
      %22 = arith.divf %20, %21 : vector<8x1xf32>
      %23 = vector.broadcast %22 : vector<8x1xf32> to vector<8x32xf32>
      %24 = arith.subf %16, %23 : vector<8x32xf32>
      %25 = arith.mulf %24, %24 : vector<8x32xf32>
      %cst_21 = arith.constant dense<0.000000e+00> : vector<8xf32>
      %26 = vector.multi_reduction <add>, %25, %cst_21 [1] : vector<8x32xf32> to vector<8xf32>
      %27 = vector.shape_cast %26 : vector<8xf32> to vector<8x1xf32>
      %cst_22 = arith.constant 3.200000e+01 : f32
      %28 = vector.broadcast %cst_22 : f32 to vector<8x1xf32>
      %29 = arith.divf %27, %28 : vector<8x1xf32>
      %30 = vector.broadcast %22 : vector<8x1xf32> to vector<8x32xf32>
      %31 = arith.subf %16, %30 : vector<8x32xf32>
      %cst_23 = arith.constant 9.99999974E-6 : f32
      %32 = vector.broadcast %cst_23 : f32 to vector<8x1xf32>
      %33 = arith.addf %29, %32 : vector<8x1xf32>
      %34 = math.rsqrt %33 : vector<8x1xf32>
      %35 = vector.broadcast %34 : vector<8x1xf32> to vector<8x32xf32>
      %36 = arith.mulf %31, %35 : vector<8x32xf32>
      %37 = vector.broadcast %17 : vector<1x32xf32> to vector<8x32xf32>
      %38 = arith.mulf %36, %37 : vector<8x32xf32>
      %39 = vector.broadcast %18 : vector<1x32xf32> to vector<8x32xf32>
      %40 = arith.addf %38, %39 : vector<8x32xf32>
      %41 = arith.truncf %40 : vector<8x32xf32> to vector<8x32xbf16>
      %c0_24 = arith.constant 0 : index
      %c0_25 = arith.constant 0 : index
      %42 = vector.load %arg9[%c0_24, %c0_25] : memref<8x32xbf16, #tpu.memory_space<vmem>>, vector<8x32xbf16>
      tpu.vector_store %arg9[%c0_24, %c0_25], %41 {strides = array<i32>} : memref<8x32xbf16, #tpu.memory_space<vmem>>, vector<8x32xbf16>,
    } else {
    }
    %c0 = arith.constant 0 : index
    %c0_1 = arith.constant 0 : index
    %3 = vector.load %arg9[%c0, %c0_1] : memref<8x32xbf16, #tpu.memory_space<vmem>>, vector<8x32xbf16>
    %c0_2 = arith.constant 0 : index
    %c0_3 = arith.constant 0 : index
    %c0_4 = arith.constant 0 : index
    %4 = vector.load %arg6[%c0_2, %c0_3, %c0_4] : memref<1x32x8xbf16, #tpu.memory_space<vmem>>, vector<1x32x8xbf16>
    %5 = vector.shape_cast %4 : vector<1x32x8xbf16> to vector<32x8xbf16>
    %cst = arith.constant dense<0.000000e+00> : vector<8x8xf32>
    %6 = tpu.matmul %3, %5, %cst {dimension_numbers = #tpu.dot_dimension_numbers<[1], [0], [0], [1], [0, 0, 1, 1], [], []>} : vector<8x32xbf16>, vector<32x8xbf16>, vector<8x8xf32> -> vector<8x8xf32>
    %c0_5 = arith.constant 0 : index
    %c0_6 = arith.constant 0 : index
    %c0_7 = arith.constant 0 : index
    %7 = vector.load %arg7[%c0_5, %c0_6, %c0_7] : memref<1x1x8xf32, #tpu.memory_space<vmem>>, vector<1x1x8xf32>
    %8 = vector.shape_cast %7 : vector<1x1x8xf32> to vector<1x8xf32>
    %9 = vector.broadcast %8 : vector<1x8xf32> to vector<8x8xf32>
    %10 = arith.addf %6, %9 : vector<8x8xf32>
    %11 = arith.truncf %10 : vector<8x8xf32> to vector<8x8xbf16>
    %c0_8 = arith.constant 0 : index
    %c0_9 = arith.constant 0 : index
    %c0_10 = arith.constant 0 : index
    %c0_11 = arith.constant 0 : index
    %12 = vector.load %arg8[%c0_8, %c0_9, %c0_10, %c0_11] : memref<1x1x8x8xbf16, #tpu.memory_space<vmem>>, vector<1x1x8x8xbf16>
    %13 = vector.shape_cast %12 : vector<1x1x8x8xbf16> to vector<8x8xbf16>
    %14 = vector.shape_cast %11 : vector<8x8xbf16> to vector<1x1x8x8xbf16>
    tpu.vector_store %arg8[%c0_8, %c0_9, %c0_10, %c0_11], %14 {strides = array<i32>} : memref<1x1x8x8xbf16, #tpu.memory_space<vmem>>, vector<1x1x8x8xbf16>,
    return
  }
  func.func @transform_0(%arg0: i32, %arg1: i32, %arg2: i32) -> (i32, i32, i32) {
    %c0_i32 = arith.constant 0 : i32
    %c0_i32_0 = arith.constant 0 : i32
    return %arg0, %arg1, %c0_i32 : i32, i32, i32
  }
  func.func @transform_1(%arg0: i32, %arg1: i32, %arg2: i32) -> (i32, i32) {
    %c0_i32 = arith.constant 0 : i32
    %c0_i32_0 = arith.constant 0 : i32
    %c0_i32_1 = arith.constant 0 : i32
    return %c0_i32, %c0_i32_0 : i32, i32
  }
  func.func @transform_2(%arg0: i32, %arg1: i32, %arg2: i32) -> (i32, i32) {
    %c0_i32 = arith.constant 0 : i32
    %c0_i32_0 = arith.constant 0 : i32
    %c0_i32_1 = arith.constant 0 : i32
    return %c0_i32, %c0_i32_0 : i32, i32
  }
  func.func @transform_3(%arg0: i32, %arg1: i32, %arg2: i32) -> (i32, i32, i32) {
    %c0_i32 = arith.constant 0 : i32
    %c0_i32_0 = arith.constant 0 : i32
    %c0_i32_1 = arith.constant 0 : i32
    return %arg2, %c0_i32, %c0_i32_0 : i32, i32, i32
  }
  func.func @transform_4(%arg0: i32, %arg1: i32, %arg2: i32) -> (i32, i32, i32) {
    %c0_i32 = arith.constant 0 : i32
    %c0_i32_0 = arith.constant 0 : i32
    %c0_i32_1 = arith.constant 0 : i32
    return %arg2, %c0_i32, %c0_i32_0 : i32, i32, i32
  }
  func.func @transform_5(%arg0: i32, %arg1: i32, %arg2: i32) -> (i32, i32, i32, i32) {
    %c0_i32 = arith.constant 0 : i32
    %c0_i32_0 = arith.constant 0 : i32
    return %arg2, %arg0, %arg1, %c0_i32 : i32, i32, i32, i32
  }
}

module attributes {stable_mosaic.version = 11 : i64} {
  func.func @_flash_attn_kernel(%arg0: i32, %arg1: i32, %arg2: i32, %arg3: i32, %arg4: memref<1x1x8x8xbf16, #tpu.memory_space<vmem>>, %arg5: memref<1x1x8x8xbf16, #tpu.memory_space<vmem>>, %arg6: memref<1x1x8x8xbf16, #tpu.memory_space<vmem>>, %arg7: memref<1x1x8x8xbf16, #tpu.memory_space<vmem>>, %arg8: memref<8x1xf32, #tpu.memory_space<vmem>>, %arg9: memref<8x1xf32, #tpu.memory_space<vmem>>, %arg10: memref<8x8xf32, #tpu.memory_space<vmem>>) attributes {dimension_semantics = [#tpu.dimension_semantics<parallel>, #tpu.dimension_semantics<parallel>, #tpu.dimension_semantics<parallel>, #tpu.dimension_semantics<arbitrary>], iteration_bounds = array<i64: 2, 4, 1, 1>, scalar_prefetch = 0 : i64, scratch_operands = 3 : i64, tpu.core_type = #tpu.core_type<tc>, window_params = [{transform_indices = @transform_0, window_bounds = array<i64: 1, 1, 8, 8>}, {transform_indices = @transform_1, window_bounds = array<i64: 1, 1, 8, 8>}, {transform_indices = @transform_2, window_bounds = array<i64: 1, 1, 8, 8>}, {transform_indices = @transform_3, window_bounds = array<i64: 1, 1, 8, 8>}]} {
    %c0_i32 = arith.constant 0 : i32
    %0 = arith.cmpi eq, %arg3, %c0_i32 : i32
    %1 = arith.extui %0 : i1 to i32
    %c0_i32_0 = arith.constant 0 : i32
    %2 = arith.cmpi ne, %1, %c0_i32_0 : i32
    scf.if %2 {
      %cst_29 = arith.constant 0xFF800000 : f32
      %36 = vector.broadcast %cst_29 : f32 to vector<8x1xf32>
      %c0_30 = arith.constant 0 : index
      %c0_31 = arith.constant 0 : index
      %37 = vector.load %arg8[%c0_30, %c0_31] : memref<8x1xf32, #tpu.memory_space<vmem>>, vector<8x1xf32>
      tpu.vector_store %arg8[%c0_30, %c0_31], %36 {strides = array<i32>} : memref<8x1xf32, #tpu.memory_space<vmem>>, vector<8x1xf32>,
      %cst_32 = arith.constant 0.000000e+00 : f32
      %38 = vector.broadcast %cst_32 : f32 to vector<8x1xf32>
      %c0_33 = arith.constant 0 : index
      %c0_34 = arith.constant 0 : index
      %39 = vector.load %arg9[%c0_33, %c0_34] : memref<8x1xf32, #tpu.memory_space<vmem>>, vector<8x1xf32>
      tpu.vector_store %arg9[%c0_33, %c0_34], %38 {strides = array<i32>} : memref<8x1xf32, #tpu.memory_space<vmem>>, vector<8x1xf32>,
      %cst_35 = arith.constant 0.000000e+00 : f32
      %40 = vector.broadcast %cst_35 : f32 to vector<8x8xf32>
      %c0_36 = arith.constant 0 : index
      %c0_37 = arith.constant 0 : index
      %41 = vector.load %arg10[%c0_36, %c0_37] : memref<8x8xf32, #tpu.memory_space<vmem>>, vector<8x8xf32>
      tpu.vector_store %arg10[%c0_36, %c0_37], %40 {strides = array<i32>} : memref<8x8xf32, #tpu.memory_space<vmem>>, vector<8x8xf32>,
    } else {
    }
    %c0 = arith.constant 0 : index
    %c0_1 = arith.constant 0 : index
    %c0_2 = arith.constant 0 : index
    %c0_3 = arith.constant 0 : index
    %3 = vector.load %arg4[%c0, %c0_1, %c0_2, %c0_3] : memref<1x1x8x8xbf16, #tpu.memory_space<vmem>>, vector<1x1x8x8xbf16>
    %4 = vector.shape_cast %3 : vector<1x1x8x8xbf16> to vector<8x8xbf16>
    %c0_4 = arith.constant 0 : index
    %c0_5 = arith.constant 0 : index
    %c0_6 = arith.constant 0 : index
    %c0_7 = arith.constant 0 : index
    %5 = vector.load %arg5[%c0_4, %c0_5, %c0_6, %c0_7] : memref<1x1x8x8xbf16, #tpu.memory_space<vmem>>, vector<1x1x8x8xbf16>
    %6 = vector.shape_cast %5 : vector<1x1x8x8xbf16> to vector<8x8xbf16>
    %c0_8 = arith.constant 0 : index
    %c0_9 = arith.constant 0 : index
    %c0_10 = arith.constant 0 : index
    %c0_11 = arith.constant 0 : index
    %7 = vector.load %arg6[%c0_8, %c0_9, %c0_10, %c0_11] : memref<1x1x8x8xbf16, #tpu.memory_space<vmem>>, vector<1x1x8x8xbf16>
    %8 = vector.shape_cast %7 : vector<1x1x8x8xbf16> to vector<8x8xbf16>
    %cst = arith.constant dense<0.000000e+00> : vector<8x8xf32>
    %9 = tpu.matmul %4, %6, %cst {dimension_numbers = #tpu.dot_dimension_numbers<[1], [1], [0], [0], [0, 0, 1, 0], [], []>} : vector<8x8xbf16>, vector<8x8xbf16>, vector<8x8xf32> -> vector<8x8xf32>
    %c0_12 = arith.constant 0 : index
    %c0_13 = arith.constant 0 : index
    %10 = vector.load %arg8[%c0_12, %c0_13] : memref<8x1xf32, #tpu.memory_space<vmem>>, vector<8x1xf32>
    %cst_14 = arith.constant dense<0xFF800000> : vector<8xf32>
    %11 = vector.multi_reduction <maximumf>, %9, %cst_14 [1] : vector<8x8xf32> to vector<8xf32>
    %12 = vector.shape_cast %11 : vector<8xf32> to vector<8x1xf32>
    %13 = arith.maximumf %10, %12 : vector<8x1xf32>
    %14 = arith.subf %10, %13 : vector<8x1xf32>
    %15 = math.exp %14 : vector<8x1xf32>
    %16 = vector.broadcast %13 : vector<8x1xf32> to vector<8x8xf32>
    %17 = arith.subf %9, %16 : vector<8x8xf32>
    %18 = math.exp %17 : vector<8x8xf32>
    %c0_15 = arith.constant 0 : index
    %c0_16 = arith.constant 0 : index
    %19 = vector.load %arg9[%c0_15, %c0_16] : memref<8x1xf32, #tpu.memory_space<vmem>>, vector<8x1xf32>
    %20 = arith.mulf %15, %19 : vector<8x1xf32>
    %cst_17 = arith.constant dense<0.000000e+00> : vector<8xf32>
    %21 = vector.multi_reduction <add>, %18, %cst_17 [1] : vector<8x8xf32> to vector<8xf32>
    %22 = vector.shape_cast %21 : vector<8xf32> to vector<8x1xf32>
    %23 = arith.addf %20, %22 : vector<8x1xf32>
    %c0_18 = arith.constant 0 : index
    %c0_19 = arith.constant 0 : index
    %24 = vector.load %arg9[%c0_18, %c0_19] : memref<8x1xf32, #tpu.memory_space<vmem>>, vector<8x1xf32>
    tpu.vector_store %arg9[%c0_18, %c0_19], %23 {strides = array<i32>} : memref<8x1xf32, #tpu.memory_space<vmem>>, vector<8x1xf32>,
    %c0_20 = arith.constant 0 : index
    %c0_21 = arith.constant 0 : index
    %25 = vector.load %arg10[%c0_20, %c0_21] : memref<8x8xf32, #tpu.memory_space<vmem>>, vector<8x8xf32>
    %26 = vector.broadcast %15 : vector<8x1xf32> to vector<8x8xf32>
    %27 = arith.mulf %26, %25 : vector<8x8xf32>
    %28 = arith.truncf %18 : vector<8x8xf32> to vector<8x8xbf16>
    %cst_22 = arith.constant dense<0.000000e+00> : vector<8x8xf32>
    %29 = tpu.matmul %28, %8, %cst_22 {dimension_numbers = #tpu.dot_dimension_numbers<[1], [0], [0], [1], [0, 0, 1, 1], [], []>} : vector<8x8xbf16>, vector<8x8xbf16>, vector<8x8xf32> -> vector<8x8xf32>
    %30 = arith.addf %27, %29 : vector<8x8xf32>
    %c0_23 = arith.constant 0 : index
    %c0_24 = arith.constant 0 : index
    %31 = vector.load %arg10[%c0_23, %c0_24] : memref<8x8xf32, #tpu.memory_space<vmem>>, vector<8x8xf32>
    tpu.vector_store %arg10[%c0_23, %c0_24], %30 {strides = array<i32>} : memref<8x8xf32, #tpu.memory_space<vmem>>, vector<8x8xf32>,
    %c0_25 = arith.constant 0 : index
    %c0_26 = arith.constant 0 : index
    %32 = vector.load %arg8[%c0_25, %c0_26] : memref<8x1xf32, #tpu.memory_space<vmem>>, vector<8x1xf32>
    tpu.vector_store %arg8[%c0_25, %c0_26], %13 {strides = array<i32>} : memref<8x1xf32, #tpu.memory_space<vmem>>, vector<8x1xf32>,
    %c0_i32_27 = arith.constant 0 : i32
    %33 = arith.cmpi eq, %arg3, %c0_i32_27 : i32
    %34 = arith.extui %33 : i1 to i32
    %c0_i32_28 = arith.constant 0 : i32
    %35 = arith.cmpi ne, %34, %c0_i32_28 : i32
    scf.if %35 {
      %c0_29 = arith.constant 0 : index
      %c0_30 = arith.constant 0 : index
      %36 = vector.load %arg10[%c0_29, %c0_30] : memref<8x8xf32, #tpu.memory_space<vmem>>, vector<8x8xf32>
      %c0_31 = arith.constant 0 : index
      %c0_32 = arith.constant 0 : index
      %37 = vector.load %arg9[%c0_31, %c0_32] : memref<8x1xf32, #tpu.memory_space<vmem>>, vector<8x1xf32>
      %38 = tpu.reciprocal %37 {approx = true} : vector<8x1xf32> -> vector<8x1xf32>
      %39 = vector.broadcast %38 : vector<8x1xf32> to vector<8x8xf32>
      %40 = arith.mulf %36, %39 : vector<8x8xf32>
      %41 = arith.truncf %40 : vector<8x8xf32> to vector<8x8xbf16>
      %c0_33 = arith.constant 0 : index
      %c0_34 = arith.constant 0 : index
      %c0_35 = arith.constant 0 : index
      %c0_36 = arith.constant 0 : index
      %42 = vector.load %arg7[%c0_33, %c0_34, %c0_35, %c0_36] : memref<1x1x8x8xbf16, #tpu.memory_space<vmem>>, vector<1x1x8x8xbf16>
      %43 = vector.shape_cast %42 : vector<1x1x8x8xbf16> to vector<8x8xbf16>
      %44 = vector.shape_cast %41 : vector<8x8xbf16> to vector<1x1x8x8xbf16>
      tpu.vector_store %arg7[%c0_33, %c0_34, %c0_35, %c0_36], %44 {strides = array<i32>} : memref<1x1x8x8xbf16, #tpu.memory_space<vmem>>, vector<1x1x8x8xbf16>,
    } else {
    }
    return
  }
  func.func @transform_0(%arg0: i32, %arg1: i32, %arg2: i32, %arg3: i32) -> (i32, i32, i32, i32) {
    %c0_i32 = arith.constant 0 : i32
    %c0_i32_0 = arith.constant 0 : i32
    return %arg1, %arg0, %arg2, %c0_i32 : i32, i32, i32, i32
  }
  func.func @transform_1(%arg0: i32, %arg1: i32, %arg2: i32, %arg3: i32) -> (i32, i32, i32, i32) {
    %c4_i32 = arith.constant 4 : i32
    %0 = arith.addi %c4_i32, %arg1 : i32
    %c0_i32 = arith.constant 0 : i32
    %c0_i32_0 = arith.constant 0 : i32
    return %0, %arg0, %arg3, %c0_i32 : i32, i32, i32, i32
  }
  func.func @transform_2(%arg0: i32, %arg1: i32, %arg2: i32, %arg3: i32) -> (i32, i32, i32, i32) {
    %c8_i32 = arith.constant 8 : i32
    %0 = arith.addi %c8_i32, %arg1 : i32
    %c0_i32 = arith.constant 0 : i32
    %c0_i32_0 = arith.constant 0 : i32
    return %0, %arg0, %arg3, %c0_i32 : i32, i32, i32, i32
  }
  func.func @transform_3(%arg0: i32, %arg1: i32, %arg2: i32, %arg3: i32) -> (i32, i32, i32, i32) {
    %c0_i32 = arith.constant 0 : i32
    %c0_i32_0 = arith.constant 0 : i32
    return %arg1, %arg0, %arg2, %c0_i32 : i32, i32, i32, i32
  }
}

module attributes {stable_mosaic.version = 11 : i64} {
  func.func @_outproj_residual_kernel(%arg0: i32, %arg1: i32, %arg2: i32, %arg3: i32, %arg4: memref<1x1x8x8xbf16, #tpu.memory_space<vmem>>, %arg5: memref<1x8x32xbf16, #tpu.memory_space<vmem>>, %arg6: memref<1x32xf32, #tpu.memory_space<vmem>>, %arg7: memref<1x8x32xf32, #tpu.memory_space<vmem>>, %arg8: memref<1x8x32xf32, #tpu.memory_space<vmem>>, %arg9: memref<8x32xf32, #tpu.memory_space<vmem>>) attributes {dimension_semantics = [#tpu.dimension_semantics<parallel>, #tpu.dimension_semantics<parallel>, #tpu.dimension_semantics<parallel>, #tpu.dimension_semantics<arbitrary>], iteration_bounds = array<i64: 2, 1, 1, 4>, scalar_prefetch = 0 : i64, scratch_operands = 1 : i64, tpu.core_type = #tpu.core_type<tc>, window_params = [{transform_indices = @transform_0, window_bounds = array<i64: 1, 1, 8, 8>}, {transform_indices = @transform_1, window_bounds = array<i64: 1, 8, 32>}, {transform_indices = @transform_2, window_bounds = array<i64: 1, 32>}, {transform_indices = @transform_3, window_bounds = array<i64: 1, 8, 32>}, {transform_indices = @transform_4, window_bounds = array<i64: 1, 8, 32>}]} {
    %c0_i32 = arith.constant 0 : i32
    %0 = arith.cmpi eq, %arg3, %c0_i32 : i32
    %1 = arith.extui %0 : i1 to i32
    %c0_i32_0 = arith.constant 0 : i32
    %2 = arith.cmpi ne, %1, %c0_i32_0 : i32
    scf.if %2 {
      %cst_12 = arith.constant 0.000000e+00 : f32
      %14 = vector.broadcast %cst_12 : f32 to vector<8x32xf32>
      %c0_13 = arith.constant 0 : index
      %c0_14 = arith.constant 0 : index
      %15 = vector.load %arg9[%c0_13, %c0_14] : memref<8x32xf32, #tpu.memory_space<vmem>>, vector<8x32xf32>
      tpu.vector_store %arg9[%c0_13, %c0_14], %14 {strides = array<i32>} : memref<8x32xf32, #tpu.memory_space<vmem>>, vector<8x32xf32>,
    } else {
    }
    %c0 = arith.constant 0 : index
    %c0_1 = arith.constant 0 : index
    %3 = vector.load %arg9[%c0, %c0_1] : memref<8x32xf32, #tpu.memory_space<vmem>>, vector<8x32xf32>
    %c0_2 = arith.constant 0 : index
    %c0_3 = arith.constant 0 : index
    %c0_4 = arith.constant 0 : index
    %c0_5 = arith.constant 0 : index
    %4 = vector.load %arg4[%c0_2, %c0_3, %c0_4, %c0_5] : memref<1x1x8x8xbf16, #tpu.memory_space<vmem>>, vector<1x1x8x8xbf16>
    %5 = vector.shape_cast %4 : vector<1x1x8x8xbf16> to vector<8x8xbf16>
    %c0_6 = arith.constant 0 : index
    %c0_7 = arith.constant 0 : index
    %c0_8 = arith.constant 0 : index
    %6 = vector.load %arg5[%c0_6, %c0_7, %c0_8] : memref<1x8x32xbf16, #tpu.memory_space<vmem>>, vector<1x8x32xbf16>
    %7 = vector.shape_cast %6 : vector<1x8x32xbf16> to vector<8x32xbf16>
    %cst = arith.constant dense<0.000000e+00> : vector<8x32xf32>
    %8 = tpu.matmul %5, %7, %cst {dimension_numbers = #tpu.dot_dimension_numbers<[1], [0], [0], [1], [0, 0, 1, 1], [], []>} : vector<8x8xbf16>, vector<8x32xbf16>, vector<8x32xf32> -> vector<8x32xf32>
    %9 = arith.addf %3, %8 : vector<8x32xf32>
    %c0_9 = arith.constant 0 : index
    %c0_10 = arith.constant 0 : index
    %10 = vector.load %arg9[%c0_9, %c0_10] : memref<8x32xf32, #tpu.memory_space<vmem>>, vector<8x32xf32>
    tpu.vector_store %arg9[%c0_9, %c0_10], %9 {strides = array<i32>} : memref<8x32xf32, #tpu.memory_space<vmem>>, vector<8x32xf32>,
    %c3_i32 = arith.constant 3 : i32
    %11 = arith.cmpi eq, %arg3, %c3_i32 : i32
    %12 = arith.extui %11 : i1 to i32
    %c0_i32_11 = arith.constant 0 : i32
    %13 = arith.cmpi ne, %12, %c0_i32_11 : i32
    scf.if %13 {
      %c0_12 = arith.constant 0 : index
      %c0_13 = arith.constant 0 : index
      %c0_14 = arith.constant 0 : index
      %14 = vector.load %arg7[%c0_12, %c0_13, %c0_14] : memref<1x8x32xf32, #tpu.memory_space<vmem>>, vector<1x8x32xf32>
      %15 = vector.shape_cast %14 : vector<1x8x32xf32> to vector<8x32xf32>
      %c0_15 = arith.constant 0 : index
      %c0_16 = arith.constant 0 : index
      %16 = vector.load %arg9[%c0_15, %c0_16] : memref<8x32xf32, #tpu.memory_space<vmem>>, vector<8x32xf32>
      %17 = arith.addf %15, %16 : vector<8x32xf32>
      %c0_17 = arith.constant 0 : index
      %c0_18 = arith.constant 0 : index
      %18 = vector.load %arg6[%c0_17, %c0_18] : memref<1x32xf32, #tpu.memory_space<vmem>>, vector<1x32xf32>
      %19 = vector.broadcast %18 : vector<1x32xf32> to vector<8x32xf32>
      %20 = arith.addf %17, %19 : vector<8x32xf32>
      %c0_19 = arith.constant 0 : index
      %c0_20 = arith.constant 0 : index
      %c0_21 = arith.constant 0 : index
      %21 = vector.load %arg8[%c0_19, %c0_20, %c0_21] : memref<1x8x32xf32, #tpu.memory_space<vmem>>, vector<1x8x32xf32>
      %22 = vector.shape_cast %21 : vector<1x8x32xf32> to vector<8x32xf32>
      %23 = vector.shape_cast %20 : vector<8x32xf32> to vector<1x8x32xf32>
      tpu.vector_store %arg8[%c0_19, %c0_20, %c0_21], %23 {strides = array<i32>} : memref<1x8x32xf32, #tpu.memory_space<vmem>>, vector<1x8x32xf32>,
    } else {
    }
    return
  }
  func.func @transform_0(%arg0: i32, %arg1: i32, %arg2: i32, %arg3: i32) -> (i32, i32, i32, i32) {
    %c0_i32 = arith.constant 0 : i32
    %c0_i32_0 = arith.constant 0 : i32
    return %arg3, %arg0, %arg1, %c0_i32 : i32, i32, i32, i32
  }
  func.func @transform_1(%arg0: i32, %arg1: i32, %arg2: i32, %arg3: i32) -> (i32, i32, i32) {
    %c0_i32 = arith.constant 0 : i32
    %c0_i32_0 = arith.constant 0 : i32
    return %arg3, %c0_i32, %arg2 : i32, i32, i32
  }
  func.func @transform_2(%arg0: i32, %arg1: i32, %arg2: i32, %arg3: i32) -> (i32, i32) {
    %c0_i32 = arith.constant 0 : i32
    %c0_i32_0 = arith.constant 0 : i32
    return %c0_i32, %arg2 : i32, i32
  }
  func.func @transform_3(%arg0: i32, %arg1: i32, %arg2: i32, %arg3: i32) -> (i32, i32, i32) {
    %c0_i32 = arith.constant 0 : i32
    return %arg0, %arg1, %arg2 : i32, i32, i32
  }
  func.func @transform_4(%arg0: i32, %arg1: i32, %arg2: i32, %arg3: i32) -> (i32, i32, i32) {
    %c0_i32 = arith.constant 0 : i32
    return %arg0, %arg1, %arg2 : i32, i32, i32
  }
}

module attributes {stable_mosaic.version = 11 : i64} {
  func.func @_final_norm_kernel(%arg0: i32, %arg1: i32, %arg2: memref<1x8x32xf32, #tpu.memory_space<vmem>>, %arg3: memref<1x32xf32, #tpu.memory_space<vmem>>, %arg4: memref<1x32xf32, #tpu.memory_space<vmem>>, %arg5: memref<1x8x32xf32, #tpu.memory_space<vmem>>) attributes {dimension_semantics = [#tpu.dimension_semantics<parallel>, #tpu.dimension_semantics<parallel>], iteration_bounds = array<i64: 2, 1>, scalar_prefetch = 0 : i64, scratch_operands = 0 : i64, tpu.core_type = #tpu.core_type<tc>, window_params = [{transform_indices = @transform_0, window_bounds = array<i64: 1, 8, 32>}, {pipeline_mode = #tpu.pipeline_mode<synchronous>, transform_indices = @transform_1, window_bounds = array<i64: 1, 32>}, {pipeline_mode = #tpu.pipeline_mode<synchronous>, transform_indices = @transform_2, window_bounds = array<i64: 1, 32>}, {transform_indices = @transform_3, window_bounds = array<i64: 1, 8, 32>}]} {
    %c0 = arith.constant 0 : index
    %c0_0 = arith.constant 0 : index
    %c0_1 = arith.constant 0 : index
    %0 = vector.load %arg2[%c0, %c0_0, %c0_1] : memref<1x8x32xf32, #tpu.memory_space<vmem>>, vector<1x8x32xf32>
    %1 = vector.shape_cast %0 : vector<1x8x32xf32> to vector<8x32xf32>
    %c0_2 = arith.constant 0 : index
    %c0_3 = arith.constant 0 : index
    %2 = vector.load %arg3[%c0_2, %c0_3] : memref<1x32xf32, #tpu.memory_space<vmem>>, vector<1x32xf32>
    %c0_4 = arith.constant 0 : index
    %c0_5 = arith.constant 0 : index
    %3 = vector.load %arg4[%c0_4, %c0_5] : memref<1x32xf32, #tpu.memory_space<vmem>>, vector<1x32xf32>
    %cst = arith.constant dense<0.000000e+00> : vector<8xf32>
    %4 = vector.multi_reduction <add>, %1, %cst [1] : vector<8x32xf32> to vector<8xf32>
    %5 = vector.shape_cast %4 : vector<8xf32> to vector<8x1xf32>
    %cst_6 = arith.constant 3.200000e+01 : f32
    %6 = vector.broadcast %cst_6 : f32 to vector<8x1xf32>
    %7 = arith.divf %5, %6 : vector<8x1xf32>
    %8 = vector.broadcast %7 : vector<8x1xf32> to vector<8x32xf32>
    %9 = arith.subf %1, %8 : vector<8x32xf32>
    %10 = arith.mulf %9, %9 : vector<8x32xf32>
    %cst_7 = arith.constant dense<0.000000e+00> : vector<8xf32>
    %11 = vector.multi_reduction <add>, %10, %cst_7 [1] : vector<8x32xf32> to vector<8xf32>
    %12 = vector.shape_cast %11 : vector<8xf32> to vector<8x1xf32>
    %cst_8 = arith.constant 3.200000e+01 : f32
    %13 = vector.broadcast %cst_8 : f32 to vector<8x1xf32>
    %14 = arith.divf %12, %13 : vector<8x1xf32>
    %15 = vector.broadcast %7 : vector<8x1xf32> to vector<8x32xf32>
    %16 = arith.subf %1, %15 : vector<8x32xf32>
    %cst_9 = arith.constant 9.99999974E-6 : f32
    %17 = vector.broadcast %cst_9 : f32 to vector<8x1xf32>
    %18 = arith.addf %14, %17 : vector<8x1xf32>
    %19 = math.rsqrt %18 : vector<8x1xf32>
    %20 = vector.broadcast %19 : vector<8x1xf32> to vector<8x32xf32>
    %21 = arith.mulf %16, %20 : vector<8x32xf32>
    %22 = vector.broadcast %2 : vector<1x32xf32> to vector<8x32xf32>
    %23 = arith.mulf %21, %22 : vector<8x32xf32>
    %24 = vector.broadcast %3 : vector<1x32xf32> to vector<8x32xf32>
    %25 = arith.addf %23, %24 : vector<8x32xf32>
    %c0_10 = arith.constant 0 : index
    %c0_11 = arith.constant 0 : index
    %c0_12 = arith.constant 0 : index
    %26 = vector.load %arg5[%c0_10, %c0_11, %c0_12] : memref<1x8x32xf32, #tpu.memory_space<vmem>>, vector<1x8x32xf32>
    %27 = vector.shape_cast %26 : vector<1x8x32xf32> to vector<8x32xf32>
    %28 = vector.shape_cast %25 : vector<8x32xf32> to vector<1x8x32xf32>
    tpu.vector_store %arg5[%c0_10, %c0_11, %c0_12], %28 {strides = array<i32>} : memref<1x8x32xf32, #tpu.memory_space<vmem>>, vector<1x8x32xf32>,
    return
  }
  func.func @transform_0(%arg0: i32, %arg1: i32) -> (i32, i32, i32) {
    %c0_i32 = arith.constant 0 : i32
    %c0_i32_0 = arith.constant 0 : i32
    return %arg0, %arg1, %c0_i32 : i32, i32, i32
  }
  func.func @transform_1(%arg0: i32, %arg1: i32) -> (i32, i32) {
    %c0_i32 = arith.constant 0 : i32
    %c0_i32_0 = arith.constant 0 : i32
    %c0_i32_1 = arith.constant 0 : i32
    return %c0_i32, %c0_i32_0 : i32, i32
  }
  func.func @transform_2(%arg0: i32, %arg1: i32) -> (i32, i32) {
    %c0_i32 = arith.constant 0 : i32
    %c0_i32_0 = arith.constant 0 : i32
    %c0_i32_1 = arith.constant 0 : i32
    return %c0_i32, %c0_i32_0 : i32, i32
  }
  func.func @transform_3(%arg0: i32, %arg1: i32) -> (i32, i32, i32) {
    %c0_i32 = arith.constant 0 : i32
    %c0_i32_0 = arith.constant 0 : i32
    return %arg0, %arg1, %c0_i32 : i32, i32, i32
  }
}

module attributes {stable_mosaic.version = 11 : i64} {
  func.func @_ffn_down_residual_kernel(%arg0: i32, %arg1: i32, %arg2: i32, %arg3: i32, %arg4: memref<1x8x64xbf16, #tpu.memory_space<vmem>>, %arg5: memref<64x32xbf16, #tpu.memory_space<vmem>>, %arg6: memref<1x32xf32, #tpu.memory_space<vmem>>, %arg7: memref<1x8x32xf32, #tpu.memory_space<vmem>>, %arg8: memref<1x8x32xf32, #tpu.memory_space<vmem>>, %arg9: memref<8x32xf32, #tpu.memory_space<vmem>>) attributes {dimension_semantics = [#tpu.dimension_semantics<parallel>, #tpu.dimension_semantics<parallel>, #tpu.dimension_semantics<parallel>, #tpu.dimension_semantics<arbitrary>], iteration_bounds = array<i64: 2, 1, 1, 1>, scalar_prefetch = 0 : i64, scratch_operands = 1 : i64, tpu.core_type = #tpu.core_type<tc>, window_params = [{transform_indices = @transform_0, window_bounds = array<i64: 1, 8, 64>}, {transform_indices = @transform_1, window_bounds = array<i64: 64, 32>}, {transform_indices = @transform_2, window_bounds = array<i64: 1, 32>}, {transform_indices = @transform_3, window_bounds = array<i64: 1, 8, 32>}, {transform_indices = @transform_4, window_bounds = array<i64: 1, 8, 32>}]} {
    %c0_i32 = arith.constant 0 : i32
    %0 = arith.cmpi eq, %arg3, %c0_i32 : i32
    %1 = arith.extui %0 : i1 to i32
    %c0_i32_0 = arith.constant 0 : i32
    %2 = arith.cmpi ne, %1, %c0_i32_0 : i32
    scf.if %2 {
      %cst_11 = arith.constant 0.000000e+00 : f32
      %13 = vector.broadcast %cst_11 : f32 to vector<8x32xf32>
      %c0_12 = arith.constant 0 : index
      %c0_13 = arith.constant 0 : index
      %14 = vector.load %arg9[%c0_12, %c0_13] : memref<8x32xf32, #tpu.memory_space<vmem>>, vector<8x32xf32>
      tpu.vector_store %arg9[%c0_12, %c0_13], %13 {strides = array<i32>} : memref<8x32xf32, #tpu.memory_space<vmem>>, vector<8x32xf32>,
    } else {
    }
    %c0 = arith.constant 0 : index
    %c0_1 = arith.constant 0 : index
    %3 = vector.load %arg9[%c0, %c0_1] : memref<8x32xf32, #tpu.memory_space<vmem>>, vector<8x32xf32>
    %c0_2 = arith.constant 0 : index
    %c0_3 = arith.constant 0 : index
    %c0_4 = arith.constant 0 : index
    %4 = vector.load %arg4[%c0_2, %c0_3, %c0_4] : memref<1x8x64xbf16, #tpu.memory_space<vmem>>, vector<1x8x64xbf16>
    %5 = vector.shape_cast %4 : vector<1x8x64xbf16> to vector<8x64xbf16>
    %c0_5 = arith.constant 0 : index
    %c0_6 = arith.constant 0 : index
    %6 = vector.load %arg5[%c0_5, %c0_6] : memref<64x32xbf16, #tpu.memory_space<vmem>>, vector<64x32xbf16>
    %cst = arith.constant dense<0.000000e+00> : vector<8x32xf32>
    %7 = tpu.matmul %5, %6, %cst {dimension_numbers = #tpu.dot_dimension_numbers<[1], [0], [0], [1], [0, 0, 1, 1], [], []>} : vector<8x64xbf16>, vector<64x32xbf16>, vector<8x32xf32> -> vector<8x32xf32>
    %8 = arith.addf %3, %7 : vector<8x32xf32>
    %c0_7 = arith.constant 0 : index
    %c0_8 = arith.constant 0 : index
    %9 = vector.load %arg9[%c0_7, %c0_8] : memref<8x32xf32, #tpu.memory_space<vmem>>, vector<8x32xf32>
    tpu.vector_store %arg9[%c0_7, %c0_8], %8 {strides = array<i32>} : memref<8x32xf32, #tpu.memory_space<vmem>>, vector<8x32xf32>,
    %c0_i32_9 = arith.constant 0 : i32
    %10 = arith.cmpi eq, %arg3, %c0_i32_9 : i32
    %11 = arith.extui %10 : i1 to i32
    %c0_i32_10 = arith.constant 0 : i32
    %12 = arith.cmpi ne, %11, %c0_i32_10 : i32
    scf.if %12 {
      %c0_11 = arith.constant 0 : index
      %c0_12 = arith.constant 0 : index
      %c0_13 = arith.constant 0 : index
      %13 = vector.load %arg7[%c0_11, %c0_12, %c0_13] : memref<1x8x32xf32, #tpu.memory_space<vmem>>, vector<1x8x32xf32>
      %14 = vector.shape_cast %13 : vector<1x8x32xf32> to vector<8x32xf32>
      %c0_14 = arith.constant 0 : index
      %c0_15 = arith.constant 0 : index
      %15 = vector.load %arg9[%c0_14, %c0_15] : memref<8x32xf32, #tpu.memory_space<vmem>>, vector<8x32xf32>
      %16 = arith.addf %14, %15 : vector<8x32xf32>
      %c0_16 = arith.constant 0 : index
      %c0_17 = arith.constant 0 : index
      %17 = vector.load %arg6[%c0_16, %c0_17] : memref<1x32xf32, #tpu.memory_space<vmem>>, vector<1x32xf32>
      %18 = vector.broadcast %17 : vector<1x32xf32> to vector<8x32xf32>
      %19 = arith.addf %16, %18 : vector<8x32xf32>
      %c0_18 = arith.constant 0 : index
      %c0_19 = arith.constant 0 : index
      %c0_20 = arith.constant 0 : index
      %20 = vector.load %arg8[%c0_18, %c0_19, %c0_20] : memref<1x8x32xf32, #tpu.memory_space<vmem>>, vector<1x8x32xf32>
      %21 = vector.shape_cast %20 : vector<1x8x32xf32> to vector<8x32xf32>
      %22 = vector.shape_cast %19 : vector<8x32xf32> to vector<1x8x32xf32>
      tpu.vector_store %arg8[%c0_18, %c0_19, %c0_20], %22 {strides = array<i32>} : memref<1x8x32xf32, #tpu.memory_space<vmem>>, vector<1x8x32xf32>,
    } else {
    }
    return
  }
  func.func @transform_0(%arg0: i32, %arg1: i32, %arg2: i32, %arg3: i32) -> (i32, i32, i32) {
    %c0_i32 = arith.constant 0 : i32
    return %arg0, %arg1, %arg3 : i32, i32, i32
  }
  func.func @transform_1(%arg0: i32, %arg1: i32, %arg2: i32, %arg3: i32) -> (i32, i32) {
    %c0_i32 = arith.constant 0 : i32
    return %arg3, %arg2 : i32, i32
  }
  func.func @transform_2(%arg0: i32, %arg1: i32, %arg2: i32, %arg3: i32) -> (i32, i32) {
    %c0_i32 = arith.constant 0 : i32
    %c0_i32_0 = arith.constant 0 : i32
    return %c0_i32, %arg2 : i32, i32
  }
  func.func @transform_3(%arg0: i32, %arg1: i32, %arg2: i32, %arg3: i32) -> (i32, i32, i32) {
    %c0_i32 = arith.constant 0 : i32
    return %arg0, %arg1, %arg2 : i32, i32, i32
  }
  func.func @transform_4(%arg0: i32, %arg1: i32, %arg2: i32, %arg3: i32) -> (i32, i32, i32) {
    %c0_i32 = arith.constant 0 : i32
    return %arg0, %arg1, %arg2 : i32, i32, i32
  }
}

module attributes {stable_mosaic.version = 11 : i64} {
  func.func @_ln_ffn_up_kernel(%arg0: i32, %arg1: i32, %arg2: i32, %arg3: memref<1x8x32xf32, #tpu.memory_space<vmem>>, %arg4: memref<1x32xf32, #tpu.memory_space<vmem>>, %arg5: memref<1x32xf32, #tpu.memory_space<vmem>>, %arg6: memref<32x64xbf16, #tpu.memory_space<vmem>>, %arg7: memref<1x64xf32, #tpu.memory_space<vmem>>, %arg8: memref<1x8x64xbf16, #tpu.memory_space<vmem>>, %arg9: memref<8x32xbf16, #tpu.memory_space<vmem>>) attributes {dimension_semantics = [#tpu.dimension_semantics<parallel>, #tpu.dimension_semantics<parallel>, #tpu.dimension_semantics<arbitrary>], iteration_bounds = array<i64: 2, 1, 1>, scalar_prefetch = 0 : i64, scratch_operands = 1 : i64, tpu.core_type = #tpu.core_type<tc>, window_params = [{transform_indices = @transform_0, window_bounds = array<i64: 1, 8, 32>}, {pipeline_mode = #tpu.pipeline_mode<synchronous>, transform_indices = @transform_1, window_bounds = array<i64: 1, 32>}, {pipeline_mode = #tpu.pipeline_mode<synchronous>, transform_indices = @transform_2, window_bounds = array<i64: 1, 32>}, {transform_indices = @transform_3, window_bounds = array<i64: 32, 64>}, {transform_indices = @transform_4, window_bounds = array<i64: 1, 64>}, {transform_indices = @transform_5, window_bounds = array<i64: 1, 8, 64>}]} {
    %c0_i32 = arith.constant 0 : i32
    %0 = arith.cmpi eq, %arg2, %c0_i32 : i32
    %1 = arith.extui %0 : i1 to i32
    %c0_i32_0 = arith.constant 0 : i32
    %2 = arith.cmpi ne, %1, %c0_i32_0 : i32
    scf.if %2 {
      %c0_24 = arith.constant 0 : index
      %c0_25 = arith.constant 0 : index
      %c0_26 = arith.constant 0 : index
      %53 = vector.load %arg3[%c0_24, %c0_25, %c0_26] : memref<1x8x32xf32, #tpu.memory_space<vmem>>, vector<1x8x32xf32>
      %54 = vector.shape_cast %53 : vector<1x8x32xf32> to vector<8x32xf32>
      %c0_27 = arith.constant 0 : index
      %c0_28 = arith.constant 0 : index
      %55 = vector.load %arg4[%c0_27, %c0_28] : memref<1x32xf32, #tpu.memory_space<vmem>>, vector<1x32xf32>
      %c0_29 = arith.constant 0 : index
      %c0_30 = arith.constant 0 : index
      %56 = vector.load %arg5[%c0_29, %c0_30] : memref<1x32xf32, #tpu.memory_space<vmem>>, vector<1x32xf32>
      %cst_31 = arith.constant dense<0.000000e+00> : vector<8xf32>
      %57 = vector.multi_reduction <add>, %54, %cst_31 [1] : vector<8x32xf32> to vector<8xf32>
      %58 = vector.shape_cast %57 : vector<8xf32> to vector<8x1xf32>
      %cst_32 = arith.constant 3.200000e+01 : f32
      %59 = vector.broadcast %cst_32 : f32 to vector<8x1xf32>
      %60 = arith.divf %58, %59 : vector<8x1xf32>
      %61 = vector.broadcast %60 : vector<8x1xf32> to vector<8x32xf32>
      %62 = arith.subf %54, %61 : vector<8x32xf32>
      %63 = arith.mulf %62, %62 : vector<8x32xf32>
      %cst_33 = arith.constant dense<0.000000e+00> : vector<8xf32>
      %64 = vector.multi_reduction <add>, %63, %cst_33 [1] : vector<8x32xf32> to vector<8xf32>
      %65 = vector.shape_cast %64 : vector<8xf32> to vector<8x1xf32>
      %cst_34 = arith.constant 3.200000e+01 : f32
      %66 = vector.broadcast %cst_34 : f32 to vector<8x1xf32>
      %67 = arith.divf %65, %66 : vector<8x1xf32>
      %68 = vector.broadcast %60 : vector<8x1xf32> to vector<8x32xf32>
      %69 = arith.subf %54, %68 : vector<8x32xf32>
      %cst_35 = arith.constant 9.99999974E-6 : f32
      %70 = vector.broadcast %cst_35 : f32 to vector<8x1xf32>
      %71 = arith.addf %67, %70 : vector<8x1xf32>
      %72 = math.rsqrt %71 : vector<8x1xf32>
      %73 = vector.broadcast %72 : vector<8x1xf32> to vector<8x32xf32>
      %74 = arith.mulf %69, %73 : vector<8x32xf32>
      %75 = vector.broadcast %55 : vector<1x32xf32> to vector<8x32xf32>
      %76 = arith.mulf %74, %75 : vector<8x32xf32>
      %77 = vector.broadcast %56 : vector<1x32xf32> to vector<8x32xf32>
      %78 = arith.addf %76, %77 : vector<8x32xf32>
      %79 = arith.truncf %78 : vector<8x32xf32> to vector<8x32xbf16>
      %c0_36 = arith.constant 0 : index
      %c0_37 = arith.constant 0 : index
      %80 = vector.load %arg9[%c0_36, %c0_37] : memref<8x32xbf16, #tpu.memory_space<vmem>>, vector<8x32xbf16>
      tpu.vector_store %arg9[%c0_36, %c0_37], %79 {strides = array<i32>} : memref<8x32xbf16, #tpu.memory_space<vmem>>, vector<8x32xbf16>,
    } else {
    }
    %c0 = arith.constant 0 : index
    %c0_1 = arith.constant 0 : index
    %3 = vector.load %arg9[%c0, %c0_1] : memref<8x32xbf16, #tpu.memory_space<vmem>>, vector<8x32xbf16>
    %c0_2 = arith.constant 0 : index
    %c0_3 = arith.constant 0 : index
    %4 = vector.load %arg6[%c0_2, %c0_3] : memref<32x64xbf16, #tpu.memory_space<vmem>>, vector<32x64xbf16>
    %cst = arith.constant dense<0.000000e+00> : vector<8x64xf32>
    %5 = tpu.matmul %3, %4, %cst {dimension_numbers = #tpu.dot_dimension_numbers<[1], [0], [0], [1], [0, 0, 1, 1], [], []>} : vector<8x32xbf16>, vector<32x64xbf16>, vector<8x64xf32> -> vector<8x64xf32>
    %c0_4 = arith.constant 0 : index
    %c0_5 = arith.constant 0 : index
    %6 = vector.load %arg7[%c0_4, %c0_5] : memref<1x64xf32, #tpu.memory_space<vmem>>, vector<1x64xf32>
    %7 = vector.broadcast %6 : vector<1x64xf32> to vector<8x64xf32>
    %8 = arith.addf %5, %7 : vector<8x64xf32>
    %cst_6 = arith.constant 5.000000e-01 : f32
    %9 = vector.broadcast %cst_6 : f32 to vector<8x64xf32>
    %10 = arith.mulf %9, %8 : vector<8x64xf32>
    %cst_7 = arith.constant 0.707106769 : f32
    %11 = vector.broadcast %cst_7 : f32 to vector<8x64xf32>
    %12 = arith.mulf %8, %11 : vector<8x64xf32>
    %13 = math.absf %12 : vector<8x64xf32>
    %cst_8 = arith.constant 0.327591091 : f32
    %14 = vector.broadcast %cst_8 : f32 to vector<8x64xf32>
    %15 = arith.mulf %14, %13 : vector<8x64xf32>
    %cst_9 = arith.constant 1.000000e+00 : f32
    %16 = vector.broadcast %cst_9 : f32 to vector<8x64xf32>
    %17 = arith.addf %16, %15 : vector<8x64xf32>
    %cst_10 = arith.constant 1.000000e+00 : f32
    %18 = vector.broadcast %cst_10 : f32 to vector<8x64xf32>
    %19 = arith.divf %18, %17 : vector<8x64xf32>
    %cst_11 = arith.constant 1.06140542 : f32
    %20 = vector.broadcast %cst_11 : f32 to vector<8x64xf32>
    %21 = arith.mulf %20, %19 : vector<8x64xf32>
    %cst_12 = arith.constant -1.45315206 : f32
    %22 = vector.broadcast %cst_12 : f32 to vector<8x64xf32>
    %23 = arith.addf %21, %22 : vector<8x64xf32>
    %24 = arith.mulf %23, %19 : vector<8x64xf32>
    %cst_13 = arith.constant 1.42141378 : f32
    %25 = vector.broadcast %cst_13 : f32 to vector<8x64xf32>
    %26 = arith.addf %24, %25 : vector<8x64xf32>
    %27 = arith.mulf %26, %19 : vector<8x64xf32>
    %cst_14 = arith.constant -0.284496725 : f32
    %28 = vector.broadcast %cst_14 : f32 to vector<8x64xf32>
    %29 = arith.addf %27, %28 : vector<8x64xf32>
    %30 = arith.mulf %29, %19 : vector<8x64xf32>
    %cst_15 = arith.constant 0.254829586 : f32
    %31 = vector.broadcast %cst_15 : f32 to vector<8x64xf32>
    %32 = arith.addf %30, %31 : vector<8x64xf32>
    %33 = arith.mulf %32, %19 : vector<8x64xf32>
    %cst_16 = arith.constant 0.000000e+00 : f32
    %34 = vector.broadcast %cst_16 : f32 to vector<8x64xf32>
    %35 = arith.subf %34, %13 : vector<8x64xf32>
    %36 = arith.mulf %35, %13 : vector<8x64xf32>
    %37 = math.exp %36 : vector<8x64xf32>
    %38 = arith.mulf %33, %37 : vector<8x64xf32>
    %cst_17 = arith.constant 1.000000e+00 : f32
    %39 = vector.broadcast %cst_17 : f32 to vector<8x64xf32>
    %40 = arith.subf %39, %38 : vector<8x64xf32>
    %cst_18 = arith.constant 0.000000e+00 : f32
    %41 = vector.broadcast %cst_18 : f32 to vector<8x64xf32>
    %42 = arith.cmpf oge, %12, %41 : vector<8x64xf32>
    %cst_19 = arith.constant 0.000000e+00 : f32
    %43 = vector.broadcast %cst_19 : f32 to vector<8x64xf32>
    %44 = arith.subf %43, %40 : vector<8x64xf32>
    %45 = arith.select %42, %40, %44 : vector<8x64xi1>, vector<8x64xf32>
    %cst_20 = arith.constant 1.000000e+00 : f32
    %46 = vector.broadcast %cst_20 : f32 to vector<8x64xf32>
    %47 = arith.addf %46, %45 : vector<8x64xf32>
    %48 = arith.mulf %10, %47 : vector<8x64xf32>
    %49 = arith.truncf %48 : vector<8x64xf32> to vector<8x64xbf16>
    %c0_21 = arith.constant 0 : index
    %c0_22 = arith.constant 0 : index
    %c0_23 = arith.constant 0 : index
    %50 = vector.load %arg8[%c0_21, %c0_22, %c0_23] : memref<1x8x64xbf16, #tpu.memory_space<vmem>>, vector<1x8x64xbf16>
    %51 = vector.shape_cast %50 : vector<1x8x64xbf16> to vector<8x64xbf16>
    %52 = vector.shape_cast %49 : vector<8x64xbf16> to vector<1x8x64xbf16>
    tpu.vector_store %arg8[%c0_21, %c0_22, %c0_23], %52 {strides = array<i32>} : memref<1x8x64xbf16, #tpu.memory_space<vmem>>, vector<1x8x64xbf16>,
    return
  }
  func.func @transform_0(%arg0: i32, %arg1: i32, %arg2: i32) -> (i32, i32, i32) {
    %c0_i32 = arith.constant 0 : i32
    %c0_i32_0 = arith.constant 0 : i32
    return %arg0, %arg1, %c0_i32 : i32, i32, i32
  }
  func.func @transform_1(%arg0: i32, %arg1: i32, %arg2: i32) -> (i32, i32) {
    %c0_i32 = arith.constant 0 : i32
    %c0_i32_0 = arith.constant 0 : i32
    %c0_i32_1 = arith.constant 0 : i32
    return %c0_i32, %c0_i32_0 : i32, i32
  }
  func.func @transform_2(%arg0: i32, %arg1: i32, %arg2: i32) -> (i32, i32) {
    %c0_i32 = arith.constant 0 : i32
    %c0_i32_0 = arith.constant 0 : i32
    %c0_i32_1 = arith.constant 0 : i32
    return %c0_i32, %c0_i32_0 : i32, i32
  }
  func.func @transform_3(%arg0: i32, %arg1: i32, %arg2: i32) -> (i32, i32) {
    %c0_i32 = arith.constant 0 : i32
    %c0_i32_0 = arith.constant 0 : i32
    return %c0_i32, %arg2 : i32, i32
  }
  func.func @transform_4(%arg0: i32, %arg1: i32, %arg2: i32) -> (i32, i32) {
    %c0_i32 = arith.constant 0 : i32
    %c0_i32_0 = arith.constant 0 : i32
    return %c0_i32, %arg2 : i32, i32
  }
  func.func @transform_5(%arg0: i32, %arg1: i32, %arg2: i32) -> (i32, i32, i32) {
    %c0_i32 = arith.constant 0 : i32
    return %arg0, %arg1, %arg2 : i32, i32, i32
  }
}

</mosaic_0001>

<llo_original>
// kernel: llama_forward.12
$region0: #{llama_forward.12}
  #allocation0 [shape = 'u32[]', space=smem, size = 0x4, offset = 0x4, fixed_abs, tag = 'smem constant byte address 0x4 - core index']
  #allocation1 [shape = 'u32[144,128]{1,0:T(1,128)}', space=vmem, size = 0x12000, scoped, tag = 'internal scratch']
  %s0 = inlined_call_operand.vmem [shape: f32[2,8,32], index: 0, kind: input, shape index: {}]
  %s1 = inlined_call_operand.vmem [shape: f32[8,32], index: 1, kind: input, shape index: {}]
  %s2 = inlined_call_operand.vmem [shape: f32[8,32], index: 2, kind: input, shape index: {}]
  %s3 = inlined_call_operand.vmem [shape: f32[2,8,32], index: 3, kind: output, shape index: {}]
  %s4 = sld [smem:[#allocation0]]
  $region45: #{llama_forward.12} parent=0
    _
  %s6 = ssub.s32 1, %s4
  %s7 = scalar_select 0, %s6, %s4
  loop: start=0, step=1, limit=4
  $region2: #{llama_forward.12} parent=0 // loop_pre_header
    _
  $region3: #{llama_forward.12} parent=0 // loop_header
    %s9 = sphi 0, %s13
    %p10 = scmp.ge.s32.totalorder %s9, 4
    %s16 = sphi 0, %s28
    %s17 = sphi 0, %s24
    %s18 = sphi 0, %s16
    %s19 = sphi 0, %s17
    %s20 = sphi 0, %s18
    %s21 = sphi 0, %s19
    %s33 = sphi 0, %s35
    %s36 = sphi 0, %s33
    %s37 = sphi 0, %s36
    %s53 = sphi 0, %s37
    %s59 = sphi 0, %s61
    %s62 = sphi 0, %s59
    %s63 = sphi 0, %s62
    %s79 = sphi 0, %s63
    %s85 = sphi 0, %s87
    %s88 = sphi 0, %s85
    %s89 = sphi 0, %s88
    %s105 = sphi 0, %s89
    %s113 = sphi 0, %s115
    %s116 = sphi 0, %s113
    %s117 = sphi 0, %s116
    %s133 = sphi 0, %s117
  $region4: #{llama_forward.12} parent=0 // loop_header_branch
    %12 = sbr.rel (%p10) target = $region8
  $region5: #{llama_forward.12} parent=0 // loop_body
    %s14 = ssub.s32 %s9, 1
    %s15 = ssub.s32 %s9, 2
    %s22 = sadd.s32 1, %s17
    %p23 = scmp.ge.s32.totalorder %s22, 1
    %s24 = scalar_select %p23, 0, %s22
    %s25 = sadd.s32 1, %s16
    %s26 = scalar_select %p23, %s25, %s16
    %p27 = scmp.ge.s32.totalorder %s26, 2
    %s28 = scalar_select %p27, 0, %s26
    %s29 = ssub.s32 %s16, %s28
    %s30 = ssub.s32 %s17, %s24
    %s31 = sor.u32 %s29, %s30
    %p32 = scmp.eq.s32.totalorder %s31, 0
    %s34 = sadd.s32 %s33, 1
    %s35 = scalar_select %p32, %s33, %s34
    %p38 = pneg %p32
    %p39 = scmp.eq.s32.totalorder %s9, 1
    %p40 = por %p38, %p39
    %p41 = scmp.ne.s32.totalorder %s33, %s36
    %p42 = scmp.eq.s32.totalorder %s9, 0
    %p43 = por %p41, %p42
    %p44 = scmp.ne.s32.totalorder %s33, %s36
    %p45 = scmp.eq.s32.totalorder %s14, 1
    %p46 = por %p44, %p45
    %p47 = scmp.ne.s32.totalorder %s36, %s37
    %p48 = scmp.eq.s32.totalorder %s14, 0
    %p49 = por %p47, %p48
    %p50 = scmp.ne.s32.totalorder %s36, %s37
    %p51 = scmp.eq.s32.totalorder %s15, 1
    %p52 = por %p50, %p51
    %p54 = scmp.ne.s32.totalorder %s37, %s53
    %p55 = scmp.eq.s32.totalorder %s15, 0
    %p56 = por %p54, %p55
    %s57 = ssub.s32 %s17, %s24
    %p58 = scmp.eq.s32.totalorder %s57, 0
    %s60 = sadd.s32 %s59, 1
    %s61 = scalar_select %p58, %s59, %s60
    %p64 = pneg %p58
    %p65 = scmp.eq.s32.totalorder %s9, 1
    %p66 = por %p64, %p65
    %p67 = scmp.ne.s32.totalorder %s59, %s62
    %p68 = scmp.eq.s32.totalorder %s9, 0
    %p69 = por %p67, %p68
    %p70 = scmp.ne.s32.totalorder %s59, %s62
    %p71 = scmp.eq.s32.totalorder %s14, 1
    %p72 = por %p70, %p71
    %p73 = scmp.ne.s32.totalorder %s62, %s63
    %p74 = scmp.eq.s32.totalorder %s14, 0
    %p75 = por %p73, %p74
    %p76 = scmp.ne.s32.totalorder %s62, %s63
    %p77 = scmp.eq.s32.totalorder %s15, 1
    %p78 = por %p76, %p77
    %p80 = scmp.ne.s32.totalorder %s63, %s79
    %p81 = scmp.eq.s32.totalorder %s15, 0
    %p82 = por %p80, %p81
    %s83 = ssub.s32 %s17, %s24
    %p84 = scmp.eq.s32.totalorder %s83, 0
    %s86 = sadd.s32 %s85, 1
    %s87 = scalar_select %p84, %s85, %s86
    %p90 = pneg %p84
    %p91 = scmp.eq.s32.totalorder %s9, 1
    %p92 = por %p90, %p91
    %p93 = scmp.ne.s32.totalorder %s85, %s88
    %p94 = scmp.eq.s32.totalorder %s9, 0
    %p95 = por %p93, %p94
    %p96 = scmp.ne.s32.totalorder %s85, %s88
    %p97 = scmp.eq.s32.totalorder %s14, 1
    %p98 = por %p96, %p97
    %p99 = scmp.ne.s32.totalorder %s88, %s89
    %p100 = scmp.eq.s32.totalorder %s14, 0
    %p101 = por %p99, %p100
    %p102 = scmp.ne.s32.totalorder %s88, %s89
    %p103 = scmp.eq.s32.totalorder %s15, 1
    %p104 = por %p102, %p103
    %p106 = scmp.ne.s32.totalorder %s89, %s105
    %p107 = scmp.eq.s32.totalorder %s15, 0
    %p108 = por %p106, %p107
    %s109 = ssub.s32 %s16, %s28
    %s110 = ssub.s32 %s17, %s24
    %s111 = sor.u32 %s109, %s110
    %p112 = scmp.eq.s32.totalorder %s111, 0
    %s114 = sadd.s32 %s113, 1
    %s115 = scalar_select %p112, %s113, %s114
    %p118 = pneg %p112
    %p119 = scmp.eq.s32.totalorder %s9, 1
    %p120 = por %p118, %p119
    %p121 = scmp.ne.s32.totalorder %s113, %s116
    %p122 = scmp.eq.s32.totalorder %s9, 0
    %p123 = por %p121, %p122
    %p124 = scmp.ne.s32.totalorder %s113, %s116
    %p125 = scmp.eq.s32.totalorder %s14, 1
    %p126 = por %p124, %p125
    %p127 = scmp.ne.s32.totalorder %s116, %s117
    %p128 = scmp.eq.s32.totalorder %s14, 0
    %p129 = por %p127, %p128
    %p130 = scmp.ne.s32.totalorder %s116, %s117
    %p131 = scmp.eq.s32.totalorder %s15, 1
    %p132 = por %p130, %p131
    %p134 = scmp.ne.s32.totalorder %s117, %s133
    %p135 = scmp.eq.s32.totalorder %s15, 0
    %p136 = por %p134, %p135
    %p137 = scmp.le.s32.totalorder 1, %s9
    %p138 = scmp.lt.s32.totalorder %s9, 3
    %p139 = pnand %p137, %p138
    %p140 = pneg %p139
    // Predicated region
    $region9: #{llama_forward.12} parent=5 // pred_check
      _
    $region10: #{llama_forward.12} parent=5 // pred_check_branch
      %142 = sbr.rel (%p139) target = $region12
    $region11: #{llama_forward.12} parent=5 // pred_region
      %s143 = ssub.s32 %s9, 1
      // Predicated region
      $region13: #{llama_forward.12} parent=11 // pred_check
        %p144 = pneg %p75
      $region14: #{llama_forward.12} parent=11 // pred_check_branch
        %146 = sbr.rel (%p144) target = $region16
      $region15: #{llama_forward.12} parent=11 // pred_region
        %p147 = scmp.lt.s32.totalorder %s19, 0
        %s148 = scalar_select %p147, %s19, 0
        %s149 = smul.addr %s148, 8
        %s150 = scalar_lea.vmem %s1, %s149
      $region16: #{llama_forward.12} parent=11 // pred_fallthru
        _
      // Predicated region
      $region17: #{llama_forward.12} parent=11 // pred_check
        %p151 = pneg %p101
      $region18: #{llama_forward.12} parent=11 // pred_check_branch
        %153 = sbr.rel (%p151) target = $region20
      $region19: #{llama_forward.12} parent=11 // pred_region
        %p154 = scmp.lt.s32.totalorder %s19, 0
        %s155 = scalar_select %p154, %s19, 0
        %s156 = smul.addr %s155, 8
        %s157 = scalar_lea.vmem %s2, %s156
      $region20: #{llama_forward.12} parent=11 // pred_fallthru
        _
    $region12: #{llama_forward.12} parent=5 // pred_fallthru
      _
    %p158 = scmp.lt.s32.totalorder %s9, 2
    // Predicated region
    $region21: #{llama_forward.12} parent=5 // pred_check
      %p159 = pneg %p158
    $region22: #{llama_forward.12} parent=5 // pred_check_branch
      %161 = sbr.rel (%p159) target = $region24
    $region23: #{llama_forward.12} parent=5 // pred_region
      // Predicated region
      $region25: #{llama_forward.12} parent=23 // pred_check
        %p162 = pneg %p43
      $region26: #{llama_forward.12} parent=23 // pred_check_branch
        %164 = sbr.rel (%p162) target = $region28
      $region27: #{llama_forward.12} parent=23 // pred_region
        %p165 = scmp.lt.s32.totalorder %s16, 1
        %s166 = scalar_select %p165, %s16, 1
        %p167 = scmp.lt.s32.totalorder %s17, 0
        %s168 = scalar_select %p167, %s17, 0
        %s169 = sadd.s32 %s168, %s166
        %s170 = smul.addr %s169, 8
        %s171 = scalar_lea.vmem %s0, %s170
      $region28: #{llama_forward.12} parent=23 // pred_fallthru
        _
    $region24: #{llama_forward.12} parent=5 // pred_fallthru
      _
    %p172 = scmp.le.s32.totalorder 1, %s9
    %p173 = scmp.lt.s32.totalorder %s9, 3
    %p174 = pnand %p172, %p173
    %p175 = pneg %p174
    // Predicated region
    $region29: #{llama_forward.12} parent=5 // pred_check
      _
    $region30: #{llama_forward.12} parent=5 // pred_check_branch
      %177 = sbr.rel (%p174) target = $region32
    $region31: #{llama_forward.12} parent=5 // pred_region
      %s178 = ssub.s32 %s9, 1
      %p179 = scmp.lt.s32.totalorder %s18, 1
      %s180 = scalar_select %p179, %s18, 1
      %p181 = scmp.lt.s32.totalorder %s19, 0
      %s182 = scalar_select %p181, %s19, 0
      %s183 = sadd.s32 %s182, %s180
      %s184 = smul.addr %s183, 8
      %s185 = scalar_lea.vmem %s0, %s184
      %p186 = pneg %p49
      %p187 = pneg %p46
      %p188 = scmp.lt.s32.totalorder %s19, 0
      %s189 = scalar_select %p188, %s19, 0
      %s190 = smul.addr %s189, 8
      %s191 = scalar_lea.vmem %s1, %s190
      %p192 = pneg %p75
      %p193 = pneg %p72
      %p194 = scmp.lt.s32.totalorder %s19, 0
      %s195 = scalar_select %p194, %s19, 0
      %s196 = smul.addr %s195, 8
      %s197 = scalar_lea.vmem %s2, %s196
      %p198 = pneg %p101
      %p199 = pneg %p98
      %p200 = pneg %p129
      %p201 = pneg %p126
      %p202 = scmp.lt.s32.totalorder %s18, 1
      %s203 = scalar_select %p202, %s18, 1
      %p204 = scmp.lt.s32.totalorder %s19, 0
      %s205 = scalar_select %p204, %s19, 0
      %s206 = sadd.s32 %s205, %s203
      %s207 = smul.addr %s206, 8
      %s208 = scalar_lea.vmem %s3, %s207
      %p209 = scmp.lt.s32.totalorder %s18, 1
      %s210 = scalar_select %p209, %s18, 1
      %p211 = scmp.lt.s32.totalorder %s19, 0
      %s212 = scalar_select %p211, %s19, 0
      %s213 = sadd.s32 %s212, %s210
      %s214 = smul.addr %s213, 8
      %s215 = scalar_lea.vmem %s0, %s214
      %p216 = scmp.lt.s32.totalorder %s19, 0
      %s217 = scalar_select %p216, %s19, 0
      %s218 = smul.addr %s217, 8
      %s219 = scalar_lea.vmem %s1, %s218
      %p220 = scmp.lt.s32.totalorder %s19, 0
      %s221 = scalar_select %p220, %s19, 0
      %s222 = smul.addr %s221, 8
      %s223 = scalar_lea.vmem %s2, %s222
      %p224 = scmp.lt.s32.totalorder %s18, 1
      %s225 = scalar_select %p224, %s18, 1
      %p226 = scmp.lt.s32.totalorder %s19, 0
      %s227 = scalar_select %p226, %s19, 0
      %s228 = sadd.s32 %s227, %s225
      %s229 = smul.addr %s228, 8
      %s230 = scalar_lea.vmem %s3, %s229
      %v231 = vld [vmem:[%s215] sm:$0xff]
      %233 = vrot.lane.b32.xlu0 %v231, 112
      %v234 = vpop.permute.xlu0 %233
      %236 = vrot.lane.b32.xlu0 %v231, 16
      %v237 = vpop.permute.xlu0 %236
      %vm239 = vcmask 130048
      %v240 = vsel %vm239, %v234, %v237
      %v241 = vld [vmem:[%s219] sm:$0xff]
      %v242 = vmul.f32 %v231, %v241
      %v243 = vld [vmem:[%s223] sm:$0xff]
      %v244 = vmul.f32 %v240, %v243
      %v245 = vadd.f32 %v242, %v244
      %vm246 = vcmask 261120
      %247 = vst.msk [vmem:[%s230] sm:$0xff] %vm246, %v245
      %p248 = scmp.lt.s32.totalorder %s18, 1
      %s249 = scalar_select %p248, %s18, 1
      %p250 = scmp.lt.s32.totalorder %s19, 0
      %s251 = scalar_select %p250, %s19, 0
      %s252 = sadd.s32 %s251, %s249
      %s253 = smul.addr %s252, 8
      %s254 = scalar_lea.vmem %s3, %s253
      // Predicated region
      $region33: #{llama_forward.12} parent=31 // pred_check
        %p255 = pneg %p126
      $region34: #{llama_forward.12} parent=31 // pred_check_branch
        %257 = sbr.rel (%p255) target = $region36
      $region35: #{llama_forward.12} parent=31 // pred_region
        _
      $region36: #{llama_forward.12} parent=31 // pred_fallthru
        _
    $region32: #{llama_forward.12} parent=5 // pred_fallthru
      _
    %p258 = scmp.le.s32.totalorder 2, %s9
    // Predicated region
    $region37: #{llama_forward.12} parent=5 // pred_check
      %p259 = pneg %p258
    $region38: #{llama_forward.12} parent=5 // pred_check_branch
      %261 = sbr.rel (%p259) target = $region40
    $region39: #{llama_forward.12} parent=5 // pred_region
      %s262 = ssub.s32 %s9, 2
      // Predicated region
      $region41: #{llama_forward.12} parent=39 // pred_check
        %p263 = pneg %p132
      $region42: #{llama_forward.12} parent=39 // pred_check_branch
        %265 = sbr.rel (%p263) target = $region44
      $region43: #{llama_forward.12} parent=39 // pred_region
        %p266 = scmp.lt.s32.totalorder %s20, 1
        %s267 = scalar_select %p266, %s20, 1
        %p268 = scmp.lt.s32.totalorder %s21, 0
        %s269 = scalar_select %p268, %s21, 0
        %s270 = sadd.s32 %s269, %s267
        %s271 = smul.addr %s270, 8
        %s272 = scalar_lea.vmem %s3, %s271
      $region44: #{llama_forward.12} parent=39 // pred_fallthru
        _
    $region40: #{llama_forward.12} parent=5 // pred_fallthru
      _
  $region6: #{llama_forward.12} parent=0 // loop_footer
    %s13 = sadd.s32 1, %s9
  $region7: #{llama_forward.12} parent=0 // loop_footer_branch
    %8 = sbr.rel target = $region3
  $region8: #{llama_forward.12} parent=0 // loop_exit
    _

// kernel: llama_forward.13
$region0: #{llama_forward.13}
  #allocation0 [shape = 'u32[]', space=smem, size = 0x4, offset = 0x4, fixed_abs, tag = 'smem constant byte address 0x4 - core index']
  #allocation1 [shape = 'u32[144,128]{1,0:T(1,128)}', space=vmem, size = 0x12000, scoped, tag = 'internal scratch']
  #allocation2 [shape = 'bf16[8,32]{1,0:T(8,128)(2,1)}', space=vmem, size = 0x800, scoped, tag = 'scratch operand']
  %s0 = inlined_call_operand.vmem [shape: f32[2,8,32], index: 0, kind: input, shape index: {}]
  %s1 = inlined_call_operand.vmem [shape: f32[1,32], index: 1, kind: input, shape index: {}]
  %s2 = inlined_call_operand.vmem [shape: f32[1,32], index: 2, kind: input, shape index: {}]
  %s3 = inlined_call_operand.vmem [shape: bf16[12,32,8], index: 3, kind: input, shape index: {}]
  %s4 = inlined_call_operand.vmem [shape: f32[12,1,8], index: 4, kind: input, shape index: {}]
  %s5 = inlined_call_operand.vmem [shape: bf16[12,2,8,8], index: 5, kind: output, shape index: {}]
  %s6 = sld [smem:[#allocation0]]
  $region57: #{llama_forward.13} parent=0
    _
  %s8 = ssub.s32 1, %s6
  %s9 = scalar_select 0, %s8, %s6
  loop: start=0, step=1, limit=26
  $region2: #{llama_forward.13} parent=0 // loop_pre_header
    _
  $region3: #{llama_forward.13} parent=0 // loop_header
    %s11 = sphi 0, %s15
    %p12 = scmp.ge.s32.totalorder %s11, 26
    %s18 = sphi 0, %s37
    %s19 = sphi 0, %s33
    %s20 = sphi 0, %s29
    %s21 = sphi 0, %s18
    %s22 = sphi 0, %s19
    %s23 = sphi 0, %s20
    %s24 = sphi 0, %s21
    %s25 = sphi 0, %s22
    %s26 = sphi 0, %s23
    %s42 = sphi 0, %s44
    %s45 = sphi 0, %s42
    %s46 = sphi 0, %s45
    %s62 = sphi 0, %s46
    %s66 = sphi 0, %s66
    %s68 = sphi 0, %s66
    %s69 = sphi 0, %s68
    %s83 = sphi 0, %s69
    %s87 = sphi 0, %s87
    %s89 = sphi 0, %s87
    %s90 = sphi 0, %s89
    %s104 = sphi 0, %s90
    %s110 = sphi 0, %s112
    %s113 = sphi 0, %s110
    %s114 = sphi 0, %s113
    %s130 = sphi 0, %s114
    %s136 = sphi 0, %s138
    %s139 = sphi 0, %s136
    %s140 = sphi 0, %s139
    %s156 = sphi 0, %s140
    %s166 = sphi 0, %s168
    %s169 = sphi 0, %s166
    %s170 = sphi 0, %s169
    %s186 = sphi 0, %s170
  $region4: #{llama_forward.13} parent=0 // loop_header_branch
    %14 = sbr.rel (%p12) target = $region8
  $region5: #{llama_forward.13} parent=0 // loop_body
    %s16 = ssub.s32 %s11, 1
    %s17 = ssub.s32 %s11, 2
    %s27 = sadd.s32 1, %s20
    %p28 = scmp.ge.s32.totalorder %s27, 12
    %s29 = scalar_select %p28, 0, %s27
    %s30 = sadd.s32 1, %s19
    %s31 = scalar_select %p28, %s30, %s19
    %p32 = scmp.ge.s32.totalorder %s31, 1
    %s33 = scalar_select %p32, 0, %s31
    %s34 = sadd.s32 1, %s18
    %s35 = scalar_select %p32, %s34, %s18
    %p36 = scmp.ge.s32.totalorder %s35, 2
    %s37 = scalar_select %p36, 0, %s35
    %s38 = ssub.s32 %s18, %s37
    %s39 = ssub.s32 %s19, %s33
    %s40 = sor.u32 %s38, %s39
    %p41 = scmp.eq.s32.totalorder %s40, 0
    %s43 = sadd.s32 %s42, 1
    %s44 = scalar_select %p41, %s42, %s43
    %p47 = pneg %p41
    %p48 = scmp.eq.s32.totalorder %s11, 23
    %p49 = por %p47, %p48
    %p50 = scmp.ne.s32.totalorder %s42, %s45
    %p51 = scmp.eq.s32.totalorder %s11, 0
    %p52 = por %p50, %p51
    %p53 = scmp.ne.s32.totalorder %s42, %s45
    %p54 = scmp.eq.s32.totalorder %s16, 23
    %p55 = por %p53, %p54
    %p56 = scmp.ne.s32.totalorder %s45, %s46
    %p57 = scmp.eq.s32.totalorder %s16, 0
    %p58 = por %p56, %p57
    %p59 = scmp.ne.s32.totalorder %s45, %s46
    %p60 = scmp.eq.s32.totalorder %s17, 23
    %p61 = por %p59, %p60
    %p63 = scmp.ne.s32.totalorder %s46, %s62
    %p64 = scmp.eq.s32.totalorder %s17, 0
    %p65 = por %p63, %p64
    %s67 = sadd.s32 %s66, 1
    %p70 = scmp.eq.s32.totalorder %s11, 23
    %p71 = scmp.ne.s32.totalorder %s66, %s68
    %p72 = scmp.eq.s32.totalorder %s11, 0
    %p73 = por %p71, %p72
    %p74 = scmp.ne.s32.totalorder %s66, %s68
    %p75 = scmp.eq.s32.totalorder %s16, 23
    %p76 = por %p74, %p75
    %p77 = scmp.ne.s32.totalorder %s68, %s69
    %p78 = scmp.eq.s32.totalorder %s16, 0
    %p79 = por %p77, %p78
    %p80 = scmp.ne.s32.totalorder %s68, %s69
    %p81 = scmp.eq.s32.totalorder %s17, 23
    %p82 = por %p80, %p81
    %p84 = scmp.ne.s32.totalorder %s69, %s83
    %p85 = scmp.eq.s32.totalorder %s17, 0
    %p86 = por %p84, %p85
    %s88 = sadd.s32 %s87, 1
    %p91 = scmp.eq.s32.totalorder %s11, 23
    %p92 = scmp.ne.s32.totalorder %s87, %s89
    %p93 = scmp.eq.s32.totalorder %s11, 0
    %p94 = por %p92, %p93
    %p95 = scmp.ne.s32.totalorder %s87, %s89
    %p96 = scmp.eq.s32.totalorder %s16, 23
    %p97 = por %p95, %p96
    %p98 = scmp.ne.s32.totalorder %s89, %s90
    %p99 = scmp.eq.s32.totalorder %s16, 0
    %p100 = por %p98, %p99
    %p101 = scmp.ne.s32.totalorder %s89, %s90
    %p102 = scmp.eq.s32.totalorder %s17, 23
    %p103 = por %p101, %p102
    %p105 = scmp.ne.s32.totalorder %s90, %s104
    %p106 = scmp.eq.s32.totalorder %s17, 0
    %p107 = por %p105, %p106
    %s108 = ssub.s32 %s20, %s29
    %p109 = scmp.eq.s32.totalorder %s108, 0
    %s111 = sadd.s32 %s110, 1
    %s112 = scalar_select %p109, %s110, %s111
    %p115 = pneg %p109
    %p116 = scmp.eq.s32.totalorder %s11, 23
    %p117 = por %p115, %p116
    %p118 = scmp.ne.s32.totalorder %s110, %s113
    %p119 = scmp.eq.s32.totalorder %s11, 0
    %p120 = por %p118, %p119
    %p121 = scmp.ne.s32.totalorder %s110, %s113
    %p122 = scmp.eq.s32.totalorder %s16, 23
    %p123 = por %p121, %p122
    %p124 = scmp.ne.s32.totalorder %s113, %s114
    %p125 = scmp.eq.s32.totalorder %s16, 0
    %p126 = por %p124, %p125
    %p127 = scmp.ne.s32.totalorder %s113, %s114
    %p128 = scmp.eq.s32.totalorder %s17, 23
    %p129 = por %p127, %p128
    %p131 = scmp.ne.s32.totalorder %s114, %s130
    %p132 = scmp.eq.s32.totalorder %s17, 0
    %p133 = por %p131, %p132
    %s134 = ssub.s32 %s20, %s29
    %p135 = scmp.eq.s32.totalorder %s134, 0
    %s137 = sadd.s32 %s136, 1
    %s138 = scalar_select %p135, %s136, %s137
    %p141 = pneg %p135
    %p142 = scmp.eq.s32.totalorder %s11, 23
    %p143 = por %p141, %p142
    %p144 = scmp.ne.s32.totalorder %s136, %s139
    %p145 = scmp.eq.s32.totalorder %s11, 0
    %p146 = por %p144, %p145
    %p147 = scmp.ne.s32.totalorder %s136, %s139
    %p148 = scmp.eq.s32.totalorder %s16, 23
    %p149 = por %p147, %p148
    %p150 = scmp.ne.s32.totalorder %s139, %s140
    %p151 = scmp.eq.s32.totalorder %s16, 0
    %p152 = por %p150, %p151
    %p153 = scmp.ne.s32.totalorder %s139, %s140
    %p154 = scmp.eq.s32.totalorder %s17, 23
    %p155 = por %p153, %p154
    %p157 = scmp.ne.s32.totalorder %s140, %s156
    %p158 = scmp.eq.s32.totalorder %s17, 0
    %p159 = por %p157, %p158
    %s160 = ssub.s32 %s20, %s29
    %s161 = ssub.s32 %s18, %s37
    %s162 = sor.u32 %s160, %s161
    %s163 = ssub.s32 %s19, %s33
    %s164 = sor.u32 %s162, %s163
    %p165 = scmp.eq.s32.totalorder %s164, 0
    %s167 = sadd.s32 %s166, 1
    %s168 = scalar_select %p165, %s166, %s167
    %p171 = pneg %p165
    %p172 = scmp.eq.s32.totalorder %s11, 23
    %p173 = por %p171, %p172
    %p174 = scmp.ne.s32.totalorder %s166, %s169
    %p175 = scmp.eq.s32.totalorder %s11, 0
    %p176 = por %p174, %p175
    %p177 = scmp.ne.s32.totalorder %s166, %s169
    %p178 = scmp.eq.s32.totalorder %s16, 23
    %p179 = por %p177, %p178
    %p180 = scmp.ne.s32.totalorder %s169, %s170
    %p181 = scmp.eq.s32.totalorder %s16, 0
    %p182 = por %p180, %p181
    %p183 = scmp.ne.s32.totalorder %s169, %s170
    %p184 = scmp.eq.s32.totalorder %s17, 23
    %p185 = por %p183, %p184
    %p187 = scmp.ne.s32.totalorder %s170, %s186
    %p188 = scmp.eq.s32.totalorder %s17, 0
    %p189 = por %p187, %p188
    %p190 = scmp.le.s32.totalorder 1, %s11
    %p191 = scmp.lt.s32.totalorder %s11, 25
    %p192 = pnand %p190, %p191
    %p193 = pneg %p192
    // Predicated region
    $region9: #{llama_forward.13} parent=5 // pred_check
      _
    $region10: #{llama_forward.13} parent=5 // pred_check_branch
      %195 = sbr.rel (%p192) target = $region12
    $region11: #{llama_forward.13} parent=5 // pred_region
      %s196 = ssub.s32 %s11, 1
      // Predicated region
      $region13: #{llama_forward.13} parent=11 // pred_check
        %p197 = pneg %p79
      $region14: #{llama_forward.13} parent=11 // pred_check_branch
        %199 = sbr.rel (%p197) target = $region16
      $region15: #{llama_forward.13} parent=11 // pred_region
        _
      $region16: #{llama_forward.13} parent=11 // pred_fallthru
        _
      // Predicated region
      $region17: #{llama_forward.13} parent=11 // pred_check
        %p200 = pneg %p100
      $region18: #{llama_forward.13} parent=11 // pred_check_branch
        %202 = sbr.rel (%p200) target = $region20
      $region19: #{llama_forward.13} parent=11 // pred_region
        _
      $region20: #{llama_forward.13} parent=11 // pred_fallthru
        _
    $region12: #{llama_forward.13} parent=5 // pred_fallthru
      _
    %p203 = scmp.lt.s32.totalorder %s11, 24
    // Predicated region
    $region21: #{llama_forward.13} parent=5 // pred_check
      %p204 = pneg %p203
    $region22: #{llama_forward.13} parent=5 // pred_check_branch
      %206 = sbr.rel (%p204) target = $region24
    $region23: #{llama_forward.13} parent=5 // pred_region
      // Predicated region
      $region25: #{llama_forward.13} parent=23 // pred_check
        %p207 = pneg %p52
      $region26: #{llama_forward.13} parent=23 // pred_check_branch
        %209 = sbr.rel (%p207) target = $region28
      $region27: #{llama_forward.13} parent=23 // pred_region
        %p210 = scmp.lt.s32.totalorder %s18, 1
        %s211 = scalar_select %p210, %s18, 1
        %p212 = scmp.lt.s32.totalorder %s19, 0
        %s213 = scalar_select %p212, %s19, 0
        %s214 = sadd.s32 %s213, %s211
        %s215 = smul.addr %s214, 8
        %s216 = scalar_lea.vmem %s0, %s215
      $region28: #{llama_forward.13} parent=23 // pred_fallthru
        _
      // Predicated region
      $region29: #{llama_forward.13} parent=23 // pred_check
        %p217 = pneg %p120
      $region30: #{llama_forward.13} parent=23 // pred_check_branch
        %219 = sbr.rel (%p217) target = $region32
      $region31: #{llama_forward.13} parent=23 // pred_region
        %p220 = scmp.lt.s32.totalorder %s20, 11
        %s221 = scalar_select %p220, %s20, 11
        %s222 = smul.addr %s221, 4
        %s223 = smul.addr %s222, 4
        %s224 = scalar_lea.vmem %s3, %s223
      $region32: #{llama_forward.13} parent=23 // pred_fallthru
        _
      // Predicated region
      $region33: #{llama_forward.13} parent=23 // pred_check
        %p225 = pneg %p146
      $region34: #{llama_forward.13} parent=23 // pred_check_branch
        %227 = sbr.rel (%p225) target = $region36
      $region35: #{llama_forward.13} parent=23 // pred_region
        %p228 = scmp.lt.s32.totalorder %s20, 11
        %s229 = scalar_select %p228, %s20, 11
        %s230 = scalar_lea.vmem %s4, %s229
      $region36: #{llama_forward.13} parent=23 // pred_fallthru
        _
    $region24: #{llama_forward.13} parent=5 // pred_fallthru
      _
    %p231 = scmp.le.s32.totalorder 1, %s11
    %p232 = scmp.lt.s32.totalorder %s11, 25
    %p233 = pnand %p231, %p232
    %p234 = pneg %p233
    // Predicated region
    $region37: #{llama_forward.13} parent=5 // pred_check
      _
    $region38: #{llama_forward.13} parent=5 // pred_check_branch
      %236 = sbr.rel (%p233) target = $region40
    $region39: #{llama_forward.13} parent=5 // pred_region
      %s237 = ssub.s32 %s11, 1
      %p238 = scmp.lt.s32.totalorder %s21, 1
      %s239 = scalar_select %p238, %s21, 1
      %p240 = scmp.lt.s32.totalorder %s22, 0
      %s241 = scalar_select %p240, %s22, 0
      %s242 = sadd.s32 %s241, %s239
      %s243 = smul.addr %s242, 8
      %s244 = scalar_lea.vmem %s0, %s243
      %p245 = pneg %p58
      %p246 = pneg %p55
      %p247 = pneg %p79
      %p248 = pneg %p76
      %p249 = pneg %p100
      %p250 = pneg %p97
      %p251 = scmp.lt.s32.totalorder %s23, 11
      %s252 = scalar_select %p251, %s23, 11
      %s253 = smul.addr %s252, 4
      %s254 = smul.addr %s253, 4
      %s255 = scalar_lea.vmem %s3, %s254
      %p256 = pneg %p126
      %p257 = pneg %p123
      %p258 = scmp.lt.s32.totalorder %s23, 11
      %s259 = scalar_select %p258, %s23, 11
      %s260 = scalar_lea.vmem %s4, %s259
      %p261 = pneg %p152
      %p262 = pneg %p149
      %p263 = pneg %p182
      %p264 = pneg %p179
      %p265 = scmp.lt.s32.totalorder %s23, 11
      %s266 = scalar_select %p265, %s23, 11
      %p267 = scmp.lt.s32.totalorder %s21, 1
      %s268 = scalar_select %p267, %s21, 1
      %p269 = scmp.lt.s32.totalorder %s22, 0
      %s270 = scalar_select %p269, %s22, 0
      %s271 = sadd.s32 %s270, %s268
      %s272 = smul.addr %s266, 2
      %s273 = sadd.s32 %s271, %s272
      %s274 = smul.addr %s273, 4
      %s275 = scalar_lea.vmem %s5, %s274
      %p276 = scmp.lt.s32.totalorder %s21, 1
      %s277 = scalar_select %p276, %s21, 1
      %p278 = scmp.lt.s32.totalorder %s22, 0
      %s279 = scalar_select %p278, %s22, 0
      %s280 = sadd.s32 %s279, %s277
      %s281 = smul.addr %s280, 8
      %s282 = scalar_lea.vmem %s0, %s281
      %p283 = scmp.lt.s32.totalorder %s23, 11
      %s284 = scalar_select %p283, %s23, 11
      %s285 = smul.addr %s284, 4
      %s286 = smul.addr %s285, 4
      %s287 = scalar_lea.vmem %s3, %s286
      %p288 = scmp.lt.s32.totalorder %s23, 11
      %s289 = scalar_select %p288, %s23, 11
      %s290 = scalar_lea.vmem %s4, %s289
      %p291 = scmp.lt.s32.totalorder %s23, 11
      %s292 = scalar_select %p291, %s23, 11
      %p293 = scmp.lt.s32.totalorder %s21, 1
      %s294 = scalar_select %p293, %s21, 1
      %p295 = scmp.lt.s32.totalorder %s22, 0
      %s296 = scalar_select %p295, %s22, 0
      %s297 = sadd.s32 %s296, %s294
      %s298 = smul.addr %s292, 2
      %s299 = sadd.s32 %s297, %s298
      %s300 = smul.addr %s299, 4
      %s301 = scalar_lea.vmem %s5, %s300
      %p303 = scmp.eq.s32.totalorder %s23, 0
      // Predicated region
      $region41: #{llama_forward.13} parent=39 // pred_check
        %p304 = pneg %p303
      $region42: #{llama_forward.13} parent=39 // pred_check_branch
        %306 = sbr.rel (%p304) target = $region44
      $region43: #{llama_forward.13} parent=39 // pred_region
        %v307 = vld [vmem:[%s282] sm:$0xff]
        %v308 = vld [vmem:[%s1] sm:$0x1]
        %v309 = vld [vmem:[%s2] sm:$0x1]
        %vm310 = vcmask 261120
        %v311 = vsel %vm310, %v307, 0.0
        %312 = vadd.xlane.f32.xlu0 %v311
        %v313 = vpop.xlane.xlu0 %312
        %v314 = vrcp.pop 32.0
        %v315 = vmul.f32 %v313, %v314
        %v316 = vsub.f32 %v307, %v315
        %v317 = vmul.f32 %v316, %v316
        %v318 = vsel %vm310, %v317, 0.0
        %319 = vadd.xlane.f32.xlu0 %v318
        %v320 = vpop.xlane.xlu0 %319
        %v321 = vmul.f32 %v320, %v314
        %v322 = vadd.f32 %v321, 1e-05
        %v323 = vrsqrt.pop %v322
        %v324 = vmul.f32 %v316, %v323
        %v326 = vlaneseq
        %v327 = vshrl.u32 %v326, 7
        %v328 = vsub.s32 0, %v327
        %v329 = vrot.slane %v308, %v328
        %v331 = vmul.f32 %v324, %v329
        %v333 = vlaneseq
        %v334 = vshrl.u32 %v333, 7
        %v335 = vsub.s32 0, %v334
        %v336 = vrot.slane %v309, %v335
        %v338 = vadd.f32 %v331, %v336
        %v339 = vpack.c.bf16 %v338, %v338
        %vm340 = vcmask 257024
        %341 = vst.msk [vmem:[#allocation2] sm:$0xf] %vm340, %v339
      $region44: #{llama_forward.13} parent=39 // pred_fallthru
        _
      %v342 = vld [vmem:[#allocation2] sm:$0xf]
      %v343 = vld [vmem:[%s287] sm:$0xf]
      %v344 = vld [vmem:[%s287 + $0x4] sm:$0xf]
      %v345 = vld [vmem:[%s287 + $0x8] sm:$0xf]
      %v346 = vld [vmem:[%s287 + $0xc] sm:$0xf]
      %v347 = vld [vmem:[%s290] sm:$0x1]
      %v349 = vlaneseq
      %v350 = vshrl.u32 %v349, 7
      %v351 = vsub.s32 0, %v350
      %v352 = vrot.slane %v347, %v351
      %v358 = vunpack.c.l.b16 %v343
      %v359 = vunpack.c.l.b16 %v344
      %v360 = vunpack.c.l.b16 %v345
      %v361 = vunpack.c.l.b16 %v346
      %v362 = vpack.c.b16 %v359, %v358
      %v363 = vpack.c.b16 %v361, %v360
      %vm366 = vcmask 261120
      %v368 = vsel %vm366, %v342, 0
      %370 = vmatprep.subr.bf16.mxu0 0
      %371 = vmatpush1.bf16.msra.mxu0 %v362
      %372 = vmatprep.subr.bf16.mxu0 0
      %373 = vmatpush1.bf16.msra.mxu0 %v363
      %374 = vmatprep.subr.bf16.mxu0 0
      %375 = vmatpush1.bf16.msra.mxu0 0
      %376 = vmatprep.subr.bf16.mxu0 0
      %377 = vmatpush1.bf16.msra.mxu0 0
      %378 = vmatprep.subr.bf16.mxu0 0
      %379 = vmatpush1.bf16.msra.mxu0 0
      %380 = vmatprep.subr.bf16.mxu0 0
      %381 = vmatpush1.bf16.msra.mxu0 0
      %382 = vmatprep.subr.bf16.mxu0 0
      %383 = vmatpush1.bf16.msra.mxu0 0
      %384 = vmatprep.subr.bf16.mxu0 0
      %385 = vmatpush1.bf16.msra.mxu0 0
      %386 = vmatprep.subr.bf16.mxu0 0
      %387 = vmatpush1.bf16.msra.mxu0 0
      %388 = vmatprep.subr.bf16.mxu0 0
      %389 = vmatpush1.bf16.msra.mxu0 0
      %390 = vmatprep.subr.bf16.mxu0 0
      %391 = vmatpush1.bf16.msra.mxu0 0
      %392 = vmatprep.subr.bf16.mxu0 0
      %393 = vmatpush1.bf16.msra.mxu0 0
      %394 = vmatprep.subr.bf16.mxu0 0
      %395 = vmatpush1.bf16.msra.mxu0 0
      %396 = vmatprep.subr.bf16.mxu0 0
      %397 = vmatpush1.bf16.msra.mxu0 0
      %398 = vmatprep.subr.bf16.mxu0 0
      %399 = vmatpush1.bf16.msra.mxu0 0
      %400 = vmatprep.subr.bf16.mxu0 0
      %401 = vmatpush1.bf16.msra.mxu0 0
      %402 = vmatprep.mubr.bf16.mxu0 0
      %403 = vmatmul.mubr.bf16.gmra.mrb[0].mxu0 %v368
      %v404 = vpop.f32.mrb[0].mxu0
      %v405 = vadd.f32 %v352, %v404
      %v406 = vpop.f32.mrb[0].mxu0
      %v407 = vpop.f32.mrb[0].mxu0
      %v408 = vpop.f32.mrb[0].mxu0
      %409 = vdwg.mxu0
      %v410 = vpack.c.bf16 %v405, %v405
      %vm411 = vcmask 60416
      %412 = vst.msk [vmem:[%s301] sm:$0xf] %vm411, %v410
      %p413 = scmp.lt.s32.totalorder %s23, 11
      %s414 = scalar_select %p413, %s23, 11
      %p415 = scmp.lt.s32.totalorder %s21, 1
      %s416 = scalar_select %p415, %s21, 1
      %p417 = scmp.lt.s32.totalorder %s22, 0
      %s418 = scalar_select %p417, %s22, 0
      %s419 = sadd.s32 %s418, %s416
      %s420 = smul.addr %s414, 2
      %s421 = sadd.s32 %s419, %s420
      %s422 = smul.addr %s421, 4
      %s423 = scalar_lea.vmem %s5, %s422
      // Predicated region
      $region45: #{llama_forward.13} parent=39 // pred_check
        %p424 = pneg %p179
      $region46: #{llama_forward.13} parent=39 // pred_check_branch
        %426 = sbr.rel (%p424) target = $region48
      $region47: #{llama_forward.13} parent=39 // pred_region
        _
      $region48: #{llama_forward.13} parent=39 // pred_fallthru
        _
    $region40: #{llama_forward.13} parent=5 // pred_fallthru
      _
    %p427 = scmp.le.s32.totalorder 2, %s11
    // Predicated region
    $region49: #{llama_forward.13} parent=5 // pred_check
      %p428 = pneg %p427
    $region50: #{llama_forward.13} parent=5 // pred_check_branch
      %430 = sbr.rel (%p428) target = $region52
    $region51: #{llama_forward.13} parent=5 // pred_region
      %s431 = ssub.s32 %s11, 2
      // Predicated region
      $region53: #{llama_forward.13} parent=51 // pred_check
        %p432 = pneg %p185
      $region54: #{llama_forward.13} parent=51 // pred_check_branch
        %434 = sbr.rel (%p432) target = $region56
      $region55: #{llama_forward.13} parent=51 // pred_region
        %p435 = scmp.lt.s32.totalorder %s26, 11
        %s436 = scalar_select %p435, %s26, 11
        %p437 = scmp.lt.s32.totalorder %s24, 1
        %s438 = scalar_select %p437, %s24, 1
        %p439 = scmp.lt.s32.totalorder %s25, 0
        %s440 = scalar_select %p439, %s25, 0
        %s441 = sadd.s32 %s440, %s438
        %s442 = smul.addr %s436, 2
        %s443 = sadd.s32 %s441, %s442
        %s444 = smul.addr %s443, 4
        %s445 = scalar_lea.vmem %s5, %s444
      $region56: #{llama_forward.13} parent=51 // pred_fallthru
        _
    $region52: #{llama_forward.13} parent=5 // pred_fallthru
      _
  $region6: #{llama_forward.13} parent=0 // loop_footer
    %s15 = sadd.s32 1, %s11
  $region7: #{llama_forward.13} parent=0 // loop_footer_branch
    %10 = sbr.rel target = $region3
  $region8: #{llama_forward.13} parent=0 // loop_exit
    _

// kernel: llama_forward.15
$region0: #{llama_forward.15}
  #allocation0 [shape = 'u32[]', space=smem, size = 0x4, offset = 0x4, fixed_abs, tag = 'smem constant byte address 0x4 - core index']
  #allocation1 [shape = 'u32[144,128]{1,0:T(1,128)}', space=vmem, size = 0x12000, scoped, tag = 'internal scratch']
  #allocation2 [shape = 'f32[8,32]{1,0:T(8,128)}', space=vmem, size = 0x1000, scoped, tag = 'scratch operand']
  %s0 = inlined_call_operand.vmem [shape: bf16[4,2,8,8], index: 0, kind: input, shape index: {}]
  %s1 = inlined_call_operand.vmem [shape: bf16[4,8,32], index: 1, kind: input, shape index: {}]
  %s2 = inlined_call_operand.vmem [shape: f32[1,32], index: 2, kind: input, shape index: {}]
  %s3 = inlined_call_operand.vmem [shape: f32[2,8,32], index: 3, kind: input, shape index: {}]
  %s4 = inlined_call_operand.vmem [shape: f32[2,8,32], index: 4, kind: output, shape index: {}]
  %s5 = sld [smem:[#allocation0]]
  $region57: #{llama_forward.15} parent=0
    _
  %s7 = ssub.s32 1, %s5
  %s8 = scalar_select 0, %s7, %s5
  loop: start=0, step=1, limit=10
  $region2: #{llama_forward.15} parent=0 // loop_pre_header
    _
  $region3: #{llama_forward.15} parent=0 // loop_header
    %s10 = sphi 0, %s14
    %p11 = scmp.ge.s32.totalorder %s10, 10
    %s17 = sphi 0, %s43
    %s18 = sphi 0, %s39
    %s19 = sphi 0, %s35
    %s20 = sphi 0, %s31
    %s21 = sphi 0, %s17
    %s22 = sphi 0, %s18
    %s23 = sphi 0, %s19
    %s24 = sphi 0, %s20
    %s25 = sphi 0, %s21
    %s26 = sphi 0, %s22
    %s27 = sphi 0, %s23
    %s28 = sphi 0, %s24
    %s50 = sphi 0, %s52
    %s53 = sphi 0, %s50
    %s54 = sphi 0, %s53
    %s70 = sphi 0, %s54
    %s78 = sphi 0, %s80
    %s81 = sphi 0, %s78
    %s82 = sphi 0, %s81
    %s98 = sphi 0, %s82
    %s104 = sphi 0, %s106
    %s107 = sphi 0, %s104
    %s108 = sphi 0, %s107
    %s124 = sphi 0, %s108
    %s134 = sphi 0, %s136
    %s137 = sphi 0, %s134
    %s138 = sphi 0, %s137
    %s154 = sphi 0, %s138
    %s164 = sphi 0, %s166
    %s167 = sphi 0, %s164
    %s168 = sphi 0, %s167
    %s184 = sphi 0, %s168
  $region4: #{llama_forward.15} parent=0 // loop_header_branch
    %13 = sbr.rel (%p11) target = $region8
  $region5: #{llama_forward.15} parent=0 // loop_body
    %s15 = ssub.s32 %s10, 1
    %s16 = ssub.s32 %s10, 2
    %s29 = sadd.s32 1, %s20
    %p30 = scmp.ge.s32.totalorder %s29, 4
    %s31 = scalar_select %p30, 0, %s29
    %s32 = sadd.s32 1, %s19
    %s33 = scalar_select %p30, %s32, %s19
    %p34 = scmp.ge.s32.totalorder %s33, 1
    %s35 = scalar_select %p34, 0, %s33
    %s36 = sadd.s32 1, %s18
    %s37 = scalar_select %p34, %s36, %s18
    %p38 = scmp.ge.s32.totalorder %s37, 1
    %s39 = scalar_select %p38, 0, %s37
    %s40 = sadd.s32 1, %s17
    %s41 = scalar_select %p38, %s40, %s17
    %p42 = scmp.ge.s32.totalorder %s41, 2
    %s43 = scalar_select %p42, 0, %s41
    %s44 = ssub.s32 %s20, %s31
    %s45 = ssub.s32 %s17, %s43
    %s46 = sor.u32 %s44, %s45
    %s47 = ssub.s32 %s18, %s39
    %s48 = sor.u32 %s46, %s47
    %p49 = scmp.eq.s32.totalorder %s48, 0
    %s51 = sadd.s32 %s50, 1
    %s52 = scalar_select %p49, %s50, %s51
    %p55 = pneg %p49
    %p56 = scmp.eq.s32.totalorder %s10, 7
    %p57 = por %p55, %p56
    %p58 = scmp.ne.s32.totalorder %s50, %s53
    %p59 = scmp.eq.s32.totalorder %s10, 0
    %p60 = por %p58, %p59
    %p61 = scmp.ne.s32.totalorder %s50, %s53
    %p62 = scmp.eq.s32.totalorder %s15, 7
    %p63 = por %p61, %p62
    %p64 = scmp.ne.s32.totalorder %s53, %s54
    %p65 = scmp.eq.s32.totalorder %s15, 0
    %p66 = por %p64, %p65
    %p67 = scmp.ne.s32.totalorder %s53, %s54
    %p68 = scmp.eq.s32.totalorder %s16, 7
    %p69 = por %p67, %p68
    %p71 = scmp.ne.s32.totalorder %s54, %s70
    %p72 = scmp.eq.s32.totalorder %s16, 0
    %p73 = por %p71, %p72
    %s74 = ssub.s32 %s20, %s31
    %s75 = ssub.s32 %s19, %s35
    %s76 = sor.u32 %s74, %s75
    %p77 = scmp.eq.s32.totalorder %s76, 0
    %s79 = sadd.s32 %s78, 1
    %s80 = scalar_select %p77, %s78, %s79
    %p83 = pneg %p77
    %p84 = scmp.eq.s32.totalorder %s10, 7
    %p85 = por %p83, %p84
    %p86 = scmp.ne.s32.totalorder %s78, %s81
    %p87 = scmp.eq.s32.totalorder %s10, 0
    %p88 = por %p86, %p87
    %p89 = scmp.ne.s32.totalorder %s78, %s81
    %p90 = scmp.eq.s32.totalorder %s15, 7
    %p91 = por %p89, %p90
    %p92 = scmp.ne.s32.totalorder %s81, %s82
    %p93 = scmp.eq.s32.totalorder %s15, 0
    %p94 = por %p92, %p93
    %p95 = scmp.ne.s32.totalorder %s81, %s82
    %p96 = scmp.eq.s32.totalorder %s16, 7
    %p97 = por %p95, %p96
    %p99 = scmp.ne.s32.totalorder %s82, %s98
    %p100 = scmp.eq.s32.totalorder %s16, 0
    %p101 = por %p99, %p100
    %s102 = ssub.s32 %s19, %s35
    %p103 = scmp.eq.s32.totalorder %s102, 0
    %s105 = sadd.s32 %s104, 1
    %s106 = scalar_select %p103, %s104, %s105
    %p109 = pneg %p103
    %p110 = scmp.eq.s32.totalorder %s10, 7
    %p111 = por %p109, %p110
    %p112 = scmp.ne.s32.totalorder %s104, %s107
    %p113 = scmp.eq.s32.totalorder %s10, 0
    %p114 = por %p112, %p113
    %p115 = scmp.ne.s32.totalorder %s104, %s107
    %p116 = scmp.eq.s32.totalorder %s15, 7
    %p117 = por %p115, %p116
    %p118 = scmp.ne.s32.totalorder %s107, %s108
    %p119 = scmp.eq.s32.totalorder %s15, 0
    %p120 = por %p118, %p119
    %p121 = scmp.ne.s32.totalorder %s107, %s108
    %p122 = scmp.eq.s32.totalorder %s16, 7
    %p123 = por %p121, %p122
    %p125 = scmp.ne.s32.totalorder %s108, %s124
    %p126 = scmp.eq.s32.totalorder %s16, 0
    %p127 = por %p125, %p126
    %s128 = ssub.s32 %s17, %s43
    %s129 = ssub.s32 %s18, %s39
    %s130 = sor.u32 %s128, %s129
    %s131 = ssub.s32 %s19, %s35
    %s132 = sor.u32 %s130, %s131
    %p133 = scmp.eq.s32.totalorder %s132, 0
    %s135 = sadd.s32 %s134, 1
    %s136 = scalar_select %p133, %s134, %s135
    %p139 = pneg %p133
    %p140 = scmp.eq.s32.totalorder %s10, 7
    %p141 = por %p139, %p140
    %p142 = scmp.ne.s32.totalorder %s134, %s137
    %p143 = scmp.eq.s32.totalorder %s10, 0
    %p144 = por %p142, %p143
    %p145 = scmp.ne.s32.totalorder %s134, %s137
    %p146 = scmp.eq.s32.totalorder %s15, 7
    %p147 = por %p145, %p146
    %p148 = scmp.ne.s32.totalorder %s137, %s138
    %p149 = scmp.eq.s32.totalorder %s15, 0
    %p150 = por %p148, %p149
    %p151 = scmp.ne.s32.totalorder %s137, %s138
    %p152 = scmp.eq.s32.totalorder %s16, 7
    %p153 = por %p151, %p152
    %p155 = scmp.ne.s32.totalorder %s138, %s154
    %p156 = scmp.eq.s32.totalorder %s16, 0
    %p157 = por %p155, %p156
    %s158 = ssub.s32 %s17, %s43
    %s159 = ssub.s32 %s18, %s39
    %s160 = sor.u32 %s158, %s159
    %s161 = ssub.s32 %s19, %s35
    %s162 = sor.u32 %s160, %s161
    %p163 = scmp.eq.s32.totalorder %s162, 0
    %s165 = sadd.s32 %s164, 1
    %s166 = scalar_select %p163, %s164, %s165
    %p169 = pneg %p163
    %p170 = scmp.eq.s32.totalorder %s10, 7
    %p171 = por %p169, %p170
    %p172 = scmp.ne.s32.totalorder %s164, %s167
    %p173 = scmp.eq.s32.totalorder %s10, 0
    %p174 = por %p172, %p173
    %p175 = scmp.ne.s32.totalorder %s164, %s167
    %p176 = scmp.eq.s32.totalorder %s15, 7
    %p177 = por %p175, %p176
    %p178 = scmp.ne.s32.totalorder %s167, %s168
    %p179 = scmp.eq.s32.totalorder %s15, 0
    %p180 = por %p178, %p179
    %p181 = scmp.ne.s32.totalorder %s167, %s168
    %p182 = scmp.eq.s32.totalorder %s16, 7
    %p183 = por %p181, %p182
    %p185 = scmp.ne.s32.totalorder %s168, %s184
    %p186 = scmp.eq.s32.totalorder %s16, 0
    %p187 = por %p185, %p186
    %p188 = scmp.le.s32.totalorder 1, %s10
    %p189 = scmp.lt.s32.totalorder %s10, 9
    %p190 = pnand %p188, %p189
    %p191 = pneg %p190
    // Predicated region
    $region9: #{llama_forward.15} parent=5 // pred_check
      _
    $region10: #{llama_forward.15} parent=5 // pred_check_branch
      %193 = sbr.rel (%p190) target = $region12
    $region11: #{llama_forward.15} parent=5 // pred_region
      %s194 = ssub.s32 %s10, 1
      // Predicated region
      $region13: #{llama_forward.15} parent=11 // pred_check
        %p195 = pneg %p120
      $region14: #{llama_forward.15} parent=11 // pred_check_branch
        %197 = sbr.rel (%p195) target = $region16
      $region15: #{llama_forward.15} parent=11 // pred_region
        %p198 = scmp.lt.s32.totalorder %s23, 0
        %s199 = scalar_select %p198, %s23, 0
        %s200 = scalar_lea.vmem %s2, %s199
      $region16: #{llama_forward.15} parent=11 // pred_fallthru
        _
    $region12: #{llama_forward.15} parent=5 // pred_fallthru
      _
    %p201 = scmp.lt.s32.totalorder %s10, 8
    // Predicated region
    $region17: #{llama_forward.15} parent=5 // pred_check
      %p202 = pneg %p201
    $region18: #{llama_forward.15} parent=5 // pred_check_branch
      %204 = sbr.rel (%p202) target = $region20
    $region19: #{llama_forward.15} parent=5 // pred_region
      // Predicated region
      $region21: #{llama_forward.15} parent=19 // pred_check
        %p205 = pneg %p60
      $region22: #{llama_forward.15} parent=19 // pred_check_branch
        %207 = sbr.rel (%p205) target = $region24
      $region23: #{llama_forward.15} parent=19 // pred_region
        %p208 = scmp.lt.s32.totalorder %s20, 3
        %s209 = scalar_select %p208, %s20, 3
        %p210 = scmp.lt.s32.totalorder %s17, 1
        %s211 = scalar_select %p210, %s17, 1
        %p212 = scmp.lt.s32.totalorder %s18, 0
        %s213 = scalar_select %p212, %s18, 0
        %s214 = sadd.s32 %s213, %s211
        %s215 = smul.addr %s209, 2
        %s216 = sadd.s32 %s214, %s215
        %s217 = smul.addr %s216, 4
        %s218 = scalar_lea.vmem %s0, %s217
      $region24: #{llama_forward.15} parent=19 // pred_fallthru
        _
      // Predicated region
      $region25: #{llama_forward.15} parent=19 // pred_check
        %p219 = pneg %p88
      $region26: #{llama_forward.15} parent=19 // pred_check_branch
        %221 = sbr.rel (%p219) target = $region28
      $region27: #{llama_forward.15} parent=19 // pred_region
        %p222 = scmp.lt.s32.totalorder %s20, 3
        %s223 = scalar_select %p222, %s20, 3
        %p224 = scmp.lt.s32.totalorder %s19, 0
        %s225 = scalar_select %p224, %s19, 0
        %s226 = sadd.s32 %s225, %s223
        %s227 = smul.addr %s226, 4
        %s228 = scalar_lea.vmem %s1, %s227
      $region28: #{llama_forward.15} parent=19 // pred_fallthru
        _
      // Predicated region
      $region29: #{llama_forward.15} parent=19 // pred_check
        %p229 = pneg %p144
      $region30: #{llama_forward.15} parent=19 // pred_check_branch
        %231 = sbr.rel (%p229) target = $region32
      $region31: #{llama_forward.15} parent=19 // pred_region
        %p232 = scmp.lt.s32.totalorder %s17, 1
        %s233 = scalar_select %p232, %s17, 1
        %p234 = scmp.lt.s32.totalorder %s18, 0
        %s235 = scalar_select %p234, %s18, 0
        %p236 = scmp.lt.s32.totalorder %s19, 0
        %s237 = scalar_select %p236, %s19, 0
        %s238 = sadd.s32 %s237, %s235
        %s239 = sadd.s32 %s238, %s233
        %s240 = smul.addr %s239, 8
        %s241 = scalar_lea.vmem %s3, %s240
      $region32: #{llama_forward.15} parent=19 // pred_fallthru
        _
    $region20: #{llama_forward.15} parent=5 // pred_fallthru
      _
    %p242 = scmp.le.s32.totalorder 1, %s10
    %p243 = scmp.lt.s32.totalorder %s10, 9
    %p244 = pnand %p242, %p243
    %p245 = pneg %p244
    // Predicated region
    $region33: #{llama_forward.15} parent=5 // pred_check
      _
    $region34: #{llama_forward.15} parent=5 // pred_check_branch
      %247 = sbr.rel (%p244) target = $region36
    $region35: #{llama_forward.15} parent=5 // pred_region
      %s248 = ssub.s32 %s10, 1
      %p249 = scmp.lt.s32.totalorder %s24, 3
      %s250 = scalar_select %p249, %s24, 3
      %p251 = scmp.lt.s32.totalorder %s21, 1
      %s252 = scalar_select %p251, %s21, 1
      %p253 = scmp.lt.s32.totalorder %s22, 0
      %s254 = scalar_select %p253, %s22, 0
      %s255 = sadd.s32 %s254, %s252
      %s256 = smul.addr %s250, 2
      %s257 = sadd.s32 %s255, %s256
      %s258 = smul.addr %s257, 4
      %s259 = scalar_lea.vmem %s0, %s258
      %p260 = pneg %p66
      %p261 = pneg %p63
      %p262 = scmp.lt.s32.totalorder %s24, 3
      %s263 = scalar_select %p262, %s24, 3
      %p264 = scmp.lt.s32.totalorder %s23, 0
      %s265 = scalar_select %p264, %s23, 0
      %s266 = sadd.s32 %s265, %s263
      %s267 = smul.addr %s266, 4
      %s268 = scalar_lea.vmem %s1, %s267
      %p269 = pneg %p94
      %p270 = pneg %p91
      %p271 = scmp.lt.s32.totalorder %s23, 0
      %s272 = scalar_select %p271, %s23, 0
      %s273 = scalar_lea.vmem %s2, %s272
      %p274 = pneg %p120
      %p275 = pneg %p117
      %p276 = scmp.lt.s32.totalorder %s21, 1
      %s277 = scalar_select %p276, %s21, 1
      %p278 = scmp.lt.s32.totalorder %s22, 0
      %s279 = scalar_select %p278, %s22, 0
      %p280 = scmp.lt.s32.totalorder %s23, 0
      %s281 = scalar_select %p280, %s23, 0
      %s282 = sadd.s32 %s281, %s279
      %s283 = sadd.s32 %s282, %s277
      %s284 = smul.addr %s283, 8
      %s285 = scalar_lea.vmem %s3, %s284
      %p286 = pneg %p150
      %p287 = pneg %p147
      %p288 = pneg %p180
      %p289 = pneg %p177
      %p290 = scmp.lt.s32.totalorder %s21, 1
      %s291 = scalar_select %p290, %s21, 1
      %p292 = scmp.lt.s32.totalorder %s22, 0
      %s293 = scalar_select %p292, %s22, 0
      %p294 = scmp.lt.s32.totalorder %s23, 0
      %s295 = scalar_select %p294, %s23, 0
      %s296 = sadd.s32 %s295, %s293
      %s297 = sadd.s32 %s296, %s291
      %s298 = smul.addr %s297, 8
      %s299 = scalar_lea.vmem %s4, %s298
      %p300 = scmp.lt.s32.totalorder %s24, 3
      %s301 = scalar_select %p300, %s24, 3
      %p302 = scmp.lt.s32.totalorder %s21, 1
      %s303 = scalar_select %p302, %s21, 1
      %p304 = scmp.lt.s32.totalorder %s22, 0
      %s305 = scalar_select %p304, %s22, 0
      %s306 = sadd.s32 %s305, %s303
      %s307 = smul.addr %s301, 2
      %s308 = sadd.s32 %s306, %s307
      %s309 = smul.addr %s308, 4
      %s310 = scalar_lea.vmem %s0, %s309
      %p311 = scmp.lt.s32.totalorder %s24, 3
      %s312 = scalar_select %p311, %s24, 3
      %p313 = scmp.lt.s32.totalorder %s23, 0
      %s314 = scalar_select %p313, %s23, 0
      %s315 = sadd.s32 %s314, %s312
      %s316 = smul.addr %s315, 4
      %s317 = scalar_lea.vmem %s1, %s316
      %p318 = scmp.lt.s32.totalorder %s23, 0
      %s319 = scalar_select %p318, %s23, 0
      %s320 = scalar_lea.vmem %s2, %s319
      %p321 = scmp.lt.s32.totalorder %s21, 1
      %s322 = scalar_select %p321, %s21, 1
      %p323 = scmp.lt.s32.totalorder %s22, 0
      %s324 = scalar_select %p323, %s22, 0
      %p325 = scmp.lt.s32.totalorder %s23, 0
      %s326 = scalar_select %p325, %s23, 0
      %s327 = sadd.s32 %s326, %s324
      %s328 = sadd.s32 %s327, %s322
      %s329 = smul.addr %s328, 8
      %s330 = scalar_lea.vmem %s3, %s329
      %p331 = scmp.lt.s32.totalorder %s21, 1
      %s332 = scalar_select %p331, %s21, 1
      %p333 = scmp.lt.s32.totalorder %s22, 0
      %s334 = scalar_select %p333, %s22, 0
      %p335 = scmp.lt.s32.totalorder %s23, 0
      %s336 = scalar_select %p335, %s23, 0
      %s337 = sadd.s32 %s336, %s334
      %s338 = sadd.s32 %s337, %s332
      %s339 = smul.addr %s338, 8
      %s340 = scalar_lea.vmem %s4, %s339
      %p342 = scmp.eq.s32.totalorder %s24, 0
      // Predicated region
      $region37: #{llama_forward.15} parent=35 // pred_check
        %p343 = pneg %p342
      $region38: #{llama_forward.15} parent=35 // pred_check_branch
        %345 = sbr.rel (%p343) target = $region40
      $region39: #{llama_forward.15} parent=35 // pred_region
        %vm346 = vcmask 261120
        %347 = vst.msk [vmem:[#allocation2] sm:$0xff] %vm346, 0.0
      $region40: #{llama_forward.15} parent=35 // pred_fallthru
        _
      %v348 = vld [vmem:[#allocation2] sm:$0xff]
      %v349 = vld [vmem:[%s310] sm:$0xf]
      %v350 = vld [vmem:[%s317] sm:$0xf]
      %vm351 = vcmask 64512
      %v353 = vsel %vm351, %v349, 0
      %vm355 = vcmask 1043456
      %v357 = vsel %vm355, %v350, 0
      %359 = vmatprep.subr.bf16.mxu0 0
      %360 = vmatpush1.bf16.msra.mxu0 %v357
      %361 = vmatprep.subr.bf16.mxu0 0
      %362 = vmatpush1.bf16.msra.mxu0 0
      %363 = vmatprep.subr.bf16.mxu0 0
      %364 = vmatpush1.bf16.msra.mxu0 0
      %365 = vmatprep.subr.bf16.mxu0 0
      %366 = vmatpush1.bf16.msra.mxu0 0
      %367 = vmatprep.subr.bf16.mxu0 0
      %368 = vmatpush1.bf16.msra.mxu0 0
      %369 = vmatprep.subr.bf16.mxu0 0
      %370 = vmatpush1.bf16.msra.mxu0 0
      %371 = vmatprep.subr.bf16.mxu0 0
      %372 = vmatpush1.bf16.msra.mxu0 0
      %373 = vmatprep.subr.bf16.mxu0 0
      %374 = vmatpush1.bf16.msra.mxu0 0
      %375 = vmatprep.subr.bf16.mxu0 0
      %376 = vmatpush1.bf16.msra.mxu0 0
      %377 = vmatprep.subr.bf16.mxu0 0
      %378 = vmatpush1.bf16.msra.mxu0 0
      %379 = vmatprep.subr.bf16.mxu0 0
      %380 = vmatpush1.bf16.msra.mxu0 0
      %381 = vmatprep.subr.bf16.mxu0 0
      %382 = vmatpush1.bf16.msra.mxu0 0
      %383 = vmatprep.subr.bf16.mxu0 0
      %384 = vmatpush1.bf16.msra.mxu0 0
      %385 = vmatprep.subr.bf16.mxu0 0
      %386 = vmatpush1.bf16.msra.mxu0 0
      %387 = vmatprep.subr.bf16.mxu0 0
      %388 = vmatpush1.bf16.msra.mxu0 0
      %389 = vmatprep.subr.bf16.mxu0 0
      %390 = vmatpush1.bf16.msra.mxu0 0
      %391 = vmatprep.mubr.bf16.mxu0 0
      %392 = vmatmul.mubr.bf16.gmra.mrb[0].mxu0 %v353
      %v393 = vpop.f32.mrb[0].mxu0
      %v394 = vadd.f32 0.0, %v393
      %v395 = vpop.f32.mrb[0].mxu0
      %v396 = vpop.f32.mrb[0].mxu0
      %v397 = vpop.f32.mrb[0].mxu0
      %398 = vdwg.mxu0
      %v399 = vadd.f32 %v348, %v394
      %vm400 = vcmask 261120
      %401 = vst.msk [vmem:[#allocation2] sm:$0xff] %vm400, %v399
      %p402 = scmp.eq.s32.totalorder %s24, 3
      // Predicated region
      $region41: #{llama_forward.15} parent=35 // pred_check
        %p403 = pneg %p402
      $region42: #{llama_forward.15} parent=35 // pred_check_branch
        %405 = sbr.rel (%p403) target = $region44
      $region43: #{llama_forward.15} parent=35 // pred_region
        %v406 = vld [vmem:[%s330] sm:$0xff]
        %v407 = vld [vmem:[#allocation2] sm:$0xff]
        %v408 = vadd.f32 %v406, %v407
        %v409 = vld [vmem:[%s320] sm:$0x1]
        %v411 = vlaneseq
        %v412 = vshrl.u32 %v411, 7
        %v413 = vsub.s32 0, %v412
        %v414 = vrot.slane %v409, %v413
        %v416 = vadd.f32 %v408, %v414
        %417 = vst.msk [vmem:[%s340] sm:$0xff] %vm400, %v416
      $region44: #{llama_forward.15} parent=35 // pred_fallthru
        _
      %p418 = scmp.lt.s32.totalorder %s21, 1
      %s419 = scalar_select %p418, %s21, 1
      %p420 = scmp.lt.s32.totalorder %s22, 0
      %s421 = scalar_select %p420, %s22, 0
      %p422 = scmp.lt.s32.totalorder %s23, 0
      %s423 = scalar_select %p422, %s23, 0
      %s424 = sadd.s32 %s423, %s421
      %s425 = sadd.s32 %s424, %s419
      %s426 = smul.addr %s425, 8
      %s427 = scalar_lea.vmem %s4, %s426
      // Predicated region
      $region45: #{llama_forward.15} parent=35 // pred_check
        %p428 = pneg %p177
      $region46: #{llama_forward.15} parent=35 // pred_check_branch
        %430 = sbr.rel (%p428) target = $region48
      $region47: #{llama_forward.15} parent=35 // pred_region
        _
      $region48: #{llama_forward.15} parent=35 // pred_fallthru
        _
    $region36: #{llama_forward.15} parent=5 // pred_fallthru
      _
    %p431 = scmp.le.s32.totalorder 2, %s10
    // Predicated region
    $region49: #{llama_forward.15} parent=5 // pred_check
      %p432 = pneg %p431
    $region50: #{llama_forward.15} parent=5 // pred_check_branch
      %434 = sbr.rel (%p432) target = $region52
    $region51: #{llama_forward.15} parent=5 // pred_region
      %s435 = ssub.s32 %s10, 2
      // Predicated region
      $region53: #{llama_forward.15} parent=51 // pred_check
        %p436 = pneg %p183
      $region54: #{llama_forward.15} parent=51 // pred_check_branch
        %438 = sbr.rel (%p436) target = $region56
      $region55: #{llama_forward.15} parent=51 // pred_region
        %p439 = scmp.lt.s32.totalorder %s25, 1
        %s440 = scalar_select %p439, %s25, 1
        %p441 = scmp.lt.s32.totalorder %s26, 0
        %s442 = scalar_select %p441, %s26, 0
        %p443 = scmp.lt.s32.totalorder %s27, 0
        %s444 = scalar_select %p443, %s27, 0
        %s445 = sadd.s32 %s444, %s442
        %s446 = sadd.s32 %s445, %s440
        %s447 = smul.addr %s446, 8
        %s448 = scalar_lea.vmem %s4, %s447
      $region56: #{llama_forward.15} parent=51 // pred_fallthru
        _
    $region52: #{llama_forward.15} parent=5 // pred_fallthru
      _
  $region6: #{llama_forward.15} parent=0 // loop_footer
    %s14 = sadd.s32 1, %s10
  $region7: #{llama_forward.15} parent=0 // loop_footer_branch
    %9 = sbr.rel target = $region3
  $region8: #{llama_forward.15} parent=0 // loop_exit
    _

// kernel: llama_forward.14
$region0: #{llama_forward.14}
  #allocation0 [shape = 'u32[]', space=smem, size = 0x4, offset = 0x4, fixed_abs, tag = 'smem constant byte address 0x4 - core index']
  #allocation1 [shape = 'u32[144,128]{1,0:T(1,128)}', space=vmem, size = 0x12000, scoped, tag = 'internal scratch']
  #allocation2 [shape = 'f32[8,1]{1,0:T(8,128)}', space=vmem, size = 0x1000, scoped, tag = 'scratch operand']
  #allocation3 [shape = 'f32[8,1]{1,0:T(8,128)}', space=vmem, size = 0x1000, scoped, tag = 'scratch operand']
  #allocation4 [shape = 'f32[8,8]{1,0:T(8,128)}', space=vmem, size = 0x1000, scoped, tag = 'scratch operand']
  %s0 = inlined_call_operand.vmem [shape: bf16[12,2,8,8], index: 0, kind: input, shape index: {}, may-alias: {0,1,2}]
  %s1 = inlined_call_operand.vmem [shape: bf16[12,2,8,8], index: 1, kind: input, shape index: {}, may-alias: {0,1,2}]
  %s2 = inlined_call_operand.vmem [shape: bf16[12,2,8,8], index: 2, kind: input, shape index: {}, may-alias: {0,1,2}]
  %s3 = inlined_call_operand.vmem [shape: bf16[4,2,8,8], index: 3, kind: output, shape index: {}]
  %s4 = sld [smem:[#allocation0]]
  $region53: #{llama_forward.14} parent=0
    _
  %s6 = ssub.s32 1, %s4
  %s7 = scalar_select 0, %s6, %s4
  loop: start=0, step=1, limit=10
  $region2: #{llama_forward.14} parent=0 // loop_pre_header
    _
  $region3: #{llama_forward.14} parent=0 // loop_header
    %s9 = sphi 0, %s13
    %p10 = scmp.ge.s32.totalorder %s9, 10
    %s16 = sphi 0, %s42
    %s17 = sphi 0, %s38
    %s18 = sphi 0, %s34
    %s19 = sphi 0, %s30
    %s20 = sphi 0, %s16
    %s21 = sphi 0, %s17
    %s22 = sphi 0, %s18
    %s23 = sphi 0, %s19
    %s24 = sphi 0, %s20
    %s25 = sphi 0, %s21
    %s26 = sphi 0, %s22
    %s27 = sphi 0, %s23
    %s49 = sphi 0, %s51
    %s52 = sphi 0, %s49
    %s53 = sphi 0, %s52
    %s69 = sphi 0, %s53
    %s81 = sphi 0, %s83
    %s84 = sphi 0, %s81
    %s85 = sphi 0, %s84
    %s101 = sphi 0, %s85
    %s113 = sphi 0, %s115
    %s116 = sphi 0, %s113
    %s117 = sphi 0, %s116
    %s133 = sphi 0, %s117
    %s143 = sphi 0, %s145
    %s146 = sphi 0, %s143
    %s147 = sphi 0, %s146
    %s163 = sphi 0, %s147
  $region4: #{llama_forward.14} parent=0 // loop_header_branch
    %12 = sbr.rel (%p10) target = $region8
  $region5: #{llama_forward.14} parent=0 // loop_body
    %s14 = ssub.s32 %s9, 1
    %s15 = ssub.s32 %s9, 2
    %s28 = sadd.s32 1, %s19
    %p29 = scmp.ge.s32.totalorder %s28, 1
    %s30 = scalar_select %p29, 0, %s28
    %s31 = sadd.s32 1, %s18
    %s32 = scalar_select %p29, %s31, %s18
    %p33 = scmp.ge.s32.totalorder %s32, 1
    %s34 = scalar_select %p33, 0, %s32
    %s35 = sadd.s32 1, %s17
    %s36 = scalar_select %p33, %s35, %s17
    %p37 = scmp.ge.s32.totalorder %s36, 4
    %s38 = scalar_select %p37, 0, %s36
    %s39 = sadd.s32 1, %s16
    %s40 = scalar_select %p37, %s39, %s16
    %p41 = scmp.ge.s32.totalorder %s40, 2
    %s42 = scalar_select %p41, 0, %s40
    %s43 = ssub.s32 %s17, %s38
    %s44 = ssub.s32 %s16, %s42
    %s45 = sor.u32 %s43, %s44
    %s46 = ssub.s32 %s18, %s34
    %s47 = sor.u32 %s45, %s46
    %p48 = scmp.eq.s32.totalorder %s47, 0
    %s50 = sadd.s32 %s49, 1
    %s51 = scalar_select %p48, %s49, %s50
    %p54 = pneg %p48
    %p55 = scmp.eq.s32.totalorder %s9, 7
    %p56 = por %p54, %p55
    %p57 = scmp.ne.s32.totalorder %s49, %s52
    %p58 = scmp.eq.s32.totalorder %s9, 0
    %p59 = por %p57, %p58
    %p60 = scmp.ne.s32.totalorder %s49, %s52
    %p61 = scmp.eq.s32.totalorder %s14, 7
    %p62 = por %p60, %p61
    %p63 = scmp.ne.s32.totalorder %s52, %s53
    %p64 = scmp.eq.s32.totalorder %s14, 0
    %p65 = por %p63, %p64
    %p66 = scmp.ne.s32.totalorder %s52, %s53
    %p67 = scmp.eq.s32.totalorder %s15, 7
    %p68 = por %p66, %p67
    %p70 = scmp.ne.s32.totalorder %s53, %s69
    %p71 = scmp.eq.s32.totalorder %s15, 0
    %p72 = por %p70, %p71
    %s73 = sadd.s32 %s17, 4
    %s74 = sadd.s32 %s38, 4
    %s75 = ssub.s32 %s73, %s74
    %s76 = ssub.s32 %s16, %s42
    %s77 = sor.u32 %s75, %s76
    %s78 = ssub.s32 %s19, %s30
    %s79 = sor.u32 %s77, %s78
    %p80 = scmp.eq.s32.totalorder %s79, 0
    %s82 = sadd.s32 %s81, 1
    %s83 = scalar_select %p80, %s81, %s82
    %p86 = pneg %p80
    %p87 = scmp.eq.s32.totalorder %s9, 7
    %p88 = por %p86, %p87
    %p89 = scmp.ne.s32.totalorder %s81, %s84
    %p90 = scmp.eq.s32.totalorder %s9, 0
    %p91 = por %p89, %p90
    %p92 = scmp.ne.s32.totalorder %s81, %s84
    %p93 = scmp.eq.s32.totalorder %s14, 7
    %p94 = por %p92, %p93
    %p95 = scmp.ne.s32.totalorder %s84, %s85
    %p96 = scmp.eq.s32.totalorder %s14, 0
    %p97 = por %p95, %p96
    %p98 = scmp.ne.s32.totalorder %s84, %s85
    %p99 = scmp.eq.s32.totalorder %s15, 7
    %p100 = por %p98, %p99
    %p102 = scmp.ne.s32.totalorder %s85, %s101
    %p103 = scmp.eq.s32.totalorder %s15, 0
    %p104 = por %p102, %p103
    %s105 = sadd.s32 %s17, 8
    %s106 = sadd.s32 %s38, 8
    %s107 = ssub.s32 %s105, %s106
    %s108 = ssub.s32 %s16, %s42
    %s109 = sor.u32 %s107, %s108
    %s110 = ssub.s32 %s19, %s30
    %s111 = sor.u32 %s109, %s110
    %p112 = scmp.eq.s32.totalorder %s111, 0
    %s114 = sadd.s32 %s113, 1
    %s115 = scalar_select %p112, %s113, %s114
    %p118 = pneg %p112
    %p119 = scmp.eq.s32.totalorder %s9, 7
    %p120 = por %p118, %p119
    %p121 = scmp.ne.s32.totalorder %s113, %s116
    %p122 = scmp.eq.s32.totalorder %s9, 0
    %p123 = por %p121, %p122
    %p124 = scmp.ne.s32.totalorder %s113, %s116
    %p125 = scmp.eq.s32.totalorder %s14, 7
    %p126 = por %p124, %p125
    %p127 = scmp.ne.s32.totalorder %s116, %s117
    %p128 = scmp.eq.s32.totalorder %s14, 0
    %p129 = por %p127, %p128
    %p130 = scmp.ne.s32.totalorder %s116, %s117
    %p131 = scmp.eq.s32.totalorder %s15, 7
    %p132 = por %p130, %p131
    %p134 = scmp.ne.s32.totalorder %s117, %s133
    %p135 = scmp.eq.s32.totalorder %s15, 0
    %p136 = por %p134, %p135
    %s137 = ssub.s32 %s17, %s38
    %s138 = ssub.s32 %s16, %s42
    %s139 = sor.u32 %s137, %s138
    %s140 = ssub.s32 %s18, %s34
    %s141 = sor.u32 %s139, %s140
    %p142 = scmp.eq.s32.totalorder %s141, 0
    %s144 = sadd.s32 %s143, 1
    %s145 = scalar_select %p142, %s143, %s144
    %p148 = pneg %p142
    %p149 = scmp.eq.s32.totalorder %s9, 7
    %p150 = por %p148, %p149
    %p151 = scmp.ne.s32.totalorder %s143, %s146
    %p152 = scmp.eq.s32.totalorder %s9, 0
    %p153 = por %p151, %p152
    %p154 = scmp.ne.s32.totalorder %s143, %s146
    %p155 = scmp.eq.s32.totalorder %s14, 7
    %p156 = por %p154, %p155
    %p157 = scmp.ne.s32.totalorder %s146, %s147
    %p158 = scmp.eq.s32.totalorder %s14, 0
    %p159 = por %p157, %p158
    %p160 = scmp.ne.s32.totalorder %s146, %s147
    %p161 = scmp.eq.s32.totalorder %s15, 7
    %p162 = por %p160, %p161
    %p164 = scmp.ne.s32.totalorder %s147, %s163
    %p165 = scmp.eq.s32.totalorder %s15, 0
    %p166 = por %p164, %p165
    %p167 = scmp.le.s32.totalorder 1, %s9
    %p168 = scmp.lt.s32.totalorder %s9, 9
    %p169 = pnand %p167, %p168
    %p170 = pneg %p169
    // Predicated region
    $region9: #{llama_forward.14} parent=5 // pred_check
      _
    $region10: #{llama_forward.14} parent=5 // pred_check_branch
      %172 = sbr.rel (%p169) target = $region12
    $region11: #{llama_forward.14} parent=5 // pred_region
      %s173 = ssub.s32 %s9, 1
    $region12: #{llama_forward.14} parent=5 // pred_fallthru
      _
    %p174 = scmp.lt.s32.totalorder %s9, 8
    // Predicated region
    $region13: #{llama_forward.14} parent=5 // pred_check
      %p175 = pneg %p174
    $region14: #{llama_forward.14} parent=5 // pred_check_branch
      %177 = sbr.rel (%p175) target = $region16
    $region15: #{llama_forward.14} parent=5 // pred_region
      // Predicated region
      $region17: #{llama_forward.14} parent=15 // pred_check
        %p178 = pneg %p59
      $region18: #{llama_forward.14} parent=15 // pred_check_branch
        %180 = sbr.rel (%p178) target = $region20
      $region19: #{llama_forward.14} parent=15 // pred_region
        %p181 = scmp.lt.s32.totalorder %s17, 11
        %s182 = scalar_select %p181, %s17, 11
        %p183 = scmp.lt.s32.totalorder %s16, 1
        %s184 = scalar_select %p183, %s16, 1
        %p185 = scmp.lt.s32.totalorder %s18, 0
        %s186 = scalar_select %p185, %s18, 0
        %s187 = sadd.s32 %s186, %s184
        %s188 = smul.addr %s182, 2
        %s189 = sadd.s32 %s187, %s188
        %s190 = smul.addr %s189, 4
        %s191 = scalar_lea.vmem %s0, %s190
      $region20: #{llama_forward.14} parent=15 // pred_fallthru
        _
      // Predicated region
      $region21: #{llama_forward.14} parent=15 // pred_check
        %p192 = pneg %p91
      $region22: #{llama_forward.14} parent=15 // pred_check_branch
        %194 = sbr.rel (%p192) target = $region24
      $region23: #{llama_forward.14} parent=15 // pred_region
        %s195 = sadd.s32 %s17, 4
        %p196 = scmp.lt.s32.totalorder %s195, 11
        %s197 = scalar_select %p196, %s195, 11
        %p198 = scmp.lt.s32.totalorder %s16, 1
        %s199 = scalar_select %p198, %s16, 1
        %p200 = scmp.lt.s32.totalorder %s19, 0
        %s201 = scalar_select %p200, %s19, 0
        %s202 = sadd.s32 %s201, %s199
        %s203 = smul.addr %s197, 2
        %s204 = sadd.s32 %s202, %s203
        %s205 = smul.addr %s204, 4
        %s206 = scalar_lea.vmem %s1, %s205
        %s207 = sadd.s32 %s17, 4
      $region24: #{llama_forward.14} parent=15 // pred_fallthru
        _
      // Predicated region
      $region25: #{llama_forward.14} parent=15 // pred_check
        %p208 = pneg %p123
      $region26: #{llama_forward.14} parent=15 // pred_check_branch
        %210 = sbr.rel (%p208) target = $region28
      $region27: #{llama_forward.14} parent=15 // pred_region
        %s211 = sadd.s32 %s17, 8
        %p212 = scmp.lt.s32.totalorder %s211, 11
        %s213 = scalar_select %p212, %s211, 11
        %p214 = scmp.lt.s32.totalorder %s16, 1
        %s215 = scalar_select %p214, %s16, 1
        %p216 = scmp.lt.s32.totalorder %s19, 0
        %s217 = scalar_select %p216, %s19, 0
        %s218 = sadd.s32 %s217, %s215
        %s219 = smul.addr %s213, 2
        %s220 = sadd.s32 %s218, %s219
        %s221 = smul.addr %s220, 4
        %s222 = scalar_lea.vmem %s2, %s221
        %s223 = sadd.s32 %s17, 8
      $region28: #{llama_forward.14} parent=15 // pred_fallthru
        _
    $region16: #{llama_forward.14} parent=5 // pred_fallthru
      _
    %p224 = scmp.le.s32.totalorder 1, %s9
    %p225 = scmp.lt.s32.totalorder %s9, 9
    %p226 = pnand %p224, %p225
    %p227 = pneg %p226
    // Predicated region
    $region29: #{llama_forward.14} parent=5 // pred_check
      _
    $region30: #{llama_forward.14} parent=5 // pred_check_branch
      %229 = sbr.rel (%p226) target = $region32
    $region31: #{llama_forward.14} parent=5 // pred_region
      %s230 = ssub.s32 %s9, 1
      %p231 = scmp.lt.s32.totalorder %s21, 11
      %s232 = scalar_select %p231, %s21, 11
      %p233 = scmp.lt.s32.totalorder %s20, 1
      %s234 = scalar_select %p233, %s20, 1
      %p235 = scmp.lt.s32.totalorder %s22, 0
      %s236 = scalar_select %p235, %s22, 0
      %s237 = sadd.s32 %s236, %s234
      %s238 = smul.addr %s232, 2
      %s239 = sadd.s32 %s237, %s238
      %s240 = smul.addr %s239, 4
      %s241 = scalar_lea.vmem %s0, %s240
      %p242 = pneg %p65
      %p243 = pneg %p62
      %s244 = sadd.s32 %s21, 4
      %p245 = scmp.lt.s32.totalorder %s244, 11
      %s246 = scalar_select %p245, %s244, 11
      %p247 = scmp.lt.s32.totalorder %s20, 1
      %s248 = scalar_select %p247, %s20, 1
      %p249 = scmp.lt.s32.totalorder %s23, 0
      %s250 = scalar_select %p249, %s23, 0
      %s251 = sadd.s32 %s250, %s248
      %s252 = smul.addr %s246, 2
      %s253 = sadd.s32 %s251, %s252
      %s254 = smul.addr %s253, 4
      %s255 = scalar_lea.vmem %s1, %s254
      %p256 = pneg %p97
      %p257 = pneg %p94
      %s258 = sadd.s32 %s21, 8
      %p259 = scmp.lt.s32.totalorder %s258, 11
      %s260 = scalar_select %p259, %s258, 11
      %p261 = scmp.lt.s32.totalorder %s20, 1
      %s262 = scalar_select %p261, %s20, 1
      %p263 = scmp.lt.s32.totalorder %s23, 0
      %s264 = scalar_select %p263, %s23, 0
      %s265 = sadd.s32 %s264, %s262
      %s266 = smul.addr %s260, 2
      %s267 = sadd.s32 %s265, %s266
      %s268 = smul.addr %s267, 4
      %s269 = scalar_lea.vmem %s2, %s268
      %p270 = pneg %p129
      %p271 = pneg %p126
      %p272 = pneg %p159
      %p273 = pneg %p156
      %p274 = scmp.lt.s32.totalorder %s21, 3
      %s275 = scalar_select %p274, %s21, 3
      %p276 = scmp.lt.s32.totalorder %s20, 1
      %s277 = scalar_select %p276, %s20, 1
      %p278 = scmp.lt.s32.totalorder %s22, 0
      %s279 = scalar_select %p278, %s22, 0
      %s280 = sadd.s32 %s279, %s277
      %s281 = smul.addr %s275, 2
      %s282 = sadd.s32 %s280, %s281
      %s283 = smul.addr %s282, 4
      %s284 = scalar_lea.vmem %s3, %s283
      %p285 = scmp.lt.s32.totalorder %s21, 11
      %s286 = scalar_select %p285, %s21, 11
      %p287 = scmp.lt.s32.totalorder %s20, 1
      %s288 = scalar_select %p287, %s20, 1
      %p289 = scmp.lt.s32.totalorder %s22, 0
      %s290 = scalar_select %p289, %s22, 0
      %s291 = sadd.s32 %s290, %s288
      %s292 = smul.addr %s286, 2
      %s293 = sadd.s32 %s291, %s292
      %s294 = smul.addr %s293, 4
      %s295 = scalar_lea.vmem %s0, %s294
      %s296 = sadd.s32 %s21, 4
      %p297 = scmp.lt.s32.totalorder %s296, 11
      %s298 = scalar_select %p297, %s296, 11
      %p299 = scmp.lt.s32.totalorder %s20, 1
      %s300 = scalar_select %p299, %s20, 1
      %p301 = scmp.lt.s32.totalorder %s23, 0
      %s302 = scalar_select %p301, %s23, 0
      %s303 = sadd.s32 %s302, %s300
      %s304 = smul.addr %s298, 2
      %s305 = sadd.s32 %s303, %s304
      %s306 = smul.addr %s305, 4
      %s307 = scalar_lea.vmem %s1, %s306
      %s308 = sadd.s32 %s21, 4
      %s309 = sadd.s32 %s21, 8
      %p310 = scmp.lt.s32.totalorder %s309, 11
      %s311 = scalar_select %p310, %s309, 11
      %p312 = scmp.lt.s32.totalorder %s20, 1
      %s313 = scalar_select %p312, %s20, 1
      %p314 = scmp.lt.s32.totalorder %s23, 0
      %s315 = scalar_select %p314, %s23, 0
      %s316 = sadd.s32 %s315, %s313
      %s317 = smul.addr %s311, 2
      %s318 = sadd.s32 %s316, %s317
      %s319 = smul.addr %s318, 4
      %s320 = scalar_lea.vmem %s2, %s319
      %s321 = sadd.s32 %s21, 8
      %p322 = scmp.lt.s32.totalorder %s21, 3
      %s323 = scalar_select %p322, %s21, 3
      %p324 = scmp.lt.s32.totalorder %s20, 1
      %s325 = scalar_select %p324, %s20, 1
      %p326 = scmp.lt.s32.totalorder %s22, 0
      %s327 = scalar_select %p326, %s22, 0
      %s328 = sadd.s32 %s327, %s325
      %s329 = smul.addr %s323, 2
      %s330 = sadd.s32 %s328, %s329
      %s331 = smul.addr %s330, 4
      %s332 = scalar_lea.vmem %s3, %s331
      %p334 = scmp.eq.s32.totalorder %s23, 0
      // Predicated region
      $region33: #{llama_forward.14} parent=31 // pred_check
        %p335 = pneg %p334
      $region34: #{llama_forward.14} parent=31 // pred_check_branch
        %337 = sbr.rel (%p335) target = $region36
      $region35: #{llama_forward.14} parent=31 // pred_region
        %vm338 = vcmask 7168
        %339 = vst.msk [vmem:[#allocation2] sm:$0xff] %vm338, -inf
        %340 = vst.msk [vmem:[#allocation3] sm:$0xff] %vm338, 0.0
        %vm341 = vcmask 64512
        %342 = vst.msk [vmem:[#allocation4] sm:$0xff] %vm341, 0.0
      $region36: #{llama_forward.14} parent=31 // pred_fallthru
        _
      %v343 = vld [vmem:[%s295] sm:$0xf]
      %v344 = vld [vmem:[%s307] sm:$0xf]
      %v345 = vld [vmem:[%s320] sm:$0xf]
      %vm346 = vcmask 64512
      %v348 = vsel %vm346, %v343, 0
      %v351 = vsel %vm346, %v344, 0
      %353 = vmatprep.subr.bf16.mxu0 0
      %354 = vmatpush1.bf16.xpose.msra.mxu0 %v351
      %355 = vmatprep.subr.bf16.mxu0 0
      %356 = vmatpush1.bf16.xpose.msra.mxu0 0
      %357 = vmatprep.subr.bf16.mxu0 0
      %358 = vmatpush1.bf16.xpose.msra.mxu0 0
      %359 = vmatprep.subr.bf16.mxu0 0
      %360 = vmatpush1.bf16.xpose.msra.mxu0 0
      %361 = vmatprep.subr.bf16.mxu0 0
      %362 = vmatpush1.bf16.xpose.msra.mxu0 0
      %363 = vmatprep.subr.bf16.mxu0 0
      %364 = vmatpush1.bf16.xpose.msra.mxu0 0
      %365 = vmatprep.subr.bf16.mxu0 0
      %366 = vmatpush1.bf16.xpose.msra.mxu0 0
      %367 = vmatprep.subr.bf16.mxu0 0
      %368 = vmatpush1.bf16.xpose.msra.mxu0 0
      %369 = vmatprep.subr.bf16.mxu0 0
      %370 = vmatpush1.bf16.xpose.msra.mxu0 0
      %371 = vmatprep.subr.bf16.mxu0 0
      %372 = vmatpush1.bf16.xpose.msra.mxu0 0
      %373 = vmatprep.subr.bf16.mxu0 0
      %374 = vmatpush1.bf16.xpose.msra.mxu0 0
      %375 = vmatprep.subr.bf16.mxu0 0
      %376 = vmatpush1.bf16.xpose.msra.mxu0 0
      %377 = vmatprep.subr.bf16.mxu0 0
      %378 = vmatpush1.bf16.xpose.msra.mxu0 0
      %379 = vmatprep.subr.bf16.mxu0 0
      %380 = vmatpush1.bf16.xpose.msra.mxu0 0
      %381 = vmatprep.subr.bf16.mxu0 0
      %382 = vmatpush1.bf16.xpose.msra.mxu0 0
      %383 = vmatprep.subr.bf16.mxu0 0
      %384 = vmatpush1.bf16.xpose.msra.mxu0 0
      %385 = vmatprep.mubr.bf16.mxu0 0
      %386 = vmatmul.mubr.bf16.gmra.mrb[0].mxu0 %v348
      %v387 = vpop.f32.mrb[0].mxu0
      %v388 = vadd.f32 0.0, %v387
      %v389 = vpop.f32.mrb[0].mxu0
      %v390 = vpop.f32.mrb[0].mxu0
      %v391 = vpop.f32.mrb[0].mxu0
      %392 = vdwg.mxu0
      %v393 = vld [vmem:[#allocation2] sm:$0xff]
      %v394 = vsel %vm346, %v388, -inf
      %395 = vmax.xlane.f32.xlu0 %v394
      %v396 = vpop.xlane.xlu0 %395
      %v397 = vmax.f32 %v393, %v396
      %v398 = vsub.f32 %v393, %v397
      %v399 = vmul.f32 %v398, 1.442695
      %v400 = vpow.pop %v399
      %402 = vset.pattern.permute.xlu0 0
      %403 = vperm.xlu0 %402, %v397
      %v404 = vpop.permute.xlu0 %403
      %v406 = vsub.f32 %v388, %v404
      %v407 = vmul.f32 %v406, 1.442695
      %v408 = vpow.pop %v407
      %v409 = vld [vmem:[#allocation3] sm:$0xff]
      %v410 = vmul.f32 %v400, %v409
      %v411 = vsel %vm346, %v408, 0.0
      %412 = vadd.xlane.f32.xlu0 %v411
      %v413 = vpop.xlane.xlu0 %412
      %v414 = vadd.f32 %v410, %v413
      %vm415 = vcmask 7168
      %416 = vst.msk [vmem:[#allocation3] sm:$0xff] %vm415, %v414
      %v417 = vld [vmem:[#allocation4] sm:$0xff]
      %419 = vset.pattern.permute.xlu0 0
      %420 = vperm.xlu0 %419, %v400
      %v421 = vpop.permute.xlu0 %420
      %v423 = vmul.f32 %v421, %v417
      %v424 = vpack.c.bf16 %v408, %v408
      %v426 = vsel %vm346, %v424, 0
      %vm428 = vcmask 1043456
      %v430 = vsel %vm428, %v345, 0
      %432 = vmatprep.subr.bf16.mxu0 0
      %433 = vmatpush1.bf16.msra.mxu0 %v430
      %434 = vmatprep.subr.bf16.mxu0 0
      %435 = vmatpush1.bf16.msra.mxu0 0
      %436 = vmatprep.subr.bf16.mxu0 0
      %437 = vmatpush1.bf16.msra.mxu0 0
      %438 = vmatprep.subr.bf16.mxu0 0
      %439 = vmatpush1.bf16.msra.mxu0 0
      %440 = vmatprep.subr.bf16.mxu0 0
      %441 = vmatpush1.bf16.msra.mxu0 0
      %442 = vmatprep.subr.bf16.mxu0 0
      %443 = vmatpush1.bf16.msra.mxu0 0
      %444 = vmatprep.subr.bf16.mxu0 0
      %445 = vmatpush1.bf16.msra.mxu0 0
      %446 = vmatprep.subr.bf16.mxu0 0
      %447 = vmatpush1.bf16.msra.mxu0 0
      %448 = vmatprep.subr.bf16.mxu0 0
      %449 = vmatpush1.bf16.msra.mxu0 0
      %450 = vmatprep.subr.bf16.mxu0 0
      %451 = vmatpush1.bf16.msra.mxu0 0
      %452 = vmatprep.subr.bf16.mxu0 0
      %453 = vmatpush1.bf16.msra.mxu0 0
      %454 = vmatprep.subr.bf16.mxu0 0
      %455 = vmatpush1.bf16.msra.mxu0 0
      %456 = vmatprep.subr.bf16.mxu0 0
      %457 = vmatpush1.bf16.msra.mxu0 0
      %458 = vmatprep.subr.bf16.mxu0 0
      %459 = vmatpush1.bf16.msra.mxu0 0
      %460 = vmatprep.subr.bf16.mxu0 0
      %461 = vmatpush1.bf16.msra.mxu0 0
      %462 = vmatprep.subr.bf16.mxu0 0
      %463 = vmatpush1.bf16.msra.mxu0 0
      %464 = vmatprep.mubr.bf16.mxu0 0
      %465 = vmatmul.mubr.bf16.gmra.mrb[0].mxu0 %v426
      %v466 = vpop.f32.mrb[0].mxu0
      %v467 = vadd.f32 0.0, %v466
      %v468 = vpop.f32.mrb[0].mxu0
      %v469 = vpop.f32.mrb[0].mxu0
      %v470 = vpop.f32.mrb[0].mxu0
      %471 = vdwg.mxu0
      %v472 = vadd.f32 %v423, %v467
      %473 = vst.msk [vmem:[#allocation4] sm:$0xff] %vm346, %v472
      %474 = vst.msk [vmem:[#allocation2] sm:$0xff] %vm415, %v397
      // Predicated region
      $region37: #{llama_forward.14} parent=31 // pred_check
        %p475 = pneg %p334
      $region38: #{llama_forward.14} parent=31 // pred_check_branch
        %477 = sbr.rel (%p475) target = $region40
      $region39: #{llama_forward.14} parent=31 // pred_region
        %v478 = vld [vmem:[#allocation4] sm:$0xff]
        %v479 = vld [vmem:[#allocation3] sm:$0xff]
        %v480 = vrcp.pop %v479
        %482 = vset.pattern.permute.xlu0 0
        %483 = vperm.xlu0 %482, %v480
        %v484 = vpop.permute.xlu0 %483
        %v486 = vmul.f32 %v478, %v484
        %v487 = vpack.c.bf16 %v486, %v486
        %vm488 = vcmask 60416
        %489 = vst.msk [vmem:[%s332] sm:$0xf] %vm488, %v487
      $region40: #{llama_forward.14} parent=31 // pred_fallthru
        _
      %p490 = scmp.lt.s32.totalorder %s21, 3
      %s491 = scalar_select %p490, %s21, 3
      %p492 = scmp.lt.s32.totalorder %s20, 1
      %s493 = scalar_select %p492, %s20, 1
      %p494 = scmp.lt.s32.totalorder %s22, 0
      %s495 = scalar_select %p494, %s22, 0
      %s496 = sadd.s32 %s495, %s493
      %s497 = smul.addr %s491, 2
      %s498 = sadd.s32 %s496, %s497
      %s499 = smul.addr %s498, 4
      %s500 = scalar_lea.vmem %s3, %s499
      // Predicated region
      $region41: #{llama_forward.14} parent=31 // pred_check
        %p501 = pneg %p156
      $region42: #{llama_forward.14} parent=31 // pred_check_branch
        %503 = sbr.rel (%p501) target = $region44
      $region43: #{llama_forward.14} parent=31 // pred_region
        _
      $region44: #{llama_forward.14} parent=31 // pred_fallthru
        _
    $region32: #{llama_forward.14} parent=5 // pred_fallthru
      _
    %p504 = scmp.le.s32.totalorder 2, %s9
    // Predicated region
    $region45: #{llama_forward.14} parent=5 // pred_check
      %p505 = pneg %p504
    $region46: #{llama_forward.14} parent=5 // pred_check_branch
      %507 = sbr.rel (%p505) target = $region48
    $region47: #{llama_forward.14} parent=5 // pred_region
      %s508 = ssub.s32 %s9, 2
      // Predicated region
      $region49: #{llama_forward.14} parent=47 // pred_check
        %p509 = pneg %p162
      $region50: #{llama_forward.14} parent=47 // pred_check_branch
        %511 = sbr.rel (%p509) target = $region52
      $region51: #{llama_forward.14} parent=47 // pred_region
        %p512 = scmp.lt.s32.totalorder %s25, 3
        %s513 = scalar_select %p512, %s25, 3
        %p514 = scmp.lt.s32.totalorder %s24, 1
        %s515 = scalar_select %p514, %s24, 1
        %p516 = scmp.lt.s32.totalorder %s26, 0
        %s517 = scalar_select %p516, %s26, 0
        %s518 = sadd.s32 %s517, %s515
        %s519 = smul.addr %s513, 2
        %s520 = sadd.s32 %s518, %s519
        %s521 = smul.addr %s520, 4
        %s522 = scalar_lea.vmem %s3, %s521
      $region52: #{llama_forward.14} parent=47 // pred_fallthru
        _
    $region48: #{llama_forward.14} parent=5 // pred_fallthru
      _
  $region6: #{llama_forward.14} parent=0 // loop_footer
    %s13 = sadd.s32 1, %s9
  $region7: #{llama_forward.14} parent=0 // loop_footer_branch
    %8 = sbr.rel target = $region3
  $region8: #{llama_forward.14} parent=0 // loop_exit
    _

// kernel: llama_forward.23
$region0: #{llama_forward.23}
  #allocation0 [shape = 'u32[]', space=smem, size = 0x4, offset = 0x4, fixed_abs, tag = 'smem constant byte address 0x4 - core index']
  #allocation1 [shape = 'u32[144,128]{1,0:T(1,128)}', space=vmem, size = 0x12000, scoped, tag = 'internal scratch']
  %s0 = inlined_call_operand.vmem [shape: f32[2,8,32], index: 0, kind: input, shape index: {}]
  %s1 = inlined_call_operand.vmem [shape: f32[1,32], index: 1, kind: input, shape index: {}]
  %s2 = inlined_call_operand.vmem [shape: f32[1,32], index: 2, kind: input, shape index: {}]
  %s3 = inlined_call_operand.hbm [shape: f32[2,8,32], index: 3, kind: output, shape index: {}]
  %s4 = sld [smem:[#allocation0]]
  $region45: #{llama_forward.23} parent=0
    _
  %s6 = ssub.s32 1, %s4
  %s7 = scalar_select 0, %s6, %s4
  $region1: #{llama_forward.23} parent=0
    #allocation2 [shape = 'u8[8192]{0}', space=vmem, size = 0x2000, scoped, tag = 'output window, operand 0']
    #allocation3 [shape = 's32[2]{0}', space=sflag, size = 0x8, scoped, tag = 'scoped memory for llama_forward.23']
    %8 = vsyncpa [#allocation3], 0
    %s9 = scalar_lea.sflag [#allocation3], 1
    %10 = vsyncpa %s9, 0
    loop: start=0, step=1, limit=4
    $region2: #{llama_forward.23} parent=1 // loop_pre_header
      _
    $region3: #{llama_forward.23} parent=1 // loop_header
      %s12 = sphi 0, %s16
      %p13 = scmp.ge.s32.totalorder %s12, 4
      %s19 = sphi 0, %s31
      %s20 = sphi 0, %s27
      %s21 = sphi 0, %s19
      %s22 = sphi 0, %s20
      %s23 = sphi 0, %s21
      %s24 = sphi 0, %s22
      %s36 = sphi 0, %s38
      %s39 = sphi 0, %s36
      %s40 = sphi 0, %s39
      %s56 = sphi 0, %s40
      %s60 = sphi 0, %s60
      %s62 = sphi 0, %s60
      %s63 = sphi 0, %s62
      %s77 = sphi 0, %s63
      %s81 = sphi 0, %s81
      %s83 = sphi 0, %s81
      %s84 = sphi 0, %s83
      %s98 = sphi 0, %s84
      %s106 = sphi 0, %s108
      %s109 = sphi 0, %s106
      %s110 = sphi 0, %s109
      %s126 = sphi 0, %s110
    $region4: #{llama_forward.23} parent=1 // loop_header_branch
      %15 = sbr.rel (%p13) target = $region8
    $region5: #{llama_forward.23} parent=1 // loop_body
      %s17 = ssub.s32 %s12, 1
      %s18 = ssub.s32 %s12, 2
      %s25 = sadd.s32 1, %s20
      %p26 = scmp.ge.s32.totalorder %s25, 1
      %s27 = scalar_select %p26, 0, %s25
      %s28 = sadd.s32 1, %s19
      %s29 = scalar_select %p26, %s28, %s19
      %p30 = scmp.ge.s32.totalorder %s29, 2
      %s31 = scalar_select %p30, 0, %s29
      %s32 = ssub.s32 %s19, %s31
      %s33 = ssub.s32 %s20, %s27
      %s34 = sor.u32 %s32, %s33
      %p35 = scmp.eq.s32.totalorder %s34, 0
      %s37 = sadd.s32 %s36, 1
      %s38 = scalar_select %p35, %s36, %s37
      %p41 = pneg %p35
      %p42 = scmp.eq.s32.totalorder %s12, 1
      %p43 = por %p41, %p42
      %p44 = scmp.ne.s32.totalorder %s36, %s39
      %p45 = scmp.eq.s32.totalorder %s12, 0
      %p46 = por %p44, %p45
      %p47 = scmp.ne.s32.totalorder %s36, %s39
      %p48 = scmp.eq.s32.totalorder %s17, 1
      %p49 = por %p47, %p48
      %p50 = scmp.ne.s32.totalorder %s39, %s40
      %p51 = scmp.eq.s32.totalorder %s17, 0
      %p52 = por %p50, %p51
      %p53 = scmp.ne.s32.totalorder %s39, %s40
      %p54 = scmp.eq.s32.totalorder %s18, 1
      %p55 = por %p53, %p54
      %p57 = scmp.ne.s32.totalorder %s40, %s56
      %p58 = scmp.eq.s32.totalorder %s18, 0
      %p59 = por %p57, %p58
      %s61 = sadd.s32 %s60, 1
      %p64 = scmp.eq.s32.totalorder %s12, 1
      %p65 = scmp.ne.s32.totalorder %s60, %s62
      %p66 = scmp.eq.s32.totalorder %s12, 0
      %p67 = por %p65, %p66
      %p68 = scmp.ne.s32.totalorder %s60, %s62
      %p69 = scmp.eq.s32.totalorder %s17, 1
      %p70 = por %p68, %p69
      %p71 = scmp.ne.s32.totalorder %s62, %s63
      %p72 = scmp.eq.s32.totalorder %s17, 0
      %p73 = por %p71, %p72
      %p74 = scmp.ne.s32.totalorder %s62, %s63
      %p75 = scmp.eq.s32.totalorder %s18, 1
      %p76 = por %p74, %p75
      %p78 = scmp.ne.s32.totalorder %s63, %s77
      %p79 = scmp.eq.s32.totalorder %s18, 0
      %p80 = por %p78, %p79
      %s82 = sadd.s32 %s81, 1
      %p85 = scmp.eq.s32.totalorder %s12, 1
      %p86 = scmp.ne.s32.totalorder %s81, %s83
      %p87 = scmp.eq.s32.totalorder %s12, 0
      %p88 = por %p86, %p87
      %p89 = scmp.ne.s32.totalorder %s81, %s83
      %p90 = scmp.eq.s32.totalorder %s17, 1
      %p91 = por %p89, %p90
      %p92 = scmp.ne.s32.totalorder %s83, %s84
      %p93 = scmp.eq.s32.totalorder %s17, 0
      %p94 = por %p92, %p93
      %p95 = scmp.ne.s32.totalorder %s83, %s84
      %p96 = scmp.eq.s32.totalorder %s18, 1
      %p97 = por %p95, %p96
      %p99 = scmp.ne.s32.totalorder %s84, %s98
      %p100 = scmp.eq.s32.totalorder %s18, 0
      %p101 = por %p99, %p100
      %s102 = ssub.s32 %s19, %s31
      %s103 = ssub.s32 %s20, %s27
      %s104 = sor.u32 %s102, %s103
      %p105 = scmp.eq.s32.totalorder %s104, 0
      %s107 = sadd.s32 %s106, 1
      %s108 = scalar_select %p105, %s106, %s107
      %p111 = pneg %p105
      %p112 = scmp.eq.s32.totalorder %s12, 1
      %p113 = por %p111, %p112
      %p114 = scmp.ne.s32.totalorder %s106, %s109
      %p115 = scmp.eq.s32.totalorder %s12, 0
      %p116 = por %p114, %p115
      %p117 = scmp.ne.s32.totalorder %s106, %s109
      %p118 = scmp.eq.s32.totalorder %s17, 1
      %p119 = por %p117, %p118
      %p120 = scmp.ne.s32.totalorder %s109, %s110
      %p121 = scmp.eq.s32.totalorder %s17, 0
      %p122 = por %p120, %p121
      %p123 = scmp.ne.s32.totalorder %s109, %s110
      %p124 = scmp.eq.s32.totalorder %s18, 1
      %p125 = por %p123, %p124
      %p127 = scmp.ne.s32.totalorder %s110, %s126
      %p128 = scmp.eq.s32.totalorder %s18, 0
      %p129 = por %p127, %p128
      %p130 = scmp.le.s32.totalorder 1, %s12
      %p131 = scmp.lt.s32.totalorder %s12, 3
      %p132 = pnand %p130, %p131
      %p133 = pneg %p132
      // Predicated region
      $region9: #{llama_forward.23} parent=5 // pred_check
        _
      $region10: #{llama_forward.23} parent=5 // pred_check_branch
        %135 = sbr.rel (%p132) target = $region12
      $region11: #{llama_forward.23} parent=5 // pred_region
        %s136 = ssub.s32 %s12, 1
        // Predicated region
        $region13: #{llama_forward.23} parent=11 // pred_check
          %p137 = pneg %p73
        $region14: #{llama_forward.23} parent=11 // pred_check_branch
          %139 = sbr.rel (%p137) target = $region16
        $region15: #{llama_forward.23} parent=11 // pred_region
          _
        $region16: #{llama_forward.23} parent=11 // pred_fallthru
          _
        // Predicated region
        $region17: #{llama_forward.23} parent=11 // pred_check
          %p140 = pneg %p94
        $region18: #{llama_forward.23} parent=11 // pred_check_branch
          %142 = sbr.rel (%p140) target = $region20
        $region19: #{llama_forward.23} parent=11 // pred_region
          _
        $region20: #{llama_forward.23} parent=11 // pred_fallthru
          _
      $region12: #{llama_forward.23} parent=5 // pred_fallthru
        _
      %p143 = scmp.lt.s32.totalorder %s12, 2
      // Predicated region
      $region21: #{llama_forward.23} parent=5 // pred_check
        %p144 = pneg %p143
      $region22: #{llama_forward.23} parent=5 // pred_check_branch
        %146 = sbr.rel (%p144) target = $region24
      $region23: #{llama_forward.23} parent=5 // pred_region
        // Predicated region
        $region25: #{llama_forward.23} parent=23 // pred_check
          %p147 = pneg %p46
        $region26: #{llama_forward.23} parent=23 // pred_check_branch
          %149 = sbr.rel (%p147) target = $region28
        $region27: #{llama_forward.23} parent=23 // pred_region
          %p150 = scmp.lt.s32.totalorder %s19, 1
          %s151 = scalar_select %p150, %s19, 1
          %p152 = scmp.lt.s32.totalorder %s20, 0
          %s153 = scalar_select %p152, %s20, 0
          %s154 = sadd.s32 %s153, %s151
          %s155 = smul.addr %s154, 8
          %s156 = scalar_lea.vmem %s0, %s155
        $region28: #{llama_forward.23} parent=23 // pred_fallthru
          _
      $region24: #{llama_forward.23} parent=5 // pred_fallthru
        _
      %p157 = scmp.le.s32.totalorder 1, %s12
      %p158 = scmp.lt.s32.totalorder %s12, 3
      %p159 = pnand %p157, %p158
      %p160 = pneg %p159
      // Predicated region
      $region29: #{llama_forward.23} parent=5 // pred_check
        _
      $region30: #{llama_forward.23} parent=5 // pred_check_branch
        %162 = sbr.rel (%p159) target = $region32
      $region31: #{llama_forward.23} parent=5 // pred_region
        %s163 = ssub.s32 %s12, 1
        %p164 = scmp.lt.s32.totalorder %s21, 1
        %s165 = scalar_select %p164, %s21, 1
        %p166 = scmp.lt.s32.totalorder %s22, 0
        %s167 = scalar_select %p166, %s22, 0
        %s168 = sadd.s32 %s167, %s165
        %s169 = smul.addr %s168, 8
        %s170 = scalar_lea.vmem %s0, %s169
        %p171 = pneg %p52
        %p172 = pneg %p49
        %p173 = pneg %p73
        %p174 = pneg %p70
        %p175 = pneg %p94
        %p176 = pneg %p91
        %p177 = pneg %p122
        %p178 = pneg %p119
        %s179 = sand.u32 %s109, 1
        %s180 = scalar_lea.sflag [#allocation3], %s179
        %s181 = sand.u32 %s109, 1
        %s182 = smul.addr %s181, 8
        %s183 = scalar_lea.vmem [#allocation2], %s182
        %p184 = scmp.lt.s32.totalorder %s21, 1
        %s185 = scalar_select %p184, %s21, 1
        %p186 = scmp.lt.s32.totalorder %s22, 0
        %s187 = scalar_select %p186, %s22, 0
        %s188 = sadd.s32 %s187, %s185
        %s189 = smul.addr %s188, 8
        %s190 = scalar_lea.vmem %s0, %s189
        %v191 = vld [vmem:[%s190] sm:$0xff]
        %v192 = vld [vmem:[%s1] sm:$0x1]
        %v193 = vld [vmem:[%s2] sm:$0x1]
        %vm194 = vcmask 261120
        %v195 = vsel %vm194, %v191, 0.0
        %196 = vadd.xlane.f32.xlu0 %v195
        %v197 = vpop.xlane.xlu0 %196
        %v198 = vrcp.pop 32.0
        %v199 = vmul.f32 %v197, %v198
        %v200 = vsub.f32 %v191, %v199
        %v201 = vmul.f32 %v200, %v200
        %v202 = vsel %vm194, %v201, 0.0
        %203 = vadd.xlane.f32.xlu0 %v202
        %v204 = vpop.xlane.xlu0 %203
        %v205 = vmul.f32 %v204, %v198
        %v206 = vadd.f32 %v205, 1e-05
        %v207 = vrsqrt.pop %v206
        %v208 = vmul.f32 %v200, %v207
        %v210 = vlaneseq
        %v211 = vshrl.u32 %v210, 7
        %v212 = vsub.s32 0, %v211
        %v213 = vrot.slane %v192, %v212
        %v215 = vmul.f32 %v208, %v213
        %v217 = vlaneseq
        %v218 = vshrl.u32 %v217, 7
        %v219 = vsub.s32 0, %v218
        %v220 = vrot.slane %v193, %v219
        %v222 = vadd.f32 %v215, %v220
        %223 = vst.msk [vmem:[%s183] sm:$0xff] %vm194, %v222
        %s224 = sand.u32 %s109, 1
        %s225 = scalar_lea.sflag [#allocation3], %s224
        %s226 = sand.u32 %s109, 1
        %s227 = smul.addr %s226, 8
        %s228 = scalar_lea.vmem [#allocation2], %s227
        // Predicated region
        $region33: #{llama_forward.23} parent=31 // pred_check
          %p229 = pneg %p119
        $region34: #{llama_forward.23} parent=31 // pred_check_branch
          %231 = sbr.rel (%p229) target = $region36
        $region35: #{llama_forward.23} parent=31 // pred_region
          %s233 = ssub.s32 128, 128
          %234 = vsyncadd %s225, %s233
          %s235 = sadd.s32 %s22, %s21
          %s236 = smul.addr %s235, 128
          %s237 = scalar_lea.hbm %s3, %s236
          %s239 = sshll.u32 %s228, 4
          %s240 = int_to_ptr.vmem [resolvable:$true] %s239
          %242 = dma.vmem_to_hbm [thread:$0]  %s240, 128, %s237, %s225
        $region36: #{llama_forward.23} parent=31 // pred_fallthru
          _
      $region32: #{llama_forward.23} parent=5 // pred_fallthru
        _
      %p243 = scmp.le.s32.totalorder 2, %s12
      // Predicated region
      $region37: #{llama_forward.23} parent=5 // pred_check
        %p244 = pneg %p243
      $region38: #{llama_forward.23} parent=5 // pred_check_branch
        %246 = sbr.rel (%p244) target = $region40
      $region39: #{llama_forward.23} parent=5 // pred_region
        %s247 = ssub.s32 %s12, 2
        // Predicated region
        $region41: #{llama_forward.23} parent=39 // pred_check
          %p248 = pneg %p125
        $region42: #{llama_forward.23} parent=39 // pred_check_branch
          %250 = sbr.rel (%p248) target = $region44
        $region43: #{llama_forward.23} parent=39 // pred_region
          %s251 = sand.u32 %s110, 1
          %s252 = scalar_lea.sflag [#allocation3], %s251
          %s253 = sand.u32 %s110, 1
          %s254 = smul.addr %s253, 8
          %s255 = scalar_lea.vmem [#allocation2], %s254
          %256 = dma.done %s252, 128
        $region44: #{llama_forward.23} parent=39 // pred_fallthru
          _
      $region40: #{llama_forward.23} parent=5 // pred_fallthru
        _
    $region6: #{llama_forward.23} parent=1 // loop_footer
      %s16 = sadd.s32 1, %s12
    $region7: #{llama_forward.23} parent=1 // loop_footer_branch
      %11 = sbr.rel target = $region3
    $region8: #{llama_forward.23} parent=1 // loop_exit
      _
    %257 = vsyncpa [#allocation3], 1
    %s258 = scalar_lea.sflag [#allocation3], 1
    %259 = vsyncpa %s258, 1

// kernel: llama_forward.17
$region0: #{llama_forward.17}
  #allocation0 [shape = 'u32[]', space=smem, size = 0x4, offset = 0x4, fixed_abs, tag = 'smem constant byte address 0x4 - core index']
  #allocation1 [shape = 'u32[144,128]{1,0:T(1,128)}', space=vmem, size = 0x12000, scoped, tag = 'internal scratch']
  #allocation2 [shape = 'f32[8,32]{1,0:T(8,128)}', space=vmem, size = 0x1000, scoped, tag = 'scratch operand']
  %s0 = inlined_call_operand.vmem [shape: bf16[2,8,64], index: 0, kind: input, shape index: {}]
  %s1 = inlined_call_operand.vmem [shape: bf16[64,32], index: 1, kind: input, shape index: {}]
  %s2 = inlined_call_operand.vmem [shape: f32[1,32], index: 2, kind: input, shape index: {}]
  %s3 = inlined_call_operand.vmem [shape: f32[2,8,32], index: 3, kind: input, shape index: {}]
  %s4 = inlined_call_operand.vmem [shape: f32[2,8,32], index: 4, kind: output, shape index: {}]
  %s5 = sld [smem:[#allocation0]]
  $region57: #{llama_forward.17} parent=0
    _
  %s7 = ssub.s32 1, %s5
  %s8 = scalar_select 0, %s7, %s5
  loop: start=0, step=1, limit=4
  $region2: #{llama_forward.17} parent=0 // loop_pre_header
    _
  $region3: #{llama_forward.17} parent=0 // loop_header
    %s10 = sphi 0, %s14
    %p11 = scmp.ge.s32.totalorder %s10, 4
    %s17 = sphi 0, %s43
    %s18 = sphi 0, %s39
    %s19 = sphi 0, %s35
    %s20 = sphi 0, %s31
    %s21 = sphi 0, %s17
    %s22 = sphi 0, %s18
    %s23 = sphi 0, %s19
    %s24 = sphi 0, %s20
    %s25 = sphi 0, %s21
    %s26 = sphi 0, %s22
    %s27 = sphi 0, %s23
    %s28 = sphi 0, %s24
    %s50 = sphi 0, %s52
    %s53 = sphi 0, %s50
    %s54 = sphi 0, %s53
    %s70 = sphi 0, %s54
    %s78 = sphi 0, %s80
    %s81 = sphi 0, %s78
    %s82 = sphi 0, %s81
    %s98 = sphi 0, %s82
    %s104 = sphi 0, %s106
    %s107 = sphi 0, %s104
    %s108 = sphi 0, %s107
    %s124 = sphi 0, %s108
    %s134 = sphi 0, %s136
    %s137 = sphi 0, %s134
    %s138 = sphi 0, %s137
    %s154 = sphi 0, %s138
    %s164 = sphi 0, %s166
    %s167 = sphi 0, %s164
    %s168 = sphi 0, %s167
    %s184 = sphi 0, %s168
  $region4: #{llama_forward.17} parent=0 // loop_header_branch
    %13 = sbr.rel (%p11) target = $region8
  $region5: #{llama_forward.17} parent=0 // loop_body
    %s15 = ssub.s32 %s10, 1
    %s16 = ssub.s32 %s10, 2
    %s29 = sadd.s32 1, %s20
    %p30 = scmp.ge.s32.totalorder %s29, 1
    %s31 = scalar_select %p30, 0, %s29
    %s32 = sadd.s32 1, %s19
    %s33 = scalar_select %p30, %s32, %s19
    %p34 = scmp.ge.s32.totalorder %s33, 1
    %s35 = scalar_select %p34, 0, %s33
    %s36 = sadd.s32 1, %s18
    %s37 = scalar_select %p34, %s36, %s18
    %p38 = scmp.ge.s32.totalorder %s37, 1
    %s39 = scalar_select %p38, 0, %s37
    %s40 = sadd.s32 1, %s17
    %s41 = scalar_select %p38, %s40, %s17
    %p42 = scmp.ge.s32.totalorder %s41, 2
    %s43 = scalar_select %p42, 0, %s41
    %s44 = ssub.s32 %s17, %s43
    %s45 = ssub.s32 %s18, %s39
    %s46 = sor.u32 %s44, %s45
    %s47 = ssub.s32 %s20, %s31
    %s48 = sor.u32 %s46, %s47
    %p49 = scmp.eq.s32.totalorder %s48, 0
    %s51 = sadd.s32 %s50, 1
    %s52 = scalar_select %p49, %s50, %s51
    %p55 = pneg %p49
    %p56 = scmp.eq.s32.totalorder %s10, 1
    %p57 = por %p55, %p56
    %p58 = scmp.ne.s32.totalorder %s50, %s53
    %p59 = scmp.eq.s32.totalorder %s10, 0
    %p60 = por %p58, %p59
    %p61 = scmp.ne.s32.totalorder %s50, %s53
    %p62 = scmp.eq.s32.totalorder %s15, 1
    %p63 = por %p61, %p62
    %p64 = scmp.ne.s32.totalorder %s53, %s54
    %p65 = scmp.eq.s32.totalorder %s15, 0
    %p66 = por %p64, %p65
    %p67 = scmp.ne.s32.totalorder %s53, %s54
    %p68 = scmp.eq.s32.totalorder %s16, 1
    %p69 = por %p67, %p68
    %p71 = scmp.ne.s32.totalorder %s54, %s70
    %p72 = scmp.eq.s32.totalorder %s16, 0
    %p73 = por %p71, %p72
    %s74 = ssub.s32 %s20, %s31
    %s75 = ssub.s32 %s19, %s35
    %s76 = sor.u32 %s74, %s75
    %p77 = scmp.eq.s32.totalorder %s76, 0
    %s79 = sadd.s32 %s78, 1
    %s80 = scalar_select %p77, %s78, %s79
    %p83 = pneg %p77
    %p84 = scmp.eq.s32.totalorder %s10, 1
    %p85 = por %p83, %p84
    %p86 = scmp.ne.s32.totalorder %s78, %s81
    %p87 = scmp.eq.s32.totalorder %s10, 0
    %p88 = por %p86, %p87
    %p89 = scmp.ne.s32.totalorder %s78, %s81
    %p90 = scmp.eq.s32.totalorder %s15, 1
    %p91 = por %p89, %p90
    %p92 = scmp.ne.s32.totalorder %s81, %s82
    %p93 = scmp.eq.s32.totalorder %s15, 0
    %p94 = por %p92, %p93
    %p95 = scmp.ne.s32.totalorder %s81, %s82
    %p96 = scmp.eq.s32.totalorder %s16, 1
    %p97 = por %p95, %p96
    %p99 = scmp.ne.s32.totalorder %s82, %s98
    %p100 = scmp.eq.s32.totalorder %s16, 0
    %p101 = por %p99, %p100
    %s102 = ssub.s32 %s19, %s35
    %p103 = scmp.eq.s32.totalorder %s102, 0
    %s105 = sadd.s32 %s104, 1
    %s106 = scalar_select %p103, %s104, %s105
    %p109 = pneg %p103
    %p110 = scmp.eq.s32.totalorder %s10, 1
    %p111 = por %p109, %p110
    %p112 = scmp.ne.s32.totalorder %s104, %s107
    %p113 = scmp.eq.s32.totalorder %s10, 0
    %p114 = por %p112, %p113
    %p115 = scmp.ne.s32.totalorder %s104, %s107
    %p116 = scmp.eq.s32.totalorder %s15, 1
    %p117 = por %p115, %p116
    %p118 = scmp.ne.s32.totalorder %s107, %s108
    %p119 = scmp.eq.s32.totalorder %s15, 0
    %p120 = por %p118, %p119
    %p121 = scmp.ne.s32.totalorder %s107, %s108
    %p122 = scmp.eq.s32.totalorder %s16, 1
    %p123 = por %p121, %p122
    %p125 = scmp.ne.s32.totalorder %s108, %s124
    %p126 = scmp.eq.s32.totalorder %s16, 0
    %p127 = por %p125, %p126
    %s128 = ssub.s32 %s17, %s43
    %s129 = ssub.s32 %s18, %s39
    %s130 = sor.u32 %s128, %s129
    %s131 = ssub.s32 %s19, %s35
    %s132 = sor.u32 %s130, %s131
    %p133 = scmp.eq.s32.totalorder %s132, 0
    %s135 = sadd.s32 %s134, 1
    %s136 = scalar_select %p133, %s134, %s135
    %p139 = pneg %p133
    %p140 = scmp.eq.s32.totalorder %s10, 1
    %p141 = por %p139, %p140
    %p142 = scmp.ne.s32.totalorder %s134, %s137
    %p143 = scmp.eq.s32.totalorder %s10, 0
    %p144 = por %p142, %p143
    %p145 = scmp.ne.s32.totalorder %s134, %s137
    %p146 = scmp.eq.s32.totalorder %s15, 1
    %p147 = por %p145, %p146
    %p148 = scmp.ne.s32.totalorder %s137, %s138
    %p149 = scmp.eq.s32.totalorder %s15, 0
    %p150 = por %p148, %p149
    %p151 = scmp.ne.s32.totalorder %s137, %s138
    %p152 = scmp.eq.s32.totalorder %s16, 1
    %p153 = por %p151, %p152
    %p155 = scmp.ne.s32.totalorder %s138, %s154
    %p156 = scmp.eq.s32.totalorder %s16, 0
    %p157 = por %p155, %p156
    %s158 = ssub.s32 %s17, %s43
    %s159 = ssub.s32 %s18, %s39
    %s160 = sor.u32 %s158, %s159
    %s161 = ssub.s32 %s19, %s35
    %s162 = sor.u32 %s160, %s161
    %p163 = scmp.eq.s32.totalorder %s162, 0
    %s165 = sadd.s32 %s164, 1
    %s166 = scalar_select %p163, %s164, %s165
    %p169 = pneg %p163
    %p170 = scmp.eq.s32.totalorder %s10, 1
    %p171 = por %p169, %p170
    %p172 = scmp.ne.s32.totalorder %s164, %s167
    %p173 = scmp.eq.s32.totalorder %s10, 0
    %p174 = por %p172, %p173
    %p175 = scmp.ne.s32.totalorder %s164, %s167
    %p176 = scmp.eq.s32.totalorder %s15, 1
    %p177 = por %p175, %p176
    %p178 = scmp.ne.s32.totalorder %s167, %s168
    %p179 = scmp.eq.s32.totalorder %s15, 0
    %p180 = por %p178, %p179
    %p181 = scmp.ne.s32.totalorder %s167, %s168
    %p182 = scmp.eq.s32.totalorder %s16, 1
    %p183 = por %p181, %p182
    %p185 = scmp.ne.s32.totalorder %s168, %s184
    %p186 = scmp.eq.s32.totalorder %s16, 0
    %p187 = por %p185, %p186
    %p188 = scmp.le.s32.totalorder 1, %s10
    %p189 = scmp.lt.s32.totalorder %s10, 3
    %p190 = pnand %p188, %p189
    %p191 = pneg %p190
    // Predicated region
    $region9: #{llama_forward.17} parent=5 // pred_check
      _
    $region10: #{llama_forward.17} parent=5 // pred_check_branch
      %193 = sbr.rel (%p190) target = $region12
    $region11: #{llama_forward.17} parent=5 // pred_region
      %s194 = ssub.s32 %s10, 1
      // Predicated region
      $region13: #{llama_forward.17} parent=11 // pred_check
        %p195 = pneg %p94
      $region14: #{llama_forward.17} parent=11 // pred_check_branch
        %197 = sbr.rel (%p195) target = $region16
      $region15: #{llama_forward.17} parent=11 // pred_region
        %s198 = smul.u32 8, %s24
        %p199 = scmp.lt.s32.totalorder %s198, 7
        %s200 = scalar_select %p199, %s198, 7
        %p201 = scmp.lt.s32.totalorder %s23, 0
        %s202 = scalar_select %p201, %s23, 0
        %s203 = sadd.s32 %s202, %s200
        %s204 = smul.addr %s203, 4
        %s205 = scalar_lea.vmem %s1, %s204
        %s206 = smul.u32 8, %s24
      $region16: #{llama_forward.17} parent=11 // pred_fallthru
        _
      // Predicated region
      $region17: #{llama_forward.17} parent=11 // pred_check
        %p207 = pneg %p120
      $region18: #{llama_forward.17} parent=11 // pred_check_branch
        %209 = sbr.rel (%p207) target = $region20
      $region19: #{llama_forward.17} parent=11 // pred_region
        %p210 = scmp.lt.s32.totalorder %s23, 0
        %s211 = scalar_select %p210, %s23, 0
        %s212 = scalar_lea.vmem %s2, %s211
      $region20: #{llama_forward.17} parent=11 // pred_fallthru
        _
    $region12: #{llama_forward.17} parent=5 // pred_fallthru
      _
    %p213 = scmp.lt.s32.totalorder %s10, 2
    // Predicated region
    $region21: #{llama_forward.17} parent=5 // pred_check
      %p214 = pneg %p213
    $region22: #{llama_forward.17} parent=5 // pred_check_branch
      %216 = sbr.rel (%p214) target = $region24
    $region23: #{llama_forward.17} parent=5 // pred_region
      // Predicated region
      $region25: #{llama_forward.17} parent=23 // pred_check
        %p217 = pneg %p60
      $region26: #{llama_forward.17} parent=23 // pred_check_branch
        %219 = sbr.rel (%p217) target = $region28
      $region27: #{llama_forward.17} parent=23 // pred_region
        %p220 = scmp.lt.s32.totalorder %s17, 1
        %s221 = scalar_select %p220, %s17, 1
        %p222 = scmp.lt.s32.totalorder %s18, 0
        %s223 = scalar_select %p222, %s18, 0
        %p224 = scmp.lt.s32.totalorder %s20, 0
        %s225 = scalar_select %p224, %s20, 0
        %s226 = sadd.s32 %s225, %s223
        %s227 = sadd.s32 %s226, %s221
        %s228 = smul.addr %s227, 4
        %s229 = scalar_lea.vmem %s0, %s228
      $region28: #{llama_forward.17} parent=23 // pred_fallthru
        _
      // Predicated region
      $region29: #{llama_forward.17} parent=23 // pred_check
        %p230 = pneg %p144
      $region30: #{llama_forward.17} parent=23 // pred_check_branch
        %232 = sbr.rel (%p230) target = $region32
      $region31: #{llama_forward.17} parent=23 // pred_region
        %p233 = scmp.lt.s32.totalorder %s17, 1
        %s234 = scalar_select %p233, %s17, 1
        %p235 = scmp.lt.s32.totalorder %s18, 0
        %s236 = scalar_select %p235, %s18, 0
        %p237 = scmp.lt.s32.totalorder %s19, 0
        %s238 = scalar_select %p237, %s19, 0
        %s239 = sadd.s32 %s238, %s236
        %s240 = sadd.s32 %s239, %s234
        %s241 = smul.addr %s240, 8
        %s242 = scalar_lea.vmem %s3, %s241
      $region32: #{llama_forward.17} parent=23 // pred_fallthru
        _
    $region24: #{llama_forward.17} parent=5 // pred_fallthru
      _
    %p243 = scmp.le.s32.totalorder 1, %s10
    %p244 = scmp.lt.s32.totalorder %s10, 3
    %p245 = pnand %p243, %p244
    %p246 = pneg %p245
    // Predicated region
    $region33: #{llama_forward.17} parent=5 // pred_check
      _
    $region34: #{llama_forward.17} parent=5 // pred_check_branch
      %248 = sbr.rel (%p245) target = $region36
    $region35: #{llama_forward.17} parent=5 // pred_region
      %s249 = ssub.s32 %s10, 1
      %p250 = scmp.lt.s32.totalorder %s21, 1
      %s251 = scalar_select %p250, %s21, 1
      %p252 = scmp.lt.s32.totalorder %s22, 0
      %s253 = scalar_select %p252, %s22, 0
      %p254 = scmp.lt.s32.totalorder %s24, 0
      %s255 = scalar_select %p254, %s24, 0
      %s256 = sadd.s32 %s255, %s253
      %s257 = sadd.s32 %s256, %s251
      %s258 = smul.addr %s257, 4
      %s259 = scalar_lea.vmem %s0, %s258
      %p260 = pneg %p66
      %p261 = pneg %p63
      %s262 = smul.u32 8, %s24
      %p263 = scmp.lt.s32.totalorder %s262, 7
      %s264 = scalar_select %p263, %s262, 7
      %p265 = scmp.lt.s32.totalorder %s23, 0
      %s266 = scalar_select %p265, %s23, 0
      %s267 = sadd.s32 %s266, %s264
      %s268 = smul.addr %s267, 4
      %s269 = scalar_lea.vmem %s1, %s268
      %p270 = pneg %p94
      %p271 = pneg %p91
      %p272 = scmp.lt.s32.totalorder %s23, 0
      %s273 = scalar_select %p272, %s23, 0
      %s274 = scalar_lea.vmem %s2, %s273
      %p275 = pneg %p120
      %p276 = pneg %p117
      %p277 = scmp.lt.s32.totalorder %s21, 1
      %s278 = scalar_select %p277, %s21, 1
      %p279 = scmp.lt.s32.totalorder %s22, 0
      %s280 = scalar_select %p279, %s22, 0
      %p281 = scmp.lt.s32.totalorder %s23, 0
      %s282 = scalar_select %p281, %s23, 0
      %s283 = sadd.s32 %s282, %s280
      %s284 = sadd.s32 %s283, %s278
      %s285 = smul.addr %s284, 8
      %s286 = scalar_lea.vmem %s3, %s285
      %p287 = pneg %p150
      %p288 = pneg %p147
      %p289 = pneg %p180
      %p290 = pneg %p177
      %p291 = scmp.lt.s32.totalorder %s21, 1
      %s292 = scalar_select %p291, %s21, 1
      %p293 = scmp.lt.s32.totalorder %s22, 0
      %s294 = scalar_select %p293, %s22, 0
      %p295 = scmp.lt.s32.totalorder %s23, 0
      %s296 = scalar_select %p295, %s23, 0
      %s297 = sadd.s32 %s296, %s294
      %s298 = sadd.s32 %s297, %s292
      %s299 = smul.addr %s298, 8
      %s300 = scalar_lea.vmem %s4, %s299
      %p301 = scmp.lt.s32.totalorder %s21, 1
      %s302 = scalar_select %p301, %s21, 1
      %p303 = scmp.lt.s32.totalorder %s22, 0
      %s304 = scalar_select %p303, %s22, 0
      %p305 = scmp.lt.s32.totalorder %s24, 0
      %s306 = scalar_select %p305, %s24, 0
      %s307 = sadd.s32 %s306, %s304
      %s308 = sadd.s32 %s307, %s302
      %s309 = smul.addr %s308, 4
      %s310 = scalar_lea.vmem %s0, %s309
      %s311 = smul.u32 8, %s24
      %p312 = scmp.lt.s32.totalorder %s311, 7
      %s313 = scalar_select %p312, %s311, 7
      %p314 = scmp.lt.s32.totalorder %s23, 0
      %s315 = scalar_select %p314, %s23, 0
      %s316 = sadd.s32 %s315, %s313
      %s317 = smul.addr %s316, 4
      %s318 = scalar_lea.vmem %s1, %s317
      %s319 = smul.u32 8, %s24
      %p320 = scmp.lt.s32.totalorder %s23, 0
      %s321 = scalar_select %p320, %s23, 0
      %s322 = scalar_lea.vmem %s2, %s321
      %p323 = scmp.lt.s32.totalorder %s21, 1
      %s324 = scalar_select %p323, %s21, 1
      %p325 = scmp.lt.s32.totalorder %s22, 0
      %s326 = scalar_select %p325, %s22, 0
      %p327 = scmp.lt.s32.totalorder %s23, 0
      %s328 = scalar_select %p327, %s23, 0
      %s329 = sadd.s32 %s328, %s326
      %s330 = sadd.s32 %s329, %s324
      %s331 = smul.addr %s330, 8
      %s332 = scalar_lea.vmem %s3, %s331
      %p333 = scmp.lt.s32.totalorder %s21, 1
      %s334 = scalar_select %p333, %s21, 1
      %p335 = scmp.lt.s32.totalorder %s22, 0
      %s336 = scalar_select %p335, %s22, 0
      %p337 = scmp.lt.s32.totalorder %s23, 0
      %s338 = scalar_select %p337, %s23, 0
      %s339 = sadd.s32 %s338, %s336
      %s340 = sadd.s32 %s339, %s334
      %s341 = smul.addr %s340, 8
      %s342 = scalar_lea.vmem %s4, %s341
      %p344 = scmp.eq.s32.totalorder %s24, 0
      // Predicated region
      $region37: #{llama_forward.17} parent=35 // pred_check
        %p345 = pneg %p344
      $region38: #{llama_forward.17} parent=35 // pred_check_branch
        %347 = sbr.rel (%p345) target = $region40
      $region39: #{llama_forward.17} parent=35 // pred_region
        %vm348 = vcmask 261120
        %349 = vst.msk [vmem:[#allocation2] sm:$0xff] %vm348, 0.0
      $region40: #{llama_forward.17} parent=35 // pred_fallthru
        _
      %v350 = vld [vmem:[#allocation2] sm:$0xff]
      %v351 = vld [vmem:[%s310] sm:$0xf]
      %v352 = vld [vmem:[%s318] sm:$0xf]
      %v353 = vld [vmem:[%s318 + $0x4] sm:$0xf]
      %v354 = vld [vmem:[%s318 + $0x8] sm:$0xf]
      %v355 = vld [vmem:[%s318 + $0xc] sm:$0xf]
      %v356 = vld [vmem:[%s318 + $0x10] sm:$0xf]
      %v357 = vld [vmem:[%s318 + $0x14] sm:$0xf]
      %v358 = vld [vmem:[%s318 + $0x18] sm:$0xf]
      %v359 = vld [vmem:[%s318 + $0x1c] sm:$0xf]
      %v368 = vunpack.c.l.b16 %v352
      %v369 = vunpack.c.l.b16 %v353
      %v370 = vunpack.c.l.b16 %v354
      %v371 = vunpack.c.l.b16 %v355
      %v372 = vunpack.c.l.b16 %v356
      %v373 = vunpack.c.l.b16 %v357
      %v374 = vunpack.c.l.b16 %v358
      %v375 = vunpack.c.l.b16 %v359
      %v376 = vpack.c.b16 %v369, %v368
      %v377 = vpack.c.b16 %v371, %v370
      %v378 = vpack.c.b16 %v373, %v372
      %v379 = vpack.c.b16 %v375, %v374
      %vm384 = vcmask 523264
      %v386 = vsel %vm384, %v351, 0
      %388 = vmatprep.subr.bf16.mxu0 0
      %389 = vmatpush1.bf16.msra.mxu0 %v376
      %390 = vmatprep.subr.bf16.mxu0 0
      %391 = vmatpush1.bf16.msra.mxu0 %v377
      %392 = vmatprep.subr.bf16.mxu0 0
      %393 = vmatpush1.bf16.msra.mxu0 %v378
      %394 = vmatprep.subr.bf16.mxu0 0
      %395 = vmatpush1.bf16.msra.mxu0 %v379
      %396 = vmatprep.subr.bf16.mxu0 0
      %397 = vmatpush1.bf16.msra.mxu0 0
      %398 = vmatprep.subr.bf16.mxu0 0
      %399 = vmatpush1.bf16.msra.mxu0 0
      %400 = vmatprep.subr.bf16.mxu0 0
      %401 = vmatpush1.bf16.msra.mxu0 0
      %402 = vmatprep.subr.bf16.mxu0 0
      %403 = vmatpush1.bf16.msra.mxu0 0
      %404 = vmatprep.subr.bf16.mxu0 0
      %405 = vmatpush1.bf16.msra.mxu0 0
      %406 = vmatprep.subr.bf16.mxu0 0
      %407 = vmatpush1.bf16.msra.mxu0 0
      %408 = vmatprep.subr.bf16.mxu0 0
      %409 = vmatpush1.bf16.msra.mxu0 0
      %410 = vmatprep.subr.bf16.mxu0 0
      %411 = vmatpush1.bf16.msra.mxu0 0
      %412 = vmatprep.subr.bf16.mxu0 0
      %413 = vmatpush1.bf16.msra.mxu0 0
      %414 = vmatprep.subr.bf16.mxu0 0
      %415 = vmatpush1.bf16.msra.mxu0 0
      %416 = vmatprep.subr.bf16.mxu0 0
      %417 = vmatpush1.bf16.msra.mxu0 0
      %418 = vmatprep.subr.bf16.mxu0 0
      %419 = vmatpush1.bf16.msra.mxu0 0
      %420 = vmatprep.mubr.bf16.mxu0 0
      %421 = vmatmul.mubr.bf16.gmra.mrb[0].mxu0 %v386
      %v422 = vpop.f32.mrb[0].mxu0
      %v423 = vadd.f32 0.0, %v422
      %v424 = vpop.f32.mrb[0].mxu0
      %v425 = vpop.f32.mrb[0].mxu0
      %v426 = vpop.f32.mrb[0].mxu0
      %427 = vdwg.mxu0
      %v428 = vadd.f32 %v350, %v423
      %vm429 = vcmask 261120
      %430 = vst.msk [vmem:[#allocation2] sm:$0xff] %vm429, %v428
      // Predicated region
      $region41: #{llama_forward.17} parent=35 // pred_check
        %p431 = pneg %p344
      $region42: #{llama_forward.17} parent=35 // pred_check_branch
        %433 = sbr.rel (%p431) target = $region44
      $region43: #{llama_forward.17} parent=35 // pred_region
        %v434 = vld [vmem:[%s332] sm:$0xff]
        %v435 = vld [vmem:[#allocation2] sm:$0xff]
        %v436 = vadd.f32 %v434, %v435
        %v437 = vld [vmem:[%s322] sm:$0x1]
        %v439 = vlaneseq
        %v440 = vshrl.u32 %v439, 7
        %v441 = vsub.s32 0, %v440
        %v442 = vrot.slane %v437, %v441
        %v444 = vadd.f32 %v436, %v442
        %445 = vst.msk [vmem:[%s342] sm:$0xff] %vm429, %v444
      $region44: #{llama_forward.17} parent=35 // pred_fallthru
        _
      %p446 = scmp.lt.s32.totalorder %s21, 1
      %s447 = scalar_select %p446, %s21, 1
      %p448 = scmp.lt.s32.totalorder %s22, 0
      %s449 = scalar_select %p448, %s22, 0
      %p450 = scmp.lt.s32.totalorder %s23, 0
      %s451 = scalar_select %p450, %s23, 0
      %s452 = sadd.s32 %s451, %s449
      %s453 = sadd.s32 %s452, %s447
      %s454 = smul.addr %s453, 8
      %s455 = scalar_lea.vmem %s4, %s454
      // Predicated region
      $region45: #{llama_forward.17} parent=35 // pred_check
        %p456 = pneg %p177
      $region46: #{llama_forward.17} parent=35 // pred_check_branch
        %458 = sbr.rel (%p456) target = $region48
      $region47: #{llama_forward.17} parent=35 // pred_region
        _
      $region48: #{llama_forward.17} parent=35 // pred_fallthru
        _
    $region36: #{llama_forward.17} parent=5 // pred_fallthru
      _
    %p459 = scmp.le.s32.totalorder 2, %s10
    // Predicated region
    $region49: #{llama_forward.17} parent=5 // pred_check
      %p460 = pneg %p459
    $region50: #{llama_forward.17} parent=5 // pred_check_branch
      %462 = sbr.rel (%p460) target = $region52
    $region51: #{llama_forward.17} parent=5 // pred_region
      %s463 = ssub.s32 %s10, 2
      // Predicated region
      $region53: #{llama_forward.17} parent=51 // pred_check
        %p464 = pneg %p183
      $region54: #{llama_forward.17} parent=51 // pred_check_branch
        %466 = sbr.rel (%p464) target = $region56
      $region55: #{llama_forward.17} parent=51 // pred_region
        %p467 = scmp.lt.s32.totalorder %s25, 1
        %s468 = scalar_select %p467, %s25, 1
        %p469 = scmp.lt.s32.totalorder %s26, 0
        %s470 = scalar_select %p469, %s26, 0
        %p471 = scmp.lt.s32.totalorder %s27, 0
        %s472 = scalar_select %p471, %s27, 0
        %s473 = sadd.s32 %s472, %s470
        %s474 = sadd.s32 %s473, %s468
        %s475 = smul.addr %s474, 8
        %s476 = scalar_lea.vmem %s4, %s475
      $region56: #{llama_forward.17} parent=51 // pred_fallthru
        _
    $region52: #{llama_forward.17} parent=5 // pred_fallthru
      _
  $region6: #{llama_forward.17} parent=0 // loop_footer
    %s14 = sadd.s32 1, %s10
  $region7: #{llama_forward.17} parent=0 // loop_footer_branch
    %9 = sbr.rel target = $region3
  $region8: #{llama_forward.17} parent=0 // loop_exit
    _

// kernel: llama_forward.16
$region0: #{llama_forward.16}
  #allocation0 [shape = 'u32[]', space=smem, size = 0x4, offset = 0x4, fixed_abs, tag = 'smem constant byte address 0x4 - core index']
  #allocation1 [shape = 'u32[144,128]{1,0:T(1,128)}', space=vmem, size = 0x12000, scoped, tag = 'internal scratch']
  #allocation2 [shape = 'bf16[8,32]{1,0:T(8,128)(2,1)}', space=vmem, size = 0x800, scoped, tag = 'scratch operand']
  %s0 = inlined_call_operand.vmem [shape: f32[2,8,32], index: 0, kind: input, shape index: {}]
  %s1 = inlined_call_operand.vmem [shape: f32[1,32], index: 1, kind: input, shape index: {}]
  %s2 = inlined_call_operand.vmem [shape: f32[1,32], index: 2, kind: input, shape index: {}]
  %s3 = inlined_call_operand.vmem [shape: bf16[32,64], index: 3, kind: input, shape index: {}]
  %s4 = inlined_call_operand.vmem [shape: f32[1,64], index: 4, kind: input, shape index: {}]
  %s5 = inlined_call_operand.vmem [shape: bf16[2,8,64], index: 5, kind: output, shape index: {}]
  %s6 = sld [smem:[#allocation0]]
  $region57: #{llama_forward.16} parent=0
    _
  %s8 = ssub.s32 1, %s6
  %s9 = scalar_select 0, %s8, %s6
  loop: start=0, step=1, limit=4
  $region2: #{llama_forward.16} parent=0 // loop_pre_header
    _
  $region3: #{llama_forward.16} parent=0 // loop_header
    %s11 = sphi 0, %s15
    %p12 = scmp.ge.s32.totalorder %s11, 4
    %s18 = sphi 0, %s37
    %s19 = sphi 0, %s33
    %s20 = sphi 0, %s29
    %s21 = sphi 0, %s18
    %s22 = sphi 0, %s19
    %s23 = sphi 0, %s20
    %s24 = sphi 0, %s21
    %s25 = sphi 0, %s22
    %s26 = sphi 0, %s23
    %s42 = sphi 0, %s44
    %s45 = sphi 0, %s42
    %s46 = sphi 0, %s45
    %s62 = sphi 0, %s46
    %s66 = sphi 0, %s66
    %s68 = sphi 0, %s66
    %s69 = sphi 0, %s68
    %s83 = sphi 0, %s69
    %s87 = sphi 0, %s87
    %s89 = sphi 0, %s87
    %s90 = sphi 0, %s89
    %s104 = sphi 0, %s90
    %s110 = sphi 0, %s112
    %s113 = sphi 0, %s110
    %s114 = sphi 0, %s113
    %s130 = sphi 0, %s114
    %s136 = sphi 0, %s138
    %s139 = sphi 0, %s136
    %s140 = sphi 0, %s139
    %s156 = sphi 0, %s140
    %s166 = sphi 0, %s168
    %s169 = sphi 0, %s166
    %s170 = sphi 0, %s169
    %s186 = sphi 0, %s170
  $region4: #{llama_forward.16} parent=0 // loop_header_branch
    %14 = sbr.rel (%p12) target = $region8
  $region5: #{llama_forward.16} parent=0 // loop_body
    %s16 = ssub.s32 %s11, 1
    %s17 = ssub.s32 %s11, 2
    %s27 = sadd.s32 1, %s20
    %p28 = scmp.ge.s32.totalorder %s27, 1
    %s29 = scalar_select %p28, 0, %s27
    %s30 = sadd.s32 1, %s19
    %s31 = scalar_select %p28, %s30, %s19
    %p32 = scmp.ge.s32.totalorder %s31, 1
    %s33 = scalar_select %p32, 0, %s31
    %s34 = sadd.s32 1, %s18
    %s35 = scalar_select %p32, %s34, %s18
    %p36 = scmp.ge.s32.totalorder %s35, 2
    %s37 = scalar_select %p36, 0, %s35
    %s38 = ssub.s32 %s18, %s37
    %s39 = ssub.s32 %s19, %s33
    %s40 = sor.u32 %s38, %s39
    %p41 = scmp.eq.s32.totalorder %s40, 0
    %s43 = sadd.s32 %s42, 1
    %s44 = scalar_select %p41, %s42, %s43
    %p47 = pneg %p41
    %p48 = scmp.eq.s32.totalorder %s11, 1
    %p49 = por %p47, %p48
    %p50 = scmp.ne.s32.totalorder %s42, %s45
    %p51 = scmp.eq.s32.totalorder %s11, 0
    %p52 = por %p50, %p51
    %p53 = scmp.ne.s32.totalorder %s42, %s45
    %p54 = scmp.eq.s32.totalorder %s16, 1
    %p55 = por %p53, %p54
    %p56 = scmp.ne.s32.totalorder %s45, %s46
    %p57 = scmp.eq.s32.totalorder %s16, 0
    %p58 = por %p56, %p57
    %p59 = scmp.ne.s32.totalorder %s45, %s46
    %p60 = scmp.eq.s32.totalorder %s17, 1
    %p61 = por %p59, %p60
    %p63 = scmp.ne.s32.totalorder %s46, %s62
    %p64 = scmp.eq.s32.totalorder %s17, 0
    %p65 = por %p63, %p64
    %s67 = sadd.s32 %s66, 1
    %p70 = scmp.eq.s32.totalorder %s11, 1
    %p71 = scmp.ne.s32.totalorder %s66, %s68
    %p72 = scmp.eq.s32.totalorder %s11, 0
    %p73 = por %p71, %p72
    %p74 = scmp.ne.s32.totalorder %s66, %s68
    %p75 = scmp.eq.s32.totalorder %s16, 1
    %p76 = por %p74, %p75
    %p77 = scmp.ne.s32.totalorder %s68, %s69
    %p78 = scmp.eq.s32.totalorder %s16, 0
    %p79 = por %p77, %p78
    %p80 = scmp.ne.s32.totalorder %s68, %s69
    %p81 = scmp.eq.s32.totalorder %s17, 1
    %p82 = por %p80, %p81
    %p84 = scmp.ne.s32.totalorder %s69, %s83
    %p85 = scmp.eq.s32.totalorder %s17, 0
    %p86 = por %p84, %p85
    %s88 = sadd.s32 %s87, 1
    %p91 = scmp.eq.s32.totalorder %s11, 1
    %p92 = scmp.ne.s32.totalorder %s87, %s89
    %p93 = scmp.eq.s32.totalorder %s11, 0
    %p94 = por %p92, %p93
    %p95 = scmp.ne.s32.totalorder %s87, %s89
    %p96 = scmp.eq.s32.totalorder %s16, 1
    %p97 = por %p95, %p96
    %p98 = scmp.ne.s32.totalorder %s89, %s90
    %p99 = scmp.eq.s32.totalorder %s16, 0
    %p100 = por %p98, %p99
    %p101 = scmp.ne.s32.totalorder %s89, %s90
    %p102 = scmp.eq.s32.totalorder %s17, 1
    %p103 = por %p101, %p102
    %p105 = scmp.ne.s32.totalorder %s90, %s104
    %p106 = scmp.eq.s32.totalorder %s17, 0
    %p107 = por %p105, %p106
    %s108 = ssub.s32 %s20, %s29
    %p109 = scmp.eq.s32.totalorder %s108, 0
    %s111 = sadd.s32 %s110, 1
    %s112 = scalar_select %p109, %s110, %s111
    %p115 = pneg %p109
    %p116 = scmp.eq.s32.totalorder %s11, 1
    %p117 = por %p115, %p116
    %p118 = scmp.ne.s32.totalorder %s110, %s113
    %p119 = scmp.eq.s32.totalorder %s11, 0
    %p120 = por %p118, %p119
    %p121 = scmp.ne.s32.totalorder %s110, %s113
    %p122 = scmp.eq.s32.totalorder %s16, 1
    %p123 = por %p121, %p122
    %p124 = scmp.ne.s32.totalorder %s113, %s114
    %p125 = scmp.eq.s32.totalorder %s16, 0
    %p126 = por %p124, %p125
    %p127 = scmp.ne.s32.totalorder %s113, %s114
    %p128 = scmp.eq.s32.totalorder %s17, 1
    %p129 = por %p127, %p128
    %p131 = scmp.ne.s32.totalorder %s114, %s130
    %p132 = scmp.eq.s32.totalorder %s17, 0
    %p133 = por %p131, %p132
    %s134 = ssub.s32 %s20, %s29
    %p135 = scmp.eq.s32.totalorder %s134, 0
    %s137 = sadd.s32 %s136, 1
    %s138 = scalar_select %p135, %s136, %s137
    %p141 = pneg %p135
    %p142 = scmp.eq.s32.totalorder %s11, 1
    %p143 = por %p141, %p142
    %p144 = scmp.ne.s32.totalorder %s136, %s139
    %p145 = scmp.eq.s32.totalorder %s11, 0
    %p146 = por %p144, %p145
    %p147 = scmp.ne.s32.totalorder %s136, %s139
    %p148 = scmp.eq.s32.totalorder %s16, 1
    %p149 = por %p147, %p148
    %p150 = scmp.ne.s32.totalorder %s139, %s140
    %p151 = scmp.eq.s32.totalorder %s16, 0
    %p152 = por %p150, %p151
    %p153 = scmp.ne.s32.totalorder %s139, %s140
    %p154 = scmp.eq.s32.totalorder %s17, 1
    %p155 = por %p153, %p154
    %p157 = scmp.ne.s32.totalorder %s140, %s156
    %p158 = scmp.eq.s32.totalorder %s17, 0
    %p159 = por %p157, %p158
    %s160 = ssub.s32 %s18, %s37
    %s161 = ssub.s32 %s19, %s33
    %s162 = sor.u32 %s160, %s161
    %s163 = ssub.s32 %s20, %s29
    %s164 = sor.u32 %s162, %s163
    %p165 = scmp.eq.s32.totalorder %s164, 0
    %s167 = sadd.s32 %s166, 1
    %s168 = scalar_select %p165, %s166, %s167
    %p171 = pneg %p165
    %p172 = scmp.eq.s32.totalorder %s11, 1
    %p173 = por %p171, %p172
    %p174 = scmp.ne.s32.totalorder %s166, %s169
    %p175 = scmp.eq.s32.totalorder %s11, 0
    %p176 = por %p174, %p175
    %p177 = scmp.ne.s32.totalorder %s166, %s169
    %p178 = scmp.eq.s32.totalorder %s16, 1
    %p179 = por %p177, %p178
    %p180 = scmp.ne.s32.totalorder %s169, %s170
    %p181 = scmp.eq.s32.totalorder %s16, 0
    %p182 = por %p180, %p181
    %p183 = scmp.ne.s32.totalorder %s169, %s170
    %p184 = scmp.eq.s32.totalorder %s17, 1
    %p185 = por %p183, %p184
    %p187 = scmp.ne.s32.totalorder %s170, %s186
    %p188 = scmp.eq.s32.totalorder %s17, 0
    %p189 = por %p187, %p188
    %p190 = scmp.le.s32.totalorder 1, %s11
    %p191 = scmp.lt.s32.totalorder %s11, 3
    %p192 = pnand %p190, %p191
    %p193 = pneg %p192
    // Predicated region
    $region9: #{llama_forward.16} parent=5 // pred_check
      _
    $region10: #{llama_forward.16} parent=5 // pred_check_branch
      %195 = sbr.rel (%p192) target = $region12
    $region11: #{llama_forward.16} parent=5 // pred_region
      %s196 = ssub.s32 %s11, 1
      // Predicated region
      $region13: #{llama_forward.16} parent=11 // pred_check
        %p197 = pneg %p79
      $region14: #{llama_forward.16} parent=11 // pred_check_branch
        %199 = sbr.rel (%p197) target = $region16
      $region15: #{llama_forward.16} parent=11 // pred_region
        _
      $region16: #{llama_forward.16} parent=11 // pred_fallthru
        _
      // Predicated region
      $region17: #{llama_forward.16} parent=11 // pred_check
        %p200 = pneg %p100
      $region18: #{llama_forward.16} parent=11 // pred_check_branch
        %202 = sbr.rel (%p200) target = $region20
      $region19: #{llama_forward.16} parent=11 // pred_region
        _
      $region20: #{llama_forward.16} parent=11 // pred_fallthru
        _
      // Predicated region
      $region21: #{llama_forward.16} parent=11 // pred_check
        %p203 = pneg %p126
      $region22: #{llama_forward.16} parent=11 // pred_check_branch
        %205 = sbr.rel (%p203) target = $region24
      $region23: #{llama_forward.16} parent=11 // pred_region
        %p206 = scmp.lt.s32.totalorder %s23, 0
        %s207 = scalar_select %p206, %s23, 0
        %s208 = smul.addr %s207, 4
        %s209 = scalar_lea.vmem %s3, %s208
      $region24: #{llama_forward.16} parent=11 // pred_fallthru
        _
      // Predicated region
      $region25: #{llama_forward.16} parent=11 // pred_check
        %p210 = pneg %p152
      $region26: #{llama_forward.16} parent=11 // pred_check_branch
        %212 = sbr.rel (%p210) target = $region28
      $region27: #{llama_forward.16} parent=11 // pred_region
        %p213 = scmp.lt.s32.totalorder %s23, 0
        %s214 = scalar_select %p213, %s23, 0
        %s215 = scalar_lea.vmem %s4, %s214
      $region28: #{llama_forward.16} parent=11 // pred_fallthru
        _
    $region12: #{llama_forward.16} parent=5 // pred_fallthru
      _
    %p216 = scmp.lt.s32.totalorder %s11, 2
    // Predicated region
    $region29: #{llama_forward.16} parent=5 // pred_check
      %p217 = pneg %p216
    $region30: #{llama_forward.16} parent=5 // pred_check_branch
      %219 = sbr.rel (%p217) target = $region32
    $region31: #{llama_forward.16} parent=5 // pred_region
      // Predicated region
      $region33: #{llama_forward.16} parent=31 // pred_check
        %p220 = pneg %p52
      $region34: #{llama_forward.16} parent=31 // pred_check_branch
        %222 = sbr.rel (%p220) target = $region36
      $region35: #{llama_forward.16} parent=31 // pred_region
        %p223 = scmp.lt.s32.totalorder %s18, 1
        %s224 = scalar_select %p223, %s18, 1
        %p225 = scmp.lt.s32.totalorder %s19, 0
        %s226 = scalar_select %p225, %s19, 0
        %s227 = sadd.s32 %s226, %s224
        %s228 = smul.addr %s227, 8
        %s229 = scalar_lea.vmem %s0, %s228
      $region36: #{llama_forward.16} parent=31 // pred_fallthru
        _
    $region32: #{llama_forward.16} parent=5 // pred_fallthru
      _
    %p230 = scmp.le.s32.totalorder 1, %s11
    %p231 = scmp.lt.s32.totalorder %s11, 3
    %p232 = pnand %p230, %p231
    %p233 = pneg %p232
    // Predicated region
    $region37: #{llama_forward.16} parent=5 // pred_check
      _
    $region38: #{llama_forward.16} parent=5 // pred_check_branch
      %235 = sbr.rel (%p232) target = $region40
    $region39: #{llama_forward.16} parent=5 // pred_region
      %s236 = ssub.s32 %s11, 1
      %p237 = scmp.lt.s32.totalorder %s21, 1
      %s238 = scalar_select %p237, %s21, 1
      %p239 = scmp.lt.s32.totalorder %s22, 0
      %s240 = scalar_select %p239, %s22, 0
      %s241 = sadd.s32 %s240, %s238
      %s242 = smul.addr %s241, 8
      %s243 = scalar_lea.vmem %s0, %s242
      %p244 = pneg %p58
      %p245 = pneg %p55
      %p246 = pneg %p79
      %p247 = pneg %p76
      %p248 = pneg %p100
      %p249 = pneg %p97
      %p250 = scmp.lt.s32.totalorder %s23, 0
      %s251 = scalar_select %p250, %s23, 0
      %s252 = smul.addr %s251, 4
      %s253 = scalar_lea.vmem %s3, %s252
      %p254 = pneg %p126
      %p255 = pneg %p123
      %p256 = scmp.lt.s32.totalorder %s23, 0
      %s257 = scalar_select %p256, %s23, 0
      %s258 = scalar_lea.vmem %s4, %s257
      %p259 = pneg %p152
      %p260 = pneg %p149
      %p261 = pneg %p182
      %p262 = pneg %p179
      %p263 = scmp.lt.s32.totalorder %s21, 1
      %s264 = scalar_select %p263, %s21, 1
      %p265 = scmp.lt.s32.totalorder %s22, 0
      %s266 = scalar_select %p265, %s22, 0
      %p267 = scmp.lt.s32.totalorder %s23, 0
      %s268 = scalar_select %p267, %s23, 0
      %s269 = sadd.s32 %s268, %s266
      %s270 = sadd.s32 %s269, %s264
      %s271 = smul.addr %s270, 4
      %s272 = scalar_lea.vmem %s5, %s271
      %p273 = scmp.lt.s32.totalorder %s21, 1
      %s274 = scalar_select %p273, %s21, 1
      %p275 = scmp.lt.s32.totalorder %s22, 0
      %s276 = scalar_select %p275, %s22, 0
      %s277 = sadd.s32 %s276, %s274
      %s278 = smul.addr %s277, 8
      %s279 = scalar_lea.vmem %s0, %s278
      %p280 = scmp.lt.s32.totalorder %s23, 0
      %s281 = scalar_select %p280, %s23, 0
      %s282 = smul.addr %s281, 4
      %s283 = scalar_lea.vmem %s3, %s282
      %p284 = scmp.lt.s32.totalorder %s23, 0
      %s285 = scalar_select %p284, %s23, 0
      %s286 = scalar_lea.vmem %s4, %s285
      %p287 = scmp.lt.s32.totalorder %s21, 1
      %s288 = scalar_select %p287, %s21, 1
      %p289 = scmp.lt.s32.totalorder %s22, 0
      %s290 = scalar_select %p289, %s22, 0
      %p291 = scmp.lt.s32.totalorder %s23, 0
      %s292 = scalar_select %p291, %s23, 0
      %s293 = sadd.s32 %s292, %s290
      %s294 = sadd.s32 %s293, %s288
      %s295 = smul.addr %s294, 4
      %s296 = scalar_lea.vmem %s5, %s295
      %p298 = scmp.eq.s32.totalorder %s23, 0
      // Predicated region
      $region41: #{llama_forward.16} parent=39 // pred_check
        %p299 = pneg %p298
      $region42: #{llama_forward.16} parent=39 // pred_check_branch
        %301 = sbr.rel (%p299) target = $region44
      $region43: #{llama_forward.16} parent=39 // pred_region
        %v302 = vld [vmem:[%s279] sm:$0xff]
        %v303 = vld [vmem:[%s1] sm:$0x1]
        %v304 = vld [vmem:[%s2] sm:$0x1]
        %vm305 = vcmask 261120
        %v306 = vsel %vm305, %v302, 0.0
        %307 = vadd.xlane.f32.xlu0 %v306
        %v308 = vpop.xlane.xlu0 %307
        %v309 = vrcp.pop 32.0
        %v310 = vmul.f32 %v308, %v309
        %v311 = vsub.f32 %v302, %v310
        %v312 = vmul.f32 %v311, %v311
        %v313 = vsel %vm305, %v312, 0.0
        %314 = vadd.xlane.f32.xlu0 %v313
        %v315 = vpop.xlane.xlu0 %314
        %v316 = vmul.f32 %v315, %v309
        %v317 = vadd.f32 %v316, 1e-05
        %v318 = vrsqrt.pop %v317
        %v319 = vmul.f32 %v311, %v318
        %v321 = vlaneseq
        %v322 = vshrl.u32 %v321, 7
        %v323 = vsub.s32 0, %v322
        %v324 = vrot.slane %v303, %v323
        %v326 = vmul.f32 %v319, %v324
        %v328 = vlaneseq
        %v329 = vshrl.u32 %v328, 7
        %v330 = vsub.s32 0, %v329
        %v331 = vrot.slane %v304, %v330
        %v333 = vadd.f32 %v326, %v331
        %v334 = vpack.c.bf16 %v333, %v333
        %vm335 = vcmask 257024
        %336 = vst.msk [vmem:[#allocation2] sm:$0xf] %vm335, %v334
      $region44: #{llama_forward.16} parent=39 // pred_fallthru
        _
      %v337 = vld [vmem:[#allocation2] sm:$0xf]
      %v338 = vld [vmem:[%s283] sm:$0xf]
      %v339 = vld [vmem:[%s283 + $0x4] sm:$0xf]
      %v340 = vld [vmem:[%s283 + $0x8] sm:$0xf]
      %v341 = vld [vmem:[%s283 + $0xc] sm:$0xf]
      %v342 = vld [vmem:[%s286] sm:$0x1]
      %v344 = vlaneseq
      %v345 = vshrl.u32 %v344, 7
      %v346 = vsub.s32 0, %v345
      %v347 = vrot.slane %v342, %v346
      %v353 = vunpack.c.l.b16 %v338
      %v354 = vunpack.c.l.b16 %v339
      %v355 = vunpack.c.l.b16 %v340
      %v356 = vunpack.c.l.b16 %v341
      %v357 = vpack.c.b16 %v354, %v353
      %v358 = vpack.c.b16 %v356, %v355
      %vm361 = vcmask 261120
      %v363 = vsel %vm361, %v337, 0
      %365 = vmatprep.subr.bf16.mxu0 0
      %366 = vmatpush1.bf16.msra.mxu0 %v357
      %367 = vmatprep.subr.bf16.mxu0 0
      %368 = vmatpush1.bf16.msra.mxu0 %v358
      %369 = vmatprep.subr.bf16.mxu0 0
      %370 = vmatpush1.bf16.msra.mxu0 0
      %371 = vmatprep.subr.bf16.mxu0 0
      %372 = vmatpush1.bf16.msra.mxu0 0
      %373 = vmatprep.subr.bf16.mxu0 0
      %374 = vmatpush1.bf16.msra.mxu0 0
      %375 = vmatprep.subr.bf16.mxu0 0
      %376 = vmatpush1.bf16.msra.mxu0 0
      %377 = vmatprep.subr.bf16.mxu0 0
      %378 = vmatpush1.bf16.msra.mxu0 0
      %379 = vmatprep.subr.bf16.mxu0 0
      %380 = vmatpush1.bf16.msra.mxu0 0
      %381 = vmatprep.subr.bf16.mxu0 0
      %382 = vmatpush1.bf16.msra.mxu0 0
      %383 = vmatprep.subr.bf16.mxu0 0
      %384 = vmatpush1.bf16.msra.mxu0 0
      %385 = vmatprep.subr.bf16.mxu0 0
      %386 = vmatpush1.bf16.msra.mxu0 0
      %387 = vmatprep.subr.bf16.mxu0 0
      %388 = vmatpush1.bf16.msra.mxu0 0
      %389 = vmatprep.subr.bf16.mxu0 0
      %390 = vmatpush1.bf16.msra.mxu0 0
      %391 = vmatprep.subr.bf16.mxu0 0
      %392 = vmatpush1.bf16.msra.mxu0 0
      %393 = vmatprep.subr.bf16.mxu0 0
      %394 = vmatpush1.bf16.msra.mxu0 0
      %395 = vmatprep.subr.bf16.mxu0 0
      %396 = vmatpush1.bf16.msra.mxu0 0
      %397 = vmatprep.mubr.bf16.mxu0 0
      %398 = vmatmul.mubr.bf16.gmra.mrb[0].mxu0 %v363
      %v399 = vpop.f32.mrb[0].mxu0
      %v400 = vadd.f32 %v347, %v399
      %v401 = vpop.f32.mrb[0].mxu0
      %v402 = vpop.f32.mrb[0].mxu0
      %v403 = vpop.f32.mrb[0].mxu0
      %404 = vdwg.mxu0
      %v405 = vmul.f32 %v400, 0.5
      %v406 = vmul.f32 %v400, 0.70710677
      %v407 = vand.u32 2147483647, %v406
      %v408 = vmul.f32 %v407, 0.3275911
      %v409 = vadd.f32 %v408, 1.0
      %v410 = vrcp.pop %v409
      %v411 = vmul.f32 1.0, %v410
      %v412 = vmul.f32 %v411, 1.0614054
      %v413 = vadd.f32 %v412, -1.4531521
      %v414 = vmul.f32 %v413, %v411
      %v415 = vadd.f32 %v414, 1.4214138
      %v416 = vmul.f32 %v415, %v411
      %v417 = vadd.f32 %v416, -0.28449672
      %v418 = vmul.f32 %v417, %v411
      %v419 = vadd.f32 %v418, 0.2548296
      %v420 = vmul.f32 %v419, %v411
      %v421 = vsub.f32 0.0, %v407
      %v422 = vmul.f32 %v421, %v407
      %v423 = vmul.f32 %v422, 1.442695
      %v424 = vpow.pop %v423
      %v425 = vmul.f32 %v420, %v424
      %v426 = vsub.f32 1.0, %v425
      %vm427 = vcmp.ge.f32.partialorder %v406, 0.0
      %v428 = vsub.f32 0.0, %v426
      %v429 = vsel %vm427, %v426, %v428
      %v430 = vadd.f32 %v429, 1.0
      %v431 = vmul.f32 %v405, %v430
      %v432 = vpack.c.bf16 %v431, %v431
      %vm433 = vcmask 519168
      %434 = vst.msk [vmem:[%s296] sm:$0xf] %vm433, %v432
      %p435 = scmp.lt.s32.totalorder %s21, 1
      %s436 = scalar_select %p435, %s21, 1
      %p437 = scmp.lt.s32.totalorder %s22, 0
      %s438 = scalar_select %p437, %s22, 0
      %p439 = scmp.lt.s32.totalorder %s23, 0
      %s440 = scalar_select %p439, %s23, 0
      %s441 = sadd.s32 %s440, %s438
      %s442 = sadd.s32 %s441, %s436
      %s443 = smul.addr %s442, 4
      %s444 = scalar_lea.vmem %s5, %s443
      // Predicated region
      $region45: #{llama_forward.16} parent=39 // pred_check
        %p445 = pneg %p179
      $region46: #{llama_forward.16} parent=39 // pred_check_branch
        %447 = sbr.rel (%p445) target = $region48
      $region47: #{llama_forward.16} parent=39 // pred_region
        _
      $region48: #{llama_forward.16} parent=39 // pred_fallthru
        _
    $region40: #{llama_forward.16} parent=5 // pred_fallthru
      _
    %p448 = scmp.le.s32.totalorder 2, %s11
    // Predicated region
    $region49: #{llama_forward.16} parent=5 // pred_check
      %p449 = pneg %p448
    $region50: #{llama_forward.16} parent=5 // pred_check_branch
      %451 = sbr.rel (%p449) target = $region52
    $region51: #{llama_forward.16} parent=5 // pred_region
      %s452 = ssub.s32 %s11, 2
      // Predicated region
      $region53: #{llama_forward.16} parent=51 // pred_check
        %p453 = pneg %p185
      $region54: #{llama_forward.16} parent=51 // pred_check_branch
        %455 = sbr.rel (%p453) target = $region56
      $region55: #{llama_forward.16} parent=51 // pred_region
        %p456 = scmp.lt.s32.totalorder %s24, 1
        %s457 = scalar_select %p456, %s24, 1
        %p458 = scmp.lt.s32.totalorder %s25, 0
        %s459 = scalar_select %p458, %s25, 0
        %p460 = scmp.lt.s32.totalorder %s26, 0
        %s461 = scalar_select %p460, %s26, 0
        %s462 = sadd.s32 %s461, %s459
        %s463 = sadd.s32 %s462, %s457
        %s464 = smul.addr %s463, 4
        %s465 = scalar_lea.vmem %s5, %s464
      $region56: #{llama_forward.16} parent=51 // pred_fallthru
        _
    $region52: #{llama_forward.16} parent=5 // pred_fallthru
      _
  $region6: #{llama_forward.16} parent=0 // loop_footer
    %s15 = sadd.s32 1, %s11
  $region7: #{llama_forward.16} parent=0 // loop_footer_branch
    %10 = sbr.rel target = $region3
  $region8: #{llama_forward.16} parent=0 // loop_exit
    _

</llo_original>
